<compile_context>
chip_gen: v7x
topology: tpu7x:2x2x1
jax: 0.10.0
libtpu: 0.0.40
codegen_flags: <defaults>
</compile_context>

<pallas_src>
import math

import jax
import jax.numpy as jnp
from jax import lax
from jax.experimental import pallas as pl
from jax.experimental.pallas import tpu as pltpu


HIDDEN = 256
FC1 = 1024
FC2 = 512

# XLA:CPU's DotThunk cannot execute BF16 x BF16 = F32, so only feed bf16 to the
# MXU when the default backend really is a TPU; otherwise stay in f32.
_MXU_DTYPE = jnp.bfloat16 if jax.default_backend() == "tpu" else jnp.float32


def actor_kernel(s_ref, wih_ref, gib_ref, whh_ref, bhn_ref,
                 w1_hbm, b1_ref, w2_hbm, b2_ref, wmu_hbm, bmu_ref,
                 mean_ref,
                 h_ref, w1_vmem, w2_vmem, wmu_vmem, dma_sems):
    """One time-tile of the GRU recurrence; MLP head runs on the last tile.

    s_ref  : (Tt, B, D) f32   time-major state tile (auto-pipelined over grid)
    wih_ref: (D, 3H)          input-to-hidden weights      [r|z|n]
    gib_ref: (1, 3H)  f32     b_ih + b_hh folded for r/z, b_ih for n
    whh_ref: (H, 3H)          recurrent weights (transposed, [r|z|n])
    bhn_ref: (1, H)   f32     b_hh[n]  (must stay inside r * (h_n + b_hn))
    w1/w2/wmu_hbm             MLP weights left in HBM (pl.ANY), DMA'd manually
    b1/b2/bmu_ref             MLP biases (VMEM resident)
    mean_ref: (B, A)  f32     output (written on last grid step)
    h_ref   : (B, H)  f32     hidden-state carry across time tiles
    w*_vmem                   VMEM landing buffers for the manual weight DMAs
    dma_sems: DMA((3,))       one semaphore per weight DMA
    """
    t_idx = pl.program_id(0)
    n_t = pl.num_programs(0)
    Tt, B, _ = s_ref.shape
    H = whh_ref.shape[0]
    md = w1_vmem.dtype  # MXU operand dtype (bf16 on TPU, f32 otherwise)

    # Grid step 0: zero the carried hidden state and kick off the MLP-weight
    # DMAs so ~all of their transfer hides behind the serial recurrence.
    @pl.when(t_idx == 0)
    def _():
        h_ref[...] = jnp.zeros_like(h_ref)
        pltpu.make_async_copy(w1_hbm, w1_vmem, dma_sems.at[0]).start()
        pltpu.make_async_copy(w2_hbm, w2_vmem, dma_sems.at[1]).start()
        pltpu.make_async_copy(wmu_hbm, wmu_vmem, dma_sems.at[2]).start()

    # Hoist all loop-invariant loads / broadcasts out of the serial loop
    # (JAX does not CSE broadcast_in_dim).
    wih = wih_ref[...]
    whh_rz = whh_ref[:, :2 * H]
    whh_n = whh_ref[:, 2 * H:]
    gib = jnp.broadcast_to(gib_ref[...], (B, 3 * H))
    bhn = jnp.broadcast_to(bhn_ref[...], (B, H))

    def gru_step(t, h):
        # Input projection computed in-kernel (no HBM-resident gi_all).
        gi = jnp.dot(s_ref[t].astype(md), wih,
                     preferred_element_type=jnp.float32) + gib        # (B, 3H)
        hb = h.astype(md)
        # r/z vs n matmuls split: the r/z sigmoids can start on the EUP while
        # the n-gate MXU pass is still in flight.
        gh_rz = jnp.dot(hb, whh_rz, preferred_element_type=jnp.float32)
        gh_n = jnp.dot(hb, whh_n, preferred_element_type=jnp.float32)
        r = jax.nn.sigmoid(gi[:, :H] + gh_rz[:, :H])
        z = jax.nn.sigmoid(gi[:, H:2 * H] + gh_rz[:, H:])
        n = jnp.tanh(gi[:, 2 * H:] + r * (gh_n + bhn))
        return (1.0 - z) * n + z * h                                  # PyTorch GRU

    h = lax.fori_loop(0, Tt, gru_step, h_ref[...], unroll=min(Tt, 4))
    h_ref[...] = h  # carry across time tiles

    # Last grid step: x = out[:, -1] (== final hidden) -> MLP -> Gaussian mean.
    @pl.when(t_idx == n_t - 1)
    def _():
        pltpu.make_async_copy(w1_hbm, w1_vmem, dma_sems.at[0]).wait()
        x = jnp.dot(h.astype(md), w1_vmem[...],
                    preferred_element_type=jnp.float32) + b1_ref[...]
        x = jnp.clip(x, 0.0, 6.0)                                     # ReLU6
        pltpu.make_async_copy(w2_hbm, w2_vmem, dma_sems.at[1]).wait()
        x = jnp.dot(x.astype(md), w2_vmem[...],
                    preferred_element_type=jnp.float32) + b2_ref[...]
        x = jnp.clip(x, 0.0, 6.0)                                     # ReLU6
        pltpu.make_async_copy(wmu_hbm, wmu_vmem, dma_sems.at[2]).wait()
        mean = jnp.dot(x.astype(md), wmu_vmem[...],
                       preferred_element_type=jnp.float32) + bmu_ref[...]
        mean_ref[...] = mean.astype(mean_ref.dtype)


def init_actor_params(key, state_dim, action_dim):
    """Deterministic synthetic init (mimics fmod(randn,2)*0.01 MLP weights,
    zero biases; uniform(-1/sqrt(H), 1/sqrt(H)) for the GRU)."""
    ks = jax.random.split(key, 8)
    bound = 1.0 / math.sqrt(HIDDEN)

    def u(k, shape):
        return jax.random.uniform(k, shape, jnp.float32, -bound, bound)

    def small_normal(k, shape):
        w = jax.random.normal(k, shape, jnp.float32)
        return jnp.fmod(w, 2.0) * 0.01

    return dict(
        # GRU (PyTorch stores (3H, D)/(3H, H); kept transposed (D, 3H)/(H, 3H))
        w_ih=u(ks[0], (state_dim, 3 * HIDDEN)),
        w_hh=u(ks[1], (HIDDEN, 3 * HIDDEN)),
        b_ih=u(ks[2], (1, 3 * HIDDEN)),
        b_hh=u(ks[3], (1, 3 * HIDDEN)),
        # MLP (transposed to (in, out)); biases start at 0 per module __init__
        w1=small_normal(ks[4], (HIDDEN, FC1)),
        b1=jnp.zeros((1, FC1), jnp.float32),
        w2=small_normal(ks[5], (FC1, FC2)),
        b2=jnp.zeros((1, FC2), jnp.float32),
        w_mu=small_normal(ks[6], (FC2, action_dim)),
        b_mu=jnp.zeros((1, action_dim), jnp.float32),
        log_std=jnp.full((1, action_dim), math.log(0.05), jnp.float32),
    )


def _padded_vmem_bytes(shape, dtype):
    """Rough (8,128)-padded VMEM footprint of one array."""
    itemsize = jnp.dtype(dtype).itemsize
    shape = tuple(int(d) for d in shape)
    if len(shape) == 0:
        shape = (1, 1)
    elif len(shape) == 1:
        shape = (1, shape[0])
    lead = 1
    for d in shape[:-2]:
        lead *= d
    sub = -(-shape[-2] // 8) * 8
    lane = -(-shape[-1] // 128) * 128
    return lead * sub * lane * itemsize


def _choose_time_tile(T, target=16):
    """Largest divisor of T <= target, preferring >= 2 grid steps."""
    if T <= 1:
        return 1
    cap = min(target, max(1, T // 2))
    for tt in range(cap, 0, -1):
        if T % tt == 0:
            return tt
    return 1


def _vmem_cap_bytes():
    """Generation-aware ceiling (~80% of physical VMEM: 128 MiB v5e/v6e,
    64 MiB v7x); conservative fallback when the query is unavailable."""
    try:
        cap = int(pltpu.get_tpu_info().vmem_capacity_bytes)
    except Exception:
        cap = 64 << 20
    return int(cap * 0.8)


@jax.jit
def actor_forward(s, params):
    """s: (B, T, D) or (T, D) float32. Returns (mean, std), each (B, A) f32."""
    if s.ndim < 3:
        s = s[None, ...]                     # match `s = s.view(1, *s.shape)`
    B, T, D = s.shape
    H = HIDDEN
    A = params["w_mu"].shape[1]
    md = _MXU_DTYPE

    # Time-major layout: the kernel then indexes timesteps on the cheap leading
    # axis of its block.  (D=16, so this is tiny vs. the old T*B*3H gi_all.)
    s_tm = jnp.transpose(s, (1, 0, 2)).astype(jnp.float32)

    w_ih = params["w_ih"].astype(md)
    w_hh = params["w_hh"].astype(md)
    w1 = params["w1"].astype(md)
    w2 = params["w2"].astype(md)
    w_mu = params["w_mu"].astype(md)

    # Fold b_ih + b_hh for the r/z gates into the input-projection bias;
    # only b_hh[n] must remain inside the recurrent loop.
    b_ih, b_hh = params["b_ih"], params["b_hh"]
    gi_bias = jnp.concatenate(
        [b_ih[:, :H] + b_hh[:, :H],
         b_ih[:, H:2 * H] + b_hh[:, H:2 * H],
         b_ih[:, 2 * H:]], axis=1)                       # (1, 3H) f32
    b_hn = b_hh[:, 2 * H:]                               # (1, H)  f32

    Tt = _choose_time_tile(T)
    n_t = T // Tt

    def const(shape):
        return pl.BlockSpec(shape, lambda t, _n=len(shape): (0,) * _n)

    in_specs = [
        pl.BlockSpec((Tt, B, D), lambda t: (t, 0, 0)),   # state tile (pipelined)
        const((D, 3 * H)),                               # w_ih
        const((1, 3 * H)),                               # gi_bias
        const((H, 3 * H)),                               # w_hh
        const((1, H)),                                   # b_hn
        pl.BlockSpec(memory_space=pl.ANY),               # w1 (manual DMA)
        const((1, FC1)),                                 # b1
        pl.BlockSpec(memory_space=pl.ANY),               # w2 (manual DMA)
        const((1, FC2)),                                 # b2
        pl.BlockSpec(memory_space=pl.ANY),               # w_mu (manual DMA)
        const((1, A)),                                   # b_mu
    ]
    out_spec = pl.BlockSpec((B, A), lambda t: (0, 0))

    scratch_shapes = [
        pltpu.VMEM((B, H), jnp.float32),                 # hidden-state carry
        pltpu.VMEM((H, FC1), md),                        # w1 landing buffer
        pltpu.VMEM((FC1, FC2), md),                      # w2 landing buffer
        pltpu.VMEM((FC2, A), md),                        # w_mu landing buffer
        pltpu.SemaphoreType.DMA((3,)),
    ]

    kernel_inputs = (s_tm, w_ih, gi_bias, w_hh, b_hn,
                     w1, params["b1"], w2, params["b2"], w_mu, params["b_mu"])

    # Footprint-derived VMEM limit, capped by the chip generation.
    resident = [(w_ih.shape, md), (gi_bias.shape, jnp.float32),
                (w_hh.shape, md), (b_hn.shape, jnp.float32),
                (params["b1"].shape, jnp.float32),
                (params["b2"].shape, jnp.float32),
                (params["b_mu"].shape, jnp.float32),
                ((B, H), jnp.float32), ((H, FC1), md), ((FC1, FC2), md),
                ((FC2, A), md), ((B, A), jnp.float32)]
    footprint = sum(_padded_vmem_bytes(sh, dt) for sh, dt in resident)
    footprint += 2 * _padded_vmem_bytes((Tt, B, D), jnp.float32)  # dbl-buffered tile
    vmem_limit = int(min(max(4 * footprint, 16 << 20), _vmem_cap_bytes()))

    flops = (2 * T * B * D * 3 * H            # input projection (in-kernel now)
             + 2 * T * B * H * 3 * H          # recurrent matmuls
             + 2 * B * (H * FC1 + FC1 * FC2 + FC2 * A))
    bytes_accessed = int(sum(x.size * jnp.dtype(x.dtype).itemsize
                             for x in kernel_inputs) + B * A * 4)
    cost = pl.CostEstimate(flops=int(flops),
                           transcendentals=int(3 * T * B * H),
                           bytes_accessed=bytes_accessed)

    mean = pl.pallas_call(
        actor_kernel,
        out_shape=jax.ShapeDtypeStruct((B, A), jnp.float32),
        grid=(n_t,),
        in_specs=in_specs,
        out_specs=out_spec,
        scratch_shapes=scratch_shapes,
        compiler_params=pltpu.CompilerParams(
            dimension_semantics=("arbitrary",),   # serial recurrence over time
            vmem_limit_bytes=vmem_limit),
        cost_estimate=cost,
    )(*kernel_inputs)

    # std = exp(log_std) is input-independent; keep it out of the kernel.
    std = jnp.broadcast_to(jnp.exp(params["log_std"]), (B, A))
    return mean, std


def actor_forward_ref(s, params):
    """Pure-JAX reference with matching numerics (same MXU dtype / f32 gates)."""
    if s.ndim < 3:
        s = s[None, ...]
    B, T, D = s.shape
    H = HIDDEN
    md = _MXU_DTYPE
    w_ih = params["w_ih"].astype(md)
    w_hh = params["w_hh"].astype(md)
    h = jnp.zeros((B, H), jnp.float32)
    for t in range(T):
        gi = jnp.dot(s[:, t, :].astype(md), w_ih,
                     preferred_element_type=jnp.float32) + params["b_ih"]
        gh = jnp.dot(h.astype(md), w_hh,
                     preferred_element_type=jnp.float32) + params["b_hh"]
        r = jax.nn.sigmoid(gi[:, :H] + gh[:, :H])
        z = jax.nn.sigmoid(gi[:, H:2 * H] + gh[:, H:2 * H])
        n = jnp.tanh(gi[:, 2 * H:] + r * gh[:, 2 * H:])
        h = (1.0 - z) * n + z * h
    x = jnp.clip(jnp.dot(h.astype(md), params["w1"].astype(md),
                         preferred_element_type=jnp.float32) + params["b1"], 0.0, 6.0)
    x = jnp.clip(jnp.dot(x.astype(md), params["w2"].astype(md),
                         preferred_element_type=jnp.float32) + params["b2"], 0.0, 6.0)
    mean = jnp.dot(x.astype(md), params["w_mu"].astype(md),
                   preferred_element_type=jnp.float32) + params["b_mu"]
    std = jnp.broadcast_to(jnp.exp(params["log_std"]), mean.shape)
    return mean, std


if __name__ == "__main__":
    key = jax.random.PRNGKey(0)
    k_param, k_input = jax.random.split(key)

    # Small shapes: batch=2, seq=8, state_dim=16, action_dim=4
    B, T, D, A = 2, 8, 16, 4
    params = init_actor_params(k_param, state_dim=D, action_dim=A)
    s = jax.random.normal(k_input, (B, T, D), jnp.float32)

    mean, std = actor_forward(s, params)
    jax.block_until_ready((mean, std))

    mean_ref, std_ref = actor_forward_ref(s, params)
    assert mean.shape == (B, A) and std.shape == (B, A)
    assert jnp.allclose(mean, mean_ref, atol=2e-3, rtol=2e-2), (
        "max |diff| = %g" % float(jnp.max(jnp.abs(mean - mean_ref))))
    assert jnp.allclose(std, std_ref, atol=1e-6, rtol=1e-6)

    print("KERNEL_OK")
</pallas_src>

<mosaic_0001>
module attributes {stable_mosaic.version = 11 : i64} {
  func.func @actor_kernel(%arg0: i32, %arg1: memref<4x2x16xf32, #tpu.memory_space<vmem>>, %arg2: memref<16x768xf32, #tpu.memory_space<vmem>>, %arg3: memref<1x768xf32, #tpu.memory_space<vmem>>, %arg4: memref<256x768xf32, #tpu.memory_space<vmem>>, %arg5: memref<1x256xf32, #tpu.memory_space<vmem>>, %arg6: memref<256x1024xf32, #tpu.memory_space<any>>, %arg7: memref<1x1024xf32, #tpu.memory_space<vmem>>, %arg8: memref<1024x512xf32, #tpu.memory_space<any>>, %arg9: memref<1x512xf32, #tpu.memory_space<vmem>>, %arg10: memref<512x4xf32, #tpu.memory_space<any>>, %arg11: memref<1x4xf32, #tpu.memory_space<vmem>>, %arg12: memref<2x4xf32, #tpu.memory_space<vmem>>, %arg13: memref<2x256xf32, #tpu.memory_space<vmem>>, %arg14: memref<256x1024xf32, #tpu.memory_space<vmem>>, %arg15: memref<1024x512xf32, #tpu.memory_space<vmem>>, %arg16: memref<512x4xf32, #tpu.memory_space<vmem>>, %arg17: memref<3x!tpu.dma_semaphore, #tpu.memory_space<semaphore_mem>>) attributes {dimension_semantics = [#tpu.dimension_semantics<arbitrary>], iteration_bounds = array<i64: 2>, scalar_prefetch = 0 : i64, scratch_operands = 5 : i64, tpu.core_type = #tpu.core_type<tc>, window_params = [{transform_indices = @transform_0, window_bounds = array<i64: 4, 2, 16>}, {pipeline_mode = #tpu.pipeline_mode<synchronous>, transform_indices = @transform_1, window_bounds = array<i64: 16, 768>}, {pipeline_mode = #tpu.pipeline_mode<synchronous>, transform_indices = @transform_2, window_bounds = array<i64: 1, 768>}, {pipeline_mode = #tpu.pipeline_mode<synchronous>, transform_indices = @transform_3, window_bounds = array<i64: 256, 768>}, {pipeline_mode = #tpu.pipeline_mode<synchronous>, transform_indices = @transform_4, window_bounds = array<i64: 1, 256>}, {}, {pipeline_mode = #tpu.pipeline_mode<synchronous>, transform_indices = @transform_6, window_bounds = array<i64: 1, 1024>}, {}, {pipeline_mode = #tpu.pipeline_mode<synchronous>, transform_indices = @transform_8, window_bounds = array<i64: 1, 512>}, {}, {pipeline_mode = #tpu.pipeline_mode<synchronous>, transform_indices = @transform_10, window_bounds = array<i64: 1, 4>}, {pipeline_mode = #tpu.pipeline_mode<synchronous>, transform_indices = @transform_11, window_bounds = array<i64: 2, 4>}]} {
    %c0_i32 = arith.constant 0 : i32
    %0 = arith.cmpi eq, %arg0, %c0_i32 : i32
    %1 = arith.extui %0 : i1 to i32
    %c0_i32_0 = arith.constant 0 : i32
    %2 = arith.cmpi ne, %1, %c0_i32_0 : i32
    scf.if %2 {
      %cst_47 = arith.constant 0.000000e+00 : f32
      %149 = vector.broadcast %cst_47 : f32 to vector<2x256xf32>
      %c0_48 = arith.constant 0 : index
      %c0_49 = arith.constant 0 : index
      %150 = vector.load %arg13[%c0_48, %c0_49] : memref<2x256xf32, #tpu.memory_space<vmem>>, vector<2x256xf32>
      tpu.vector_store %arg13[%c0_48, %c0_49], %149 {strides = array<i32>} : memref<2x256xf32, #tpu.memory_space<vmem>>, vector<2x256xf32>,
      %c0_i32_50 = arith.constant 0 : i32
      %151 = tpu.memref_slice %arg17[%c0_i32_50] : memref<3x!tpu.dma_semaphore, #tpu.memory_space<semaphore_mem>> -> memref<1x!tpu.dma_semaphore, #tpu.memory_space<semaphore_mem>>
      %152 = tpu.memref_squeeze %151 : memref<1x!tpu.dma_semaphore, #tpu.memory_space<semaphore_mem>> -> memref<!tpu.dma_semaphore, #tpu.memory_space<semaphore_mem>>
      tpu.enqueue_dma source(%arg6 : memref<256x1024xf32, #tpu.memory_space<any>>) target(%arg14 : memref<256x1024xf32, #tpu.memory_space<vmem>>) target_semaphore(%152 : memref<!tpu.dma_semaphore, #tpu.memory_space<semaphore_mem>>)
      %c1_i32_51 = arith.constant 1 : i32
      %153 = tpu.memref_slice %arg17[%c1_i32_51] : memref<3x!tpu.dma_semaphore, #tpu.memory_space<semaphore_mem>> -> memref<1x!tpu.dma_semaphore, #tpu.memory_space<semaphore_mem>>
      %154 = tpu.memref_squeeze %153 : memref<1x!tpu.dma_semaphore, #tpu.memory_space<semaphore_mem>> -> memref<!tpu.dma_semaphore, #tpu.memory_space<semaphore_mem>>
      tpu.enqueue_dma source(%arg8 : memref<1024x512xf32, #tpu.memory_space<any>>) target(%arg15 : memref<1024x512xf32, #tpu.memory_space<vmem>>) target_semaphore(%154 : memref<!tpu.dma_semaphore, #tpu.memory_space<semaphore_mem>>)
      %c2_i32_52 = arith.constant 2 : i32
      %155 = tpu.memref_slice %arg17[%c2_i32_52] : memref<3x!tpu.dma_semaphore, #tpu.memory_space<semaphore_mem>> -> memref<1x!tpu.dma_semaphore, #tpu.memory_space<semaphore_mem>>
      %156 = tpu.memref_squeeze %155 : memref<1x!tpu.dma_semaphore, #tpu.memory_space<semaphore_mem>> -> memref<!tpu.dma_semaphore, #tpu.memory_space<semaphore_mem>>
      tpu.enqueue_dma source(%arg10 : memref<512x4xf32, #tpu.memory_space<any>>) target(%arg16 : memref<512x4xf32, #tpu.memory_space<vmem>>) target_semaphore(%156 : memref<!tpu.dma_semaphore, #tpu.memory_space<semaphore_mem>>)
    } else {
    }
    %c0 = arith.constant 0 : index
    %c0_1 = arith.constant 0 : index
    %3 = vector.load %arg2[%c0, %c0_1] : memref<16x768xf32, #tpu.memory_space<vmem>>, vector<16x768xf32>
    %c0_2 = arith.constant 0 : index
    %c0_3 = arith.constant 0 : index
    %4 = vector.load %arg4[%c0_2, %c0_3] : memref<256x768xf32, #tpu.memory_space<vmem>>, vector<256x512xf32>
    %c0_4 = arith.constant 0 : index
    %c512 = arith.constant 512 : index
    %5 = vector.load %arg4[%c0_4, %c512] : memref<256x768xf32, #tpu.memory_space<vmem>>, vector<256x256xf32>
    %c0_5 = arith.constant 0 : index
    %c0_6 = arith.constant 0 : index
    %6 = vector.load %arg3[%c0_5, %c0_6] : memref<1x768xf32, #tpu.memory_space<vmem>>, vector<1x768xf32>
    %7 = vector.shape_cast %6 : vector<1x768xf32> to vector<1x768xf32>
    %8 = vector.broadcast %7 : vector<1x768xf32> to vector<2x768xf32>
    %c0_7 = arith.constant 0 : index
    %c0_8 = arith.constant 0 : index
    %9 = vector.load %arg5[%c0_7, %c0_8] : memref<1x256xf32, #tpu.memory_space<vmem>>, vector<1x256xf32>
    %10 = vector.shape_cast %9 : vector<1x256xf32> to vector<1x256xf32>
    %11 = vector.broadcast %10 : vector<1x256xf32> to vector<2x256xf32>
    %c0_9 = arith.constant 0 : index
    %c0_10 = arith.constant 0 : index
    %12 = vector.load %arg13[%c0_9, %c0_10] : memref<2x256xf32, #tpu.memory_space<vmem>>, vector<2x256xf32>
    %c0_i32_11 = arith.constant 0 : i32
    %13 = arith.index_cast %c0_i32_11 : i32 to index
    %c0_12 = arith.constant 0 : index
    %c0_13 = arith.constant 0 : index
    %14 = vector.load %arg1[%13, %c0_12, %c0_13] : memref<4x2x16xf32, #tpu.memory_space<vmem>>, vector<1x2x16xf32>
    %15 = vector.shape_cast %14 : vector<1x2x16xf32> to vector<2x16xf32>
    %cst = arith.constant dense<0.000000e+00> : vector<2x768xf32>
    %16 = tpu.matmul %15, %3, %cst {dimension_numbers = #tpu.dot_dimension_numbers<[1], [0], [0], [1], [0, 0, 1, 1], [], []>} : vector<2x16xf32>, vector<16x768xf32>, vector<2x768xf32> -> vector<2x768xf32>
    %17 = arith.addf %16, %8 : vector<2x768xf32>
    %cst_14 = arith.constant dense<0.000000e+00> : vector<2x512xf32>
    %18 = tpu.matmul %12, %4, %cst_14 {dimension_numbers = #tpu.dot_dimension_numbers<[1], [0], [0], [1], [0, 0, 1, 1], [], []>} : vector<2x256xf32>, vector<256x512xf32>, vector<2x512xf32> -> vector<2x512xf32>
    %cst_15 = arith.constant dense<0.000000e+00> : vector<2x256xf32>
    %19 = tpu.matmul %12, %5, %cst_15 {dimension_numbers = #tpu.dot_dimension_numbers<[1], [0], [0], [1], [0, 0, 1, 1], [], []>} : vector<2x256xf32>, vector<256x256xf32>, vector<2x256xf32> -> vector<2x256xf32>
    %20 = vector.extract_strided_slice %17 {offsets = [0, 0], sizes = [2, 256], strides = [1, 1]} : vector<2x768xf32> to vector<2x256xf32>
    %21 = vector.extract_strided_slice %18 {offsets = [0, 0], sizes = [2, 256], strides = [1, 1]} : vector<2x512xf32> to vector<2x256xf32>
    %22 = arith.addf %20, %21 : vector<2x256xf32>
    %23 = arith.negf %22 : vector<2x256xf32>
    %24 = math.exp %23 : vector<2x256xf32>
    %cst_16 = arith.constant 1.000000e+00 : f32
    %25 = vector.broadcast %cst_16 : f32 to vector<2x256xf32>
    %26 = arith.addf %25, %24 : vector<2x256xf32>
    %27 = arith.divf %25, %26 : vector<2x256xf32>
    %28 = vector.extract_strided_slice %17 {offsets = [0, 256], sizes = [2, 256], strides = [1, 1]} : vector<2x768xf32> to vector<2x256xf32>
    %29 = vector.extract_strided_slice %18 {offsets = [0, 256], sizes = [2, 256], strides = [1, 1]} : vector<2x512xf32> to vector<2x256xf32>
    %30 = arith.addf %28, %29 : vector<2x256xf32>
    %31 = arith.negf %30 : vector<2x256xf32>
    %32 = math.exp %31 : vector<2x256xf32>
    %cst_17 = arith.constant 1.000000e+00 : f32
    %33 = vector.broadcast %cst_17 : f32 to vector<2x256xf32>
    %34 = arith.addf %33, %32 : vector<2x256xf32>
    %35 = arith.divf %33, %34 : vector<2x256xf32>
    %36 = vector.extract_strided_slice %17 {offsets = [0, 512], sizes = [2, 256], strides = [1, 1]} : vector<2x768xf32> to vector<2x256xf32>
    %37 = arith.addf %19, %11 : vector<2x256xf32>
    %38 = arith.mulf %27, %37 : vector<2x256xf32>
    %39 = arith.addf %36, %38 : vector<2x256xf32>
    %40 = math.tanh %39 : vector<2x256xf32>
    %cst_18 = arith.constant 1.000000e+00 : f32
    %41 = vector.broadcast %cst_18 : f32 to vector<2x256xf32>
    %42 = arith.subf %41, %35 : vector<2x256xf32>
    %43 = arith.mulf %42, %40 : vector<2x256xf32>
    %44 = arith.mulf %35, %12 : vector<2x256xf32>
    %45 = arith.addf %43, %44 : vector<2x256xf32>
    %c1_i32 = arith.constant 1 : i32
    %46 = arith.index_cast %c1_i32 : i32 to index
    %c0_19 = arith.constant 0 : index
    %c0_20 = arith.constant 0 : index
    %47 = vector.load %arg1[%46, %c0_19, %c0_20] : memref<4x2x16xf32, #tpu.memory_space<vmem>>, vector<1x2x16xf32>
    %48 = vector.shape_cast %47 : vector<1x2x16xf32> to vector<2x16xf32>
    %cst_21 = arith.constant dense<0.000000e+00> : vector<2x768xf32>
    %49 = tpu.matmul %48, %3, %cst_21 {dimension_numbers = #tpu.dot_dimension_numbers<[1], [0], [0], [1], [0, 0, 1, 1], [], []>} : vector<2x16xf32>, vector<16x768xf32>, vector<2x768xf32> -> vector<2x768xf32>
    %50 = arith.addf %49, %8 : vector<2x768xf32>
    %cst_22 = arith.constant dense<0.000000e+00> : vector<2x512xf32>
    %51 = tpu.matmul %45, %4, %cst_22 {dimension_numbers = #tpu.dot_dimension_numbers<[1], [0], [0], [1], [0, 0, 1, 1], [], []>} : vector<2x256xf32>, vector<256x512xf32>, vector<2x512xf32> -> vector<2x512xf32>
    %cst_23 = arith.constant dense<0.000000e+00> : vector<2x256xf32>
    %52 = tpu.matmul %45, %5, %cst_23 {dimension_numbers = #tpu.dot_dimension_numbers<[1], [0], [0], [1], [0, 0, 1, 1], [], []>} : vector<2x256xf32>, vector<256x256xf32>, vector<2x256xf32> -> vector<2x256xf32>
    %53 = vector.extract_strided_slice %50 {offsets = [0, 0], sizes = [2, 256], strides = [1, 1]} : vector<2x768xf32> to vector<2x256xf32>
    %54 = vector.extract_strided_slice %51 {offsets = [0, 0], sizes = [2, 256], strides = [1, 1]} : vector<2x512xf32> to vector<2x256xf32>
    %55 = arith.addf %53, %54 : vector<2x256xf32>
    %56 = arith.negf %55 : vector<2x256xf32>
    %57 = math.exp %56 : vector<2x256xf32>
    %cst_24 = arith.constant 1.000000e+00 : f32
    %58 = vector.broadcast %cst_24 : f32 to vector<2x256xf32>
    %59 = arith.addf %58, %57 : vector<2x256xf32>
    %60 = arith.divf %58, %59 : vector<2x256xf32>
    %61 = vector.extract_strided_slice %50 {offsets = [0, 256], sizes = [2, 256], strides = [1, 1]} : vector<2x768xf32> to vector<2x256xf32>
    %62 = vector.extract_strided_slice %51 {offsets = [0, 256], sizes = [2, 256], strides = [1, 1]} : vector<2x512xf32> to vector<2x256xf32>
    %63 = arith.addf %61, %62 : vector<2x256xf32>
    %64 = arith.negf %63 : vector<2x256xf32>
    %65 = math.exp %64 : vector<2x256xf32>
    %cst_25 = arith.constant 1.000000e+00 : f32
    %66 = vector.broadcast %cst_25 : f32 to vector<2x256xf32>
    %67 = arith.addf %66, %65 : vector<2x256xf32>
    %68 = arith.divf %66, %67 : vector<2x256xf32>
    %69 = vector.extract_strided_slice %50 {offsets = [0, 512], sizes = [2, 256], strides = [1, 1]} : vector<2x768xf32> to vector<2x256xf32>
    %70 = arith.addf %52, %11 : vector<2x256xf32>
    %71 = arith.mulf %60, %70 : vector<2x256xf32>
    %72 = arith.addf %69, %71 : vector<2x256xf32>
    %73 = math.tanh %72 : vector<2x256xf32>
    %cst_26 = arith.constant 1.000000e+00 : f32
    %74 = vector.broadcast %cst_26 : f32 to vector<2x256xf32>
    %75 = arith.subf %74, %68 : vector<2x256xf32>
    %76 = arith.mulf %75, %73 : vector<2x256xf32>
    %77 = arith.mulf %68, %45 : vector<2x256xf32>
    %78 = arith.addf %76, %77 : vector<2x256xf32>
    %c2_i32 = arith.constant 2 : i32
    %79 = arith.index_cast %c2_i32 : i32 to index
    %c0_27 = arith.constant 0 : index
    %c0_28 = arith.constant 0 : index
    %80 = vector.load %arg1[%79, %c0_27, %c0_28] : memref<4x2x16xf32, #tpu.memory_space<vmem>>, vector<1x2x16xf32>
    %81 = vector.shape_cast %80 : vector<1x2x16xf32> to vector<2x16xf32>
    %cst_29 = arith.constant dense<0.000000e+00> : vector<2x768xf32>
    %82 = tpu.matmul %81, %3, %cst_29 {dimension_numbers = #tpu.dot_dimension_numbers<[1], [0], [0], [1], [0, 0, 1, 1], [], []>} : vector<2x16xf32>, vector<16x768xf32>, vector<2x768xf32> -> vector<2x768xf32>
    %83 = arith.addf %82, %8 : vector<2x768xf32>
    %cst_30 = arith.constant dense<0.000000e+00> : vector<2x512xf32>
    %84 = tpu.matmul %78, %4, %cst_30 {dimension_numbers = #tpu.dot_dimension_numbers<[1], [0], [0], [1], [0, 0, 1, 1], [], []>} : vector<2x256xf32>, vector<256x512xf32>, vector<2x512xf32> -> vector<2x512xf32>
    %cst_31 = arith.constant dense<0.000000e+00> : vector<2x256xf32>
    %85 = tpu.matmul %78, %5, %cst_31 {dimension_numbers = #tpu.dot_dimension_numbers<[1], [0], [0], [1], [0, 0, 1, 1], [], []>} : vector<2x256xf32>, vector<256x256xf32>, vector<2x256xf32> -> vector<2x256xf32>
    %86 = vector.extract_strided_slice %83 {offsets = [0, 0], sizes = [2, 256], strides = [1, 1]} : vector<2x768xf32> to vector<2x256xf32>
    %87 = vector.extract_strided_slice %84 {offsets = [0, 0], sizes = [2, 256], strides = [1, 1]} : vector<2x512xf32> to vector<2x256xf32>
    %88 = arith.addf %86, %87 : vector<2x256xf32>
    %89 = arith.negf %88 : vector<2x256xf32>
    %90 = math.exp %89 : vector<2x256xf32>
    %cst_32 = arith.constant 1.000000e+00 : f32
    %91 = vector.broadcast %cst_32 : f32 to vector<2x256xf32>
    %92 = arith.addf %91, %90 : vector<2x256xf32>
    %93 = arith.divf %91, %92 : vector<2x256xf32>
    %94 = vector.extract_strided_slice %83 {offsets = [0, 256], sizes = [2, 256], strides = [1, 1]} : vector<2x768xf32> to vector<2x256xf32>
    %95 = vector.extract_strided_slice %84 {offsets = [0, 256], sizes = [2, 256], strides = [1, 1]} : vector<2x512xf32> to vector<2x256xf32>
    %96 = arith.addf %94, %95 : vector<2x256xf32>
    %97 = arith.negf %96 : vector<2x256xf32>
    %98 = math.exp %97 : vector<2x256xf32>
    %cst_33 = arith.constant 1.000000e+00 : f32
    %99 = vector.broadcast %cst_33 : f32 to vector<2x256xf32>
    %100 = arith.addf %99, %98 : vector<2x256xf32>
    %101 = arith.divf %99, %100 : vector<2x256xf32>
    %102 = vector.extract_strided_slice %83 {offsets = [0, 512], sizes = [2, 256], strides = [1, 1]} : vector<2x768xf32> to vector<2x256xf32>
    %103 = arith.addf %85, %11 : vector<2x256xf32>
    %104 = arith.mulf %93, %103 : vector<2x256xf32>
    %105 = arith.addf %102, %104 : vector<2x256xf32>
    %106 = math.tanh %105 : vector<2x256xf32>
    %cst_34 = arith.constant 1.000000e+00 : f32
    %107 = vector.broadcast %cst_34 : f32 to vector<2x256xf32>
    %108 = arith.subf %107, %101 : vector<2x256xf32>
    %109 = arith.mulf %108, %106 : vector<2x256xf32>
    %110 = arith.mulf %101, %78 : vector<2x256xf32>
    %111 = arith.addf %109, %110 : vector<2x256xf32>
    %c3_i32 = arith.constant 3 : i32
    %112 = arith.index_cast %c3_i32 : i32 to index
    %c0_35 = arith.constant 0 : index
    %c0_36 = arith.constant 0 : index
    %113 = vector.load %arg1[%112, %c0_35, %c0_36] : memref<4x2x16xf32, #tpu.memory_space<vmem>>, vector<1x2x16xf32>
    %114 = vector.shape_cast %113 : vector<1x2x16xf32> to vector<2x16xf32>
    %cst_37 = arith.constant dense<0.000000e+00> : vector<2x768xf32>
    %115 = tpu.matmul %114, %3, %cst_37 {dimension_numbers = #tpu.dot_dimension_numbers<[1], [0], [0], [1], [0, 0, 1, 1], [], []>} : vector<2x16xf32>, vector<16x768xf32>, vector<2x768xf32> -> vector<2x768xf32>
    %116 = arith.addf %115, %8 : vector<2x768xf32>
    %cst_38 = arith.constant dense<0.000000e+00> : vector<2x512xf32>
    %117 = tpu.matmul %111, %4, %cst_38 {dimension_numbers = #tpu.dot_dimension_numbers<[1], [0], [0], [1], [0, 0, 1, 1], [], []>} : vector<2x256xf32>, vector<256x512xf32>, vector<2x512xf32> -> vector<2x512xf32>
    %cst_39 = arith.constant dense<0.000000e+00> : vector<2x256xf32>
    %118 = tpu.matmul %111, %5, %cst_39 {dimension_numbers = #tpu.dot_dimension_numbers<[1], [0], [0], [1], [0, 0, 1, 1], [], []>} : vector<2x256xf32>, vector<256x256xf32>, vector<2x256xf32> -> vector<2x256xf32>
    %119 = vector.extract_strided_slice %116 {offsets = [0, 0], sizes = [2, 256], strides = [1, 1]} : vector<2x768xf32> to vector<2x256xf32>
    %120 = vector.extract_strided_slice %117 {offsets = [0, 0], sizes = [2, 256], strides = [1, 1]} : vector<2x512xf32> to vector<2x256xf32>
    %121 = arith.addf %119, %120 : vector<2x256xf32>
    %122 = arith.negf %121 : vector<2x256xf32>
    %123 = math.exp %122 : vector<2x256xf32>
    %cst_40 = arith.constant 1.000000e+00 : f32
    %124 = vector.broadcast %cst_40 : f32 to vector<2x256xf32>
    %125 = arith.addf %124, %123 : vector<2x256xf32>
    %126 = arith.divf %124, %125 : vector<2x256xf32>
    %127 = vector.extract_strided_slice %116 {offsets = [0, 256], sizes = [2, 256], strides = [1, 1]} : vector<2x768xf32> to vector<2x256xf32>
    %128 = vector.extract_strided_slice %117 {offsets = [0, 256], sizes = [2, 256], strides = [1, 1]} : vector<2x512xf32> to vector<2x256xf32>
    %129 = arith.addf %127, %128 : vector<2x256xf32>
    %130 = arith.negf %129 : vector<2x256xf32>
    %131 = math.exp %130 : vector<2x256xf32>
    %cst_41 = arith.constant 1.000000e+00 : f32
    %132 = vector.broadcast %cst_41 : f32 to vector<2x256xf32>
    %133 = arith.addf %132, %131 : vector<2x256xf32>
    %134 = arith.divf %132, %133 : vector<2x256xf32>
    %135 = vector.extract_strided_slice %116 {offsets = [0, 512], sizes = [2, 256], strides = [1, 1]} : vector<2x768xf32> to vector<2x256xf32>
    %136 = arith.addf %118, %11 : vector<2x256xf32>
    %137 = arith.mulf %126, %136 : vector<2x256xf32>
    %138 = arith.addf %135, %137 : vector<2x256xf32>
    %139 = math.tanh %138 : vector<2x256xf32>
    %cst_42 = arith.constant 1.000000e+00 : f32
    %140 = vector.broadcast %cst_42 : f32 to vector<2x256xf32>
    %141 = arith.subf %140, %134 : vector<2x256xf32>
    %142 = arith.mulf %141, %139 : vector<2x256xf32>
    %143 = arith.mulf %134, %111 : vector<2x256xf32>
    %144 = arith.addf %142, %143 : vector<2x256xf32>
    %c4_i32 = arith.constant 4 : i32
    %c0_43 = arith.constant 0 : index
    %c0_44 = arith.constant 0 : index
    %145 = vector.load %arg13[%c0_43, %c0_44] : memref<2x256xf32, #tpu.memory_space<vmem>>, vector<2x256xf32>
    tpu.vector_store %arg13[%c0_43, %c0_44], %144 {strides = array<i32>} : memref<2x256xf32, #tpu.memory_space<vmem>>, vector<2x256xf32>,
    %c1_i32_45 = arith.constant 1 : i32
    %146 = arith.cmpi eq, %arg0, %c1_i32_45 : i32
    %147 = arith.extui %146 : i1 to i32
    %c0_i32_46 = arith.constant 0 : i32
    %148 = arith.cmpi ne, %147, %c0_i32_46 : i32
    scf.if %148 {
      %c0_i32_47 = arith.constant 0 : i32
      %149 = tpu.memref_slice %arg17[%c0_i32_47] : memref<3x!tpu.dma_semaphore, #tpu.memory_space<semaphore_mem>> -> memref<1x!tpu.dma_semaphore, #tpu.memory_space<semaphore_mem>>
      %150 = tpu.memref_squeeze %149 : memref<1x!tpu.dma_semaphore, #tpu.memory_space<semaphore_mem>> -> memref<!tpu.dma_semaphore, #tpu.memory_space<semaphore_mem>>
      tpu.wait_dma2 semaphore(%150 : memref<!tpu.dma_semaphore, #tpu.memory_space<semaphore_mem>>) src(%arg6 : memref<256x1024xf32, #tpu.memory_space<any>>) dst(%arg14 : memref<256x1024xf32, #tpu.memory_space<vmem>>)
      %c0_48 = arith.constant 0 : index
      %c0_49 = arith.constant 0 : index
      %151 = vector.load %arg14[%c0_48, %c0_49] : memref<256x1024xf32, #tpu.memory_space<vmem>>, vector<256x1024xf32>
      %cst_50 = arith.constant dense<0.000000e+00> : vector<2x1024xf32>
      %152 = tpu.matmul %144, %151, %cst_50 {dimension_numbers = #tpu.dot_dimension_numbers<[1], [0], [0], [1], [0, 0, 1, 1], [], []>} : vector<2x256xf32>, vector<256x1024xf32>, vector<2x1024xf32> -> vector<2x1024xf32>
      %c0_51 = arith.constant 0 : index
      %c0_52 = arith.constant 0 : index
      %153 = vector.load %arg7[%c0_51, %c0_52] : memref<1x1024xf32, #tpu.memory_space<vmem>>, vector<1x1024xf32>
      %154 = vector.broadcast %153 : vector<1x1024xf32> to vector<2x1024xf32>
      %155 = arith.addf %152, %154 : vector<2x1024xf32>
      %cst_53 = arith.constant 0.000000e+00 : f32
      %cst_54 = arith.constant 6.000000e+00 : f32
      %156 = vector.broadcast %cst_53 : f32 to vector<2x1024xf32>
      %157 = arith.maximumf %156, %155 : vector<2x1024xf32>
      %158 = vector.broadcast %cst_54 : f32 to vector<2x1024xf32>
      %159 = arith.minimumf %158, %157 : vector<2x1024xf32>
      %c1_i32_55 = arith.constant 1 : i32
      %160 = tpu.memref_slice %arg17[%c1_i32_55] : memref<3x!tpu.dma_semaphore, #tpu.memory_space<semaphore_mem>> -> memref<1x!tpu.dma_semaphore, #tpu.memory_space<semaphore_mem>>
      %161 = tpu.memref_squeeze %160 : memref<1x!tpu.dma_semaphore, #tpu.memory_space<semaphore_mem>> -> memref<!tpu.dma_semaphore, #tpu.memory_space<semaphore_mem>>
      tpu.wait_dma2 semaphore(%161 : memref<!tpu.dma_semaphore, #tpu.memory_space<semaphore_mem>>) src(%arg8 : memref<1024x512xf32, #tpu.memory_space<any>>) dst(%arg15 : memref<1024x512xf32, #tpu.memory_space<vmem>>)
      %c0_56 = arith.constant 0 : index
      %c0_57 = arith.constant 0 : index
      %162 = vector.load %arg15[%c0_56, %c0_57] : memref<1024x512xf32, #tpu.memory_space<vmem>>, vector<1024x512xf32>
      %cst_58 = arith.constant dense<0.000000e+00> : vector<2x512xf32>
      %163 = tpu.matmul %159, %162, %cst_58 {dimension_numbers = #tpu.dot_dimension_numbers<[1], [0], [0], [1], [0, 0, 1, 1], [], []>} : vector<2x1024xf32>, vector<1024x512xf32>, vector<2x512xf32> -> vector<2x512xf32>
      %c0_59 = arith.constant 0 : index
      %c0_60 = arith.constant 0 : index
      %164 = vector.load %arg9[%c0_59, %c0_60] : memref<1x512xf32, #tpu.memory_space<vmem>>, vector<1x512xf32>
      %165 = vector.broadcast %164 : vector<1x512xf32> to vector<2x512xf32>
      %166 = arith.addf %163, %165 : vector<2x512xf32>
      %cst_61 = arith.constant 0.000000e+00 : f32
      %cst_62 = arith.constant 6.000000e+00 : f32
      %167 = vector.broadcast %cst_61 : f32 to vector<2x512xf32>
      %168 = arith.maximumf %167, %166 : vector<2x512xf32>
      %169 = vector.broadcast %cst_62 : f32 to vector<2x512xf32>
      %170 = arith.minimumf %169, %168 : vector<2x512xf32>
      %c2_i32_63 = arith.constant 2 : i32
      %171 = tpu.memref_slice %arg17[%c2_i32_63] : memref<3x!tpu.dma_semaphore, #tpu.memory_space<semaphore_mem>> -> memref<1x!tpu.dma_semaphore, #tpu.memory_space<semaphore_mem>>
      %172 = tpu.memref_squeeze %171 : memref<1x!tpu.dma_semaphore, #tpu.memory_space<semaphore_mem>> -> memref<!tpu.dma_semaphore, #tpu.memory_space<semaphore_mem>>
      tpu.wait_dma2 semaphore(%172 : memref<!tpu.dma_semaphore, #tpu.memory_space<semaphore_mem>>) src(%arg10 : memref<512x4xf32, #tpu.memory_space<any>>) dst(%arg16 : memref<512x4xf32, #tpu.memory_space<vmem>>)
      %c0_64 = arith.constant 0 : index
      %c0_65 = arith.constant 0 : index
      %173 = vector.load %arg16[%c0_64, %c0_65] : memref<512x4xf32, #tpu.memory_space<vmem>>, vector<512x4xf32>
      %cst_66 = arith.constant dense<0.000000e+00> : vector<2x4xf32>
      %174 = tpu.matmul %170, %173, %cst_66 {dimension_numbers = #tpu.dot_dimension_numbers<[1], [0], [0], [1], [0, 0, 1, 1], [], []>} : vector<2x512xf32>, vector<512x4xf32>, vector<2x4xf32> -> vector<2x4xf32>
      %c0_67 = arith.constant 0 : index
      %c0_68 = arith.constant 0 : index
      %175 = vector.load %arg11[%c0_67, %c0_68] : memref<1x4xf32, #tpu.memory_space<vmem>>, vector<1x4xf32>
      %176 = vector.broadcast %175 : vector<1x4xf32> to vector<2x4xf32>
      %177 = arith.addf %174, %176 : vector<2x4xf32>
      %c0_69 = arith.constant 0 : index
      %c0_70 = arith.constant 0 : index
      %178 = vector.load %arg12[%c0_69, %c0_70] : memref<2x4xf32, #tpu.memory_space<vmem>>, vector<2x4xf32>
      tpu.vector_store %arg12[%c0_69, %c0_70], %177 {strides = array<i32>} : memref<2x4xf32, #tpu.memory_space<vmem>>, vector<2x4xf32>,
    } else {
    }
    return
  }
  func.func @transform_0(%arg0: i32) -> (i32, i32, i32) {
    %c0_i32 = arith.constant 0 : i32
    %c0_i32_0 = arith.constant 0 : i32
    %c0_i32_1 = arith.constant 0 : i32
    return %arg0, %c0_i32, %c0_i32_0 : i32, i32, i32
  }
  func.func @transform_1(%arg0: i32) -> (i32, i32) {
    %c0_i32 = arith.constant 0 : i32
    %c0_i32_0 = arith.constant 0 : i32
    %c0_i32_1 = arith.constant 0 : i32
    return %c0_i32, %c0_i32_0 : i32, i32
  }
  func.func @transform_2(%arg0: i32) -> (i32, i32) {
    %c0_i32 = arith.constant 0 : i32
    %c0_i32_0 = arith.constant 0 : i32
    %c0_i32_1 = arith.constant 0 : i32
    return %c0_i32, %c0_i32_0 : i32, i32
  }
  func.func @transform_3(%arg0: i32) -> (i32, i32) {
    %c0_i32 = arith.constant 0 : i32
    %c0_i32_0 = arith.constant 0 : i32
    %c0_i32_1 = arith.constant 0 : i32
    return %c0_i32, %c0_i32_0 : i32, i32
  }
  func.func @transform_4(%arg0: i32) -> (i32, i32) {
    %c0_i32 = arith.constant 0 : i32
    %c0_i32_0 = arith.constant 0 : i32
    %c0_i32_1 = arith.constant 0 : i32
    return %c0_i32, %c0_i32_0 : i32, i32
  }
  func.func @transform_6(%arg0: i32) -> (i32, i32) {
    %c0_i32 = arith.constant 0 : i32
    %c0_i32_0 = arith.constant 0 : i32
    %c0_i32_1 = arith.constant 0 : i32
    return %c0_i32, %c0_i32_0 : i32, i32
  }
  func.func @transform_8(%arg0: i32) -> (i32, i32) {
    %c0_i32 = arith.constant 0 : i32
    %c0_i32_0 = arith.constant 0 : i32
    %c0_i32_1 = arith.constant 0 : i32
    return %c0_i32, %c0_i32_0 : i32, i32
  }
  func.func @transform_10(%arg0: i32) -> (i32, i32) {
    %c0_i32 = arith.constant 0 : i32
    %c0_i32_0 = arith.constant 0 : i32
    %c0_i32_1 = arith.constant 0 : i32
    return %c0_i32, %c0_i32_0 : i32, i32
  }
  func.func @transform_11(%arg0: i32) -> (i32, i32) {
    %c0_i32 = arith.constant 0 : i32
    %c0_i32_0 = arith.constant 0 : i32
    %c0_i32_1 = arith.constant 0 : i32
    return %c0_i32, %c0_i32_0 : i32, i32
  }
}

</mosaic_0001>

<llo_original>
// kernel: actor_forward.1
$region0: #{actor_forward.1}
  #allocation0 [shape = 'u32[]', space=smem, size = 0x4, offset = 0x4, fixed_abs, tag = 'smem constant byte address 0x4 - core index']
  #allocation1 [shape = 'u32[144,128]{1,0:T(1,128)}', space=vmem, size = 0x12000, scoped, tag = 'internal scratch']
  #allocation2 [shape = 'f32[2,256]{1,0:T(2,128)}', space=vmem, size = 0x800, scoped, tag = 'scratch operand']
  #allocation3 [shape = 'f32[256,1024]{1,0:T(8,128)}', space=vmem, size = 0x100000, scoped, tag = 'scratch operand']
  #allocation4 [shape = 'f32[1024,512]{1,0:T(8,128)}', space=vmem, size = 0x200000, scoped, tag = 'scratch operand']
  #allocation5 [shape = 'f32[512,4]{1,0:T(8,128)}', space=vmem, size = 0x40000, scoped, tag = 'scratch operand']
  #allocation6 [shape = 's32[3]{0}', space=sflag, size = 0xc, scoped, tag = 'scratch operand']
  #allocation17 [shape = 's32[]', space=sflag, size = 0x4, offset = 0, fixed_abs, tag = 'sflag constant byte address 0x0 - dummy sync flag']
  #allocation18 [shape = 's32[]', space=sflag, size = 0x4, offset = 0, fixed_abs, tag = 'sflag constant byte address 0x0 - dummy sync flag']
  #allocation19 [shape = 'u32[]', space=smem, size = 0x4, offset = 0x44, fixed_abs, tag = 'smem constant byte address 0x44 - assertion arg 0']
  #allocation20 [shape = 'u32[]', space=smem, size = 0x4, offset = 0x48, fixed_abs, tag = 'smem constant byte address 0x48 - assertion arg 1']
  #allocation21 [shape = 's32[]', space=sflag, size = 0x4, offset = 0, fixed_abs, tag = 'sflag constant byte address 0x0 - dummy sync flag']
  #allocation22 [shape = 's32[]', space=sflag, size = 0x4, offset = 0, fixed_abs, tag = 'sflag constant byte address 0x0 - dummy sync flag']
  #allocation23 [shape = 's32[]', space=sflag, size = 0x4, offset = 0, fixed_abs, tag = 'sflag constant byte address 0x0 - dummy sync flag']
  %s0 = inlined_call_operand.vmem [shape: f32[8,2,16], index: 0, kind: input, shape index: {}]
  %s1 = inlined_call_operand.hbm [shape: f32[16,768], index: 1, kind: input, shape index: {}]
  %s2 = inlined_call_operand.vmem [shape: f32[1,768], index: 2, kind: input, shape index: {}]
  %s3 = inlined_call_operand.hbm [shape: f32[256,768], index: 3, kind: input, shape index: {}]
  %s4 = inlined_call_operand.vmem [shape: f32[1,256], index: 4, kind: input, shape index: {}]
  %s5 = inlined_call_operand.hbm [shape: f32[256,1024], index: 5, kind: input, shape index: {}]
  %s6 = inlined_call_operand.hbm [shape: f32[1,1024], index: 6, kind: input, shape index: {}]
  %s7 = inlined_call_operand.hbm [shape: f32[1024,512], index: 7, kind: input, shape index: {}]
  %s8 = inlined_call_operand.hbm [shape: f32[1,512], index: 8, kind: input, shape index: {}]
  %s9 = inlined_call_operand.vmem [shape: f32[512,4], index: 9, kind: input, shape index: {}]
  %s10 = inlined_call_operand.hbm [shape: f32[1,4], index: 10, kind: input, shape index: {}]
  %s11 = inlined_call_operand.hbm [shape: f32[2,4], index: 11, kind: output, shape index: {}]
  %s12 = sld [smem:[#allocation0]]
  $region135: #{actor_forward.1} parent=0
    _
  %s14 = ssub.s32 1, %s12
  %s15 = scalar_select 0, %s14, %s12
  $region1: #{actor_forward.1} parent=0
    #allocation7 [shape = 'u8[49152]{0}', space=vmem, size = 0xc000, scoped, tag = 'input window, operand 1, single buffered']
    #allocation8 [shape = 's32[2]{0}', space=sflag, size = 0x8, scoped, tag = 'scoped memory for actor_forward.1']
    #allocation9 [shape = 's32[2]{0}', space=sflag, size = 0x8, scoped, tag = 'scoped memory for actor_forward.1']
    #allocation10 [shape = 'u8[786432]{0}', space=vmem, size = 0xc0000, scoped, tag = 'input window, operand 3, single buffered']
    #allocation11 [shape = 's32[1]{0}', space=sflag, size = 0x4, scoped, tag = 'scoped memory for actor_forward.1']
    #allocation12 [shape = 'u8[4096]{0}', space=vmem, size = 0x1000, scoped, tag = 'input window, operand 6, single buffered']
    #allocation13 [shape = 'u8[2048]{0}', space=vmem, size = 0x800, scoped, tag = 'input window, operand 8, single buffered']
    #allocation14 [shape = 's32[1]{0}', space=sflag, size = 0x4, scoped, tag = 'scoped memory for actor_forward.1']
    #allocation15 [shape = 'u8[512]{0}', space=vmem, size = 0x400, scoped, tag = 'input window, operand 10, single buffered']
    #allocation16 [shape = 'u8[1024]{0}', space=vmem, size = 0x400, scoped, tag = 'output window, operand 0, single buffered']
    %16 = vsyncpa [#allocation8], 0
    %17 = vsyncpa [#allocation11], 0
    %18 = vsyncpa [#allocation14], 0
    %19 = vsyncpa [#allocation9], 0
    loop: start=0, step=1, limit=4
    $region2: #{actor_forward.1} parent=1 // loop_pre_header
      _
    $region3: #{actor_forward.1} parent=1 // loop_header
      %s21 = sphi 0, %s25
      %p22 = scmp.ge.s32.totalorder %s21, 4
      %s31 = sphi 0, %s33
      %s34 = sphi 0, %s31
      %s35 = sphi 0, %s34
      %s51 = sphi 0, %s35
      %s55 = sphi 0, %s55
      %s57 = sphi 0, %s55
      %s58 = sphi 0, %s57
      %s72 = sphi 0, %s58
      %s76 = sphi 0, %s76
      %s78 = sphi 0, %s76
      %s79 = sphi 0, %s78
      %s93 = sphi 0, %s79
      %s97 = sphi 0, %s97
      %s99 = sphi 0, %s97
      %s100 = sphi 0, %s99
      %s114 = sphi 0, %s100
      %s118 = sphi 0, %s118
      %s120 = sphi 0, %s118
      %s121 = sphi 0, %s120
      %s135 = sphi 0, %s121
      %s139 = sphi 0, %s139
      %s141 = sphi 0, %s139
      %s142 = sphi 0, %s141
      %s156 = sphi 0, %s142
      %s160 = sphi 0, %s160
      %s162 = sphi 0, %s160
      %s163 = sphi 0, %s162
      %s177 = sphi 0, %s163
      %s181 = sphi 0, %s181
      %s183 = sphi 0, %s181
      %s184 = sphi 0, %s183
      %s198 = sphi 0, %s184
      %s202 = sphi 0, %s202
      %s204 = sphi 0, %s202
      %s205 = sphi 0, %s204
      %s219 = sphi 0, %s205
    $region4: #{actor_forward.1} parent=1 // loop_header_branch
      %24 = sbr.rel (%p22) target = $region8
    $region5: #{actor_forward.1} parent=1 // loop_body
      %s26 = ssub.s32 %s21, 1
      %s27 = ssub.s32 %s21, 2
      %s28 = sadd.s32 %s21, 1
      %s29 = ssub.s32 %s21, %s28
      %p30 = scmp.eq.s32.totalorder %s29, 0
      %s32 = sadd.s32 %s31, 1
      %s33 = scalar_select %p30, %s31, %s32
      %p36 = pneg %p30
      %p37 = scmp.eq.s32.totalorder %s21, 1
      %p38 = por %p36, %p37
      %p39 = scmp.ne.s32.totalorder %s31, %s34
      %p40 = scmp.eq.s32.totalorder %s21, 0
      %p41 = por %p39, %p40
      %p42 = scmp.ne.s32.totalorder %s31, %s34
      %p43 = scmp.eq.s32.totalorder %s26, 1
      %p44 = por %p42, %p43
      %p45 = scmp.ne.s32.totalorder %s34, %s35
      %p46 = scmp.eq.s32.totalorder %s26, 0
      %p47 = por %p45, %p46
      %p48 = scmp.ne.s32.totalorder %s34, %s35
      %p49 = scmp.eq.s32.totalorder %s27, 1
      %p50 = por %p48, %p49
      %p52 = scmp.ne.s32.totalorder %s35, %s51
      %p53 = scmp.eq.s32.totalorder %s27, 0
      %p54 = por %p52, %p53
      %s56 = sadd.s32 %s55, 1
      %p59 = scmp.eq.s32.totalorder %s21, 1
      %p60 = scmp.ne.s32.totalorder %s55, %s57
      %p61 = scmp.eq.s32.totalorder %s21, 0
      %p62 = por %p60, %p61
      %p63 = scmp.ne.s32.totalorder %s55, %s57
      %p64 = scmp.eq.s32.totalorder %s26, 1
      %p65 = por %p63, %p64
      %p66 = scmp.ne.s32.totalorder %s57, %s58
      %p67 = scmp.eq.s32.totalorder %s26, 0
      %p68 = por %p66, %p67
      %p69 = scmp.ne.s32.totalorder %s57, %s58
      %p70 = scmp.eq.s32.totalorder %s27, 1
      %p71 = por %p69, %p70
      %p73 = scmp.ne.s32.totalorder %s58, %s72
      %p74 = scmp.eq.s32.totalorder %s27, 0
      %p75 = por %p73, %p74
      %s77 = sadd.s32 %s76, 1
      %p80 = scmp.eq.s32.totalorder %s21, 1
      %p81 = scmp.ne.s32.totalorder %s76, %s78
      %p82 = scmp.eq.s32.totalorder %s21, 0
      %p83 = por %p81, %p82
      %p84 = scmp.ne.s32.totalorder %s76, %s78
      %p85 = scmp.eq.s32.totalorder %s26, 1
      %p86 = por %p84, %p85
      %p87 = scmp.ne.s32.totalorder %s78, %s79
      %p88 = scmp.eq.s32.totalorder %s26, 0
      %p89 = por %p87, %p88
      %p90 = scmp.ne.s32.totalorder %s78, %s79
      %p91 = scmp.eq.s32.totalorder %s27, 1
      %p92 = por %p90, %p91
      %p94 = scmp.ne.s32.totalorder %s79, %s93
      %p95 = scmp.eq.s32.totalorder %s27, 0
      %p96 = por %p94, %p95
      %s98 = sadd.s32 %s97, 1
      %p101 = scmp.eq.s32.totalorder %s21, 1
      %p102 = scmp.ne.s32.totalorder %s97, %s99
      %p103 = scmp.eq.s32.totalorder %s21, 0
      %p104 = por %p102, %p103
      %p105 = scmp.ne.s32.totalorder %s97, %s99
      %p106 = scmp.eq.s32.totalorder %s26, 1
      %p107 = por %p105, %p106
      %p108 = scmp.ne.s32.totalorder %s99, %s100
      %p109 = scmp.eq.s32.totalorder %s26, 0
      %p110 = por %p108, %p109
      %p111 = scmp.ne.s32.totalorder %s99, %s100
      %p112 = scmp.eq.s32.totalorder %s27, 1
      %p113 = por %p111, %p112
      %p115 = scmp.ne.s32.totalorder %s100, %s114
      %p116 = scmp.eq.s32.totalorder %s27, 0
      %p117 = por %p115, %p116
      %s119 = sadd.s32 %s118, 1
      %p122 = scmp.eq.s32.totalorder %s21, 1
      %p123 = scmp.ne.s32.totalorder %s118, %s120
      %p124 = scmp.eq.s32.totalorder %s21, 0
      %p125 = por %p123, %p124
      %p126 = scmp.ne.s32.totalorder %s118, %s120
      %p127 = scmp.eq.s32.totalorder %s26, 1
      %p128 = por %p126, %p127
      %p129 = scmp.ne.s32.totalorder %s120, %s121
      %p130 = scmp.eq.s32.totalorder %s26, 0
      %p131 = por %p129, %p130
      %p132 = scmp.ne.s32.totalorder %s120, %s121
      %p133 = scmp.eq.s32.totalorder %s27, 1
      %p134 = por %p132, %p133
      %p136 = scmp.ne.s32.totalorder %s121, %s135
      %p137 = scmp.eq.s32.totalorder %s27, 0
      %p138 = por %p136, %p137
      %s140 = sadd.s32 %s139, 1
      %p143 = scmp.eq.s32.totalorder %s21, 1
      %p144 = scmp.ne.s32.totalorder %s139, %s141
      %p145 = scmp.eq.s32.totalorder %s21, 0
      %p146 = por %p144, %p145
      %p147 = scmp.ne.s32.totalorder %s139, %s141
      %p148 = scmp.eq.s32.totalorder %s26, 1
      %p149 = por %p147, %p148
      %p150 = scmp.ne.s32.totalorder %s141, %s142
      %p151 = scmp.eq.s32.totalorder %s26, 0
      %p152 = por %p150, %p151
      %p153 = scmp.ne.s32.totalorder %s141, %s142
      %p154 = scmp.eq.s32.totalorder %s27, 1
      %p155 = por %p153, %p154
      %p157 = scmp.ne.s32.totalorder %s142, %s156
      %p158 = scmp.eq.s32.totalorder %s27, 0
      %p159 = por %p157, %p158
      %s161 = sadd.s32 %s160, 1
      %p164 = scmp.eq.s32.totalorder %s21, 1
      %p165 = scmp.ne.s32.totalorder %s160, %s162
      %p166 = scmp.eq.s32.totalorder %s21, 0
      %p167 = por %p165, %p166
      %p168 = scmp.ne.s32.totalorder %s160, %s162
      %p169 = scmp.eq.s32.totalorder %s26, 1
      %p170 = por %p168, %p169
      %p171 = scmp.ne.s32.totalorder %s162, %s163
      %p172 = scmp.eq.s32.totalorder %s26, 0
      %p173 = por %p171, %p172
      %p174 = scmp.ne.s32.totalorder %s162, %s163
      %p175 = scmp.eq.s32.totalorder %s27, 1
      %p176 = por %p174, %p175
      %p178 = scmp.ne.s32.totalorder %s163, %s177
      %p179 = scmp.eq.s32.totalorder %s27, 0
      %p180 = por %p178, %p179
      %s182 = sadd.s32 %s181, 1
      %p185 = scmp.eq.s32.totalorder %s21, 1
      %p186 = scmp.ne.s32.totalorder %s181, %s183
      %p187 = scmp.eq.s32.totalorder %s21, 0
      %p188 = por %p186, %p187
      %p189 = scmp.ne.s32.totalorder %s181, %s183
      %p190 = scmp.eq.s32.totalorder %s26, 1
      %p191 = por %p189, %p190
      %p192 = scmp.ne.s32.totalorder %s183, %s184
      %p193 = scmp.eq.s32.totalorder %s26, 0
      %p194 = por %p192, %p193
      %p195 = scmp.ne.s32.totalorder %s183, %s184
      %p196 = scmp.eq.s32.totalorder %s27, 1
      %p197 = por %p195, %p196
      %p199 = scmp.ne.s32.totalorder %s184, %s198
      %p200 = scmp.eq.s32.totalorder %s27, 0
      %p201 = por %p199, %p200
      %s203 = sadd.s32 %s202, 1
      %p206 = scmp.eq.s32.totalorder %s21, 1
      %p207 = scmp.ne.s32.totalorder %s202, %s204
      %p208 = scmp.eq.s32.totalorder %s21, 0
      %p209 = por %p207, %p208
      %p210 = scmp.ne.s32.totalorder %s202, %s204
      %p211 = scmp.eq.s32.totalorder %s26, 1
      %p212 = por %p210, %p211
      %p213 = scmp.ne.s32.totalorder %s204, %s205
      %p214 = scmp.eq.s32.totalorder %s26, 0
      %p215 = por %p213, %p214
      %p216 = scmp.ne.s32.totalorder %s204, %s205
      %p217 = scmp.eq.s32.totalorder %s27, 1
      %p218 = por %p216, %p217
      %p220 = scmp.ne.s32.totalorder %s205, %s219
      %p221 = scmp.eq.s32.totalorder %s27, 0
      %p222 = por %p220, %p221
      %p223 = scmp.le.s32.totalorder 1, %s21
      %p224 = scmp.lt.s32.totalorder %s21, 3
      %p225 = pnand %p223, %p224
      %p226 = pneg %p225
      // Predicated region
      $region9: #{actor_forward.1} parent=5 // pred_check
        _
      $region10: #{actor_forward.1} parent=5 // pred_check_branch
        %228 = sbr.rel (%p225) target = $region12
      $region11: #{actor_forward.1} parent=5 // pred_region
        %s229 = ssub.s32 %s21, 1
        // Predicated region
        $region13: #{actor_forward.1} parent=11 // pred_check
          %p230 = pneg %p68
        $region14: #{actor_forward.1} parent=11 // pred_check_branch
          %232 = sbr.rel (%p230) target = $region16
        $region15: #{actor_forward.1} parent=11 // pred_region
          %s234 = ssub.s32 1536, 1536
          %235 = vsyncadd [#allocation8], %s234
          %s236 = sshll.u32 [#allocation7], 4
          %s237 = int_to_ptr.vmem [resolvable:$true] %s236
          %242 = dma.hbm_to_vmem [thread:$0]  %s1, 1536, %s237, [#allocation8], 768, 768, 48
        $region16: #{actor_forward.1} parent=11 // pred_fallthru
          _
        // Predicated region
        $region17: #{actor_forward.1} parent=11 // pred_check
          %p243 = pneg %p89
        $region18: #{actor_forward.1} parent=11 // pred_check_branch
          %245 = sbr.rel (%p243) target = $region20
        $region19: #{actor_forward.1} parent=11 // pred_region
          _
        $region20: #{actor_forward.1} parent=11 // pred_fallthru
          _
        // Predicated region
        $region21: #{actor_forward.1} parent=11 // pred_check
          %p246 = pneg %p110
        $region22: #{actor_forward.1} parent=11 // pred_check_branch
          %248 = sbr.rel (%p246) target = $region24
        $region23: #{actor_forward.1} parent=11 // pred_region
          %s250 = ssub.s32 24576, 24576
          %251 = vsyncadd [#allocation11], %s250
          %s252 = sshll.u32 [#allocation10], 4
          %s253 = int_to_ptr.vmem [resolvable:$true] %s252
          %258 = dma.hbm_to_vmem [thread:$0]  %s3, 24576, %s253, [#allocation11], 768, 768, 48
        $region24: #{actor_forward.1} parent=11 // pred_fallthru
          _
        // Predicated region
        $region25: #{actor_forward.1} parent=11 // pred_check
          %p259 = pneg %p131
        $region26: #{actor_forward.1} parent=11 // pred_check_branch
          %261 = sbr.rel (%p259) target = $region28
        $region27: #{actor_forward.1} parent=11 // pred_region
          _
        $region28: #{actor_forward.1} parent=11 // pred_fallthru
          _
        // Predicated region
        $region29: #{actor_forward.1} parent=11 // pred_check
          %p262 = pneg %p152
        $region30: #{actor_forward.1} parent=11 // pred_check_branch
          %264 = sbr.rel (%p262) target = $region32
        $region31: #{actor_forward.1} parent=11 // pred_region
          %s266 = ssub.s32 128, 128
          %267 = vsyncadd [#allocation11], %s266
          %s269 = sshll.u32 [#allocation12], 4
          %s270 = int_to_ptr.vmem [resolvable:$true] %s269
          %272 = dma.hbm_to_vmem [thread:$0]  %s6, 128, %s270, [#allocation11]
        $region32: #{actor_forward.1} parent=11 // pred_fallthru
          _
        // Predicated region
        $region33: #{actor_forward.1} parent=11 // pred_check
          %p273 = pneg %p173
        $region34: #{actor_forward.1} parent=11 // pred_check_branch
          %275 = sbr.rel (%p273) target = $region36
        $region35: #{actor_forward.1} parent=11 // pred_region
          %s277 = ssub.s32 64, 64
          %278 = vsyncadd [#allocation14], %s277
          %s280 = sshll.u32 [#allocation13], 4
          %s281 = int_to_ptr.vmem [resolvable:$true] %s280
          %283 = dma.hbm_to_vmem [thread:$0]  %s8, 64, %s281, [#allocation14]
        $region36: #{actor_forward.1} parent=11 // pred_fallthru
          _
        // Predicated region
        $region37: #{actor_forward.1} parent=11 // pred_check
          %p284 = pneg %p194
        $region38: #{actor_forward.1} parent=11 // pred_check_branch
          %286 = sbr.rel (%p284) target = $region40
        $region39: #{actor_forward.1} parent=11 // pred_region
          %s288 = ssub.s32 16, 16
          %289 = vsyncadd [#allocation14], %s288
          %s291 = sshll.u32 [#allocation15], 4
          %s292 = int_to_ptr.vmem [resolvable:$true] %s291
          %294 = dma.hbm_to_vmem [thread:$0]  %s10, 16, %s292, [#allocation14]
        $region40: #{actor_forward.1} parent=11 // pred_fallthru
          _
      $region12: #{actor_forward.1} parent=5 // pred_fallthru
        _
      %p295 = scmp.lt.s32.totalorder %s21, 2
      // Predicated region
      $region41: #{actor_forward.1} parent=5 // pred_check
        %p296 = pneg %p295
      $region42: #{actor_forward.1} parent=5 // pred_check_branch
        %298 = sbr.rel (%p296) target = $region44
      $region43: #{actor_forward.1} parent=5 // pred_region
        // Predicated region
        $region45: #{actor_forward.1} parent=43 // pred_check
          %p299 = pneg %p41
        $region46: #{actor_forward.1} parent=43 // pred_check_branch
          %301 = sbr.rel (%p299) target = $region48
        $region47: #{actor_forward.1} parent=43 // pred_region
          %s302 = smul.u32 4, %s21
          %p303 = scmp.lt.s32.totalorder %s302, 7
          %s304 = scalar_select %p303, %s302, 7
          %s305 = smul.addr %s304, 2
          %s306 = scalar_lea.vmem %s0, %s305
          %s307 = smul.u32 4, %s21
        $region48: #{actor_forward.1} parent=43 // pred_fallthru
          _
      $region44: #{actor_forward.1} parent=5 // pred_fallthru
        _
      %p308 = scmp.le.s32.totalorder 1, %s21
      %p309 = scmp.lt.s32.totalorder %s21, 3
      %p310 = pnand %p308, %p309
      %p311 = pneg %p310
      // Predicated region
      $region49: #{actor_forward.1} parent=5 // pred_check
        _
      $region50: #{actor_forward.1} parent=5 // pred_check_branch
        %313 = sbr.rel (%p310) target = $region52
      $region51: #{actor_forward.1} parent=5 // pred_region
        %s314 = ssub.s32 %s21, 1
        // Predicated region
        $region53: #{actor_forward.1} parent=51 // pred_check
          %p315 = pneg %p68
        $region54: #{actor_forward.1} parent=51 // pred_check_branch
          %317 = sbr.rel (%p315) target = $region56
        $region55: #{actor_forward.1} parent=51 // pred_region
          %318 = dma.done [#allocation8], 1536
        $region56: #{actor_forward.1} parent=51 // pred_fallthru
          _
        // Predicated region
        $region57: #{actor_forward.1} parent=51 // pred_check
          %p319 = pneg %p110
        $region58: #{actor_forward.1} parent=51 // pred_check_branch
          %321 = sbr.rel (%p319) target = $region60
        $region59: #{actor_forward.1} parent=51 // pred_region
          %322 = dma.done [#allocation11], 24576
        $region60: #{actor_forward.1} parent=51 // pred_fallthru
          _
        // Predicated region
        $region61: #{actor_forward.1} parent=51 // pred_check
          %p323 = pneg %p152
        $region62: #{actor_forward.1} parent=51 // pred_check_branch
          %325 = sbr.rel (%p323) target = $region64
        $region63: #{actor_forward.1} parent=51 // pred_region
          %326 = dma.done [#allocation11], 128
        $region64: #{actor_forward.1} parent=51 // pred_fallthru
          _
        // Predicated region
        $region65: #{actor_forward.1} parent=51 // pred_check
          %p327 = pneg %p173
        $region66: #{actor_forward.1} parent=51 // pred_check_branch
          %329 = sbr.rel (%p327) target = $region68
        $region67: #{actor_forward.1} parent=51 // pred_region
          %330 = dma.done [#allocation14], 64
        $region68: #{actor_forward.1} parent=51 // pred_fallthru
          _
        // Predicated region
        $region69: #{actor_forward.1} parent=51 // pred_check
          %p331 = pneg %p194
        $region70: #{actor_forward.1} parent=51 // pred_check_branch
          %333 = sbr.rel (%p331) target = $region72
        $region71: #{actor_forward.1} parent=51 // pred_region
          %334 = dma.done [#allocation14], 16
        $region72: #{actor_forward.1} parent=51 // pred_fallthru
          _
        %s335 = smul.u32 4, %s26
        %p336 = scmp.lt.s32.totalorder %s335, 7
        %s337 = scalar_select %p336, %s335, 7
        %s338 = smul.addr %s337, 2
        %s339 = scalar_lea.vmem %s0, %s338
        %p340 = pneg %p47
        %p341 = pneg %p44
        %p342 = pneg %p68
        %p343 = pneg %p65
        %p344 = pneg %p89
        %p345 = pneg %p86
        %p346 = pneg %p110
        %p347 = pneg %p107
        %p348 = pneg %p131
        %p349 = pneg %p128
        %p350 = pneg %p152
        %p351 = pneg %p149
        %p352 = pneg %p173
        %p353 = pneg %p170
        %p354 = pneg %p194
        %p355 = pneg %p191
        %p356 = pneg %p215
        %p357 = pneg %p212
        %s358 = smul.u32 4, %s26
        %p359 = scmp.lt.s32.totalorder %s358, 7
        %s360 = scalar_select %p359, %s358, 7
        %s361 = smul.addr %s360, 2
        %s362 = scalar_lea.vmem %s0, %s361
        %s363 = smul.u32 4, %s26
        %p364 = scmp.eq.s32.totalorder %s26, 0
        // Predicated region
        $region73: #{actor_forward.1} parent=51 // pred_check
          %p365 = pneg %p364
        $region74: #{actor_forward.1} parent=51 // pred_check_branch
          %367 = sbr.rel (%p365) target = $region76
        $region75: #{actor_forward.1} parent=51 // pred_region
          %368 = vst [vmem:[#allocation2] sm:$0xf] 0.0
          // Predicated region
          $region77: #{actor_forward.1} parent=75 // pred_check
            _
          $region78: #{actor_forward.1} parent=75 // pred_check_branch
            %370 = sbr.rel target = $region80
          $region79: #{actor_forward.1} parent=75 // pred_region
            %371 = sst [smem:[#allocation19]] [#allocation18]
            %372 = sst [smem:[#allocation20]] [#allocation17]
          $region80: #{actor_forward.1} parent=75 // pred_fallthru
            _
          %374 = shalt.err (0)
          %s376 = sshll.u32 [#allocation3], 4
          %s377 = int_to_ptr.vmem [resolvable:$true] %s376
          %379 = dma.hbm_to_vmem [thread:$0]  %s5, 32768, %s377, [#allocation6]
          %s380 = scalar_lea.sflag [#allocation6], 1
          // Predicated region
          $region81: #{actor_forward.1} parent=75 // pred_check
            _
          $region82: #{actor_forward.1} parent=75 // pred_check_branch
            %382 = sbr.rel target = $region84
          $region83: #{actor_forward.1} parent=75 // pred_region
            %383 = sst [smem:[#allocation19]] [#allocation22]
            %384 = sst [smem:[#allocation20]] [#allocation21]
          $region84: #{actor_forward.1} parent=75 // pred_fallthru
            _
          %386 = shalt.err (0)
          %s388 = sshll.u32 [#allocation4], 4
          %s389 = int_to_ptr.vmem [resolvable:$true] %s388
          %391 = dma.hbm_to_vmem [thread:$0]  %s7, 65536, %s389, %s380
          %s392 = scalar_lea.sflag [#allocation6], 2
          %p394 = scmp.lt.u32.totalorder 512, 8
          %p395 = pneg %p394
          // Predicated region
          $region85: #{actor_forward.1} parent=75 // pred_check
            _
          $region86: #{actor_forward.1} parent=75 // pred_check_branch
            %397 = sbr.rel (%p394) target = $region88
          $region87: #{actor_forward.1} parent=75 // pred_region
            %s412 = sand.u32 512, 7
            %p413 = scmp.eq.s32.totalorder %s412, 0
            // Predicated region
            $region100: #{actor_forward.1} parent=87 // pred_check
              %p414 = pneg %p413
            $region101: #{actor_forward.1} parent=87 // pred_check_branch
              %416 = sbr.rel (%p414) target = $region103
            $region102: #{actor_forward.1} parent=87 // pred_region
              loop: start=0, step=1, limit=1
              $region104: #{actor_forward.1} parent=102 // loop_pre_header
                _
              $region105: #{actor_forward.1} parent=102 // loop_header
                %s418 = sphi 0, %s422
                %p419 = scmp.ge.s32.totalorder %s418, 1
                %s423 = sphi %s9, %s9
                %s424 = sphi [#allocation5], [#allocation5]
              $region106: #{actor_forward.1} parent=102 // loop_header_branch
                %421 = sbr.rel (%p419) target = $region110
              $region107: #{actor_forward.1} parent=102 // loop_body
                %v425 = vld [vmem:[%s423] sm:$0xff]
                %426 = vst [vmem:[%s424] sm:$0xff] %v425
                %v427 = vld [vmem:[%s423 + $0x8] sm:$0xff]
                %428 = vst [vmem:[%s424 + $0x8] sm:$0xff] %v427
                %v429 = vld [vmem:[%s423 + $0x10] sm:$0xff]
                %430 = vst [vmem:[%s424 + $0x10] sm:$0xff] %v429
                %v431 = vld [vmem:[%s423 + $0x18] sm:$0xff]
                %432 = vst [vmem:[%s424 + $0x18] sm:$0xff] %v431
                %v433 = vld [vmem:[%s423 + $0x20] sm:$0xff]
                %434 = vst [vmem:[%s424 + $0x20] sm:$0xff] %v433
                %v435 = vld [vmem:[%s423 + $0x28] sm:$0xff]
                %436 = vst [vmem:[%s424 + $0x28] sm:$0xff] %v435
                %v437 = vld [vmem:[%s423 + $0x30] sm:$0xff]
                %438 = vst [vmem:[%s424 + $0x30] sm:$0xff] %v437
                %v439 = vld [vmem:[%s423 + $0x38] sm:$0xff]
                %440 = vst [vmem:[%s424 + $0x38] sm:$0xff] %v439
                %v441 = vld [vmem:[%s423 + $0x40] sm:$0xff]
                %442 = vst [vmem:[%s424 + $0x40] sm:$0xff] %v441
                %v443 = vld [vmem:[%s423 + $0x48] sm:$0xff]
                %444 = vst [vmem:[%s424 + $0x48] sm:$0xff] %v443
                %v445 = vld [vmem:[%s423 + $0x50] sm:$0xff]
                %446 = vst [vmem:[%s424 + $0x50] sm:$0xff] %v445
                %v447 = vld [vmem:[%s423 + $0x58] sm:$0xff]
                %448 = vst [vmem:[%s424 + $0x58] sm:$0xff] %v447
                %v449 = vld [vmem:[%s423 + $0x60] sm:$0xff]
                %450 = vst [vmem:[%s424 + $0x60] sm:$0xff] %v449
                %v451 = vld [vmem:[%s423 + $0x68] sm:$0xff]
                %452 = vst [vmem:[%s424 + $0x68] sm:$0xff] %v451
                %v453 = vld [vmem:[%s423 + $0x70] sm:$0xff]
                %454 = vst [vmem:[%s424 + $0x70] sm:$0xff] %v453
                %v455 = vld [vmem:[%s423 + $0x78] sm:$0xff]
                %456 = vst [vmem:[%s424 + $0x78] sm:$0xff] %v455
                %v457 = vld [vmem:[%s423 + $0x80] sm:$0xff]
                %458 = vst [vmem:[%s424 + $0x80] sm:$0xff] %v457
                %v459 = vld [vmem:[%s423 + $0x88] sm:$0xff]
                %460 = vst [vmem:[%s424 + $0x88] sm:$0xff] %v459
                %v461 = vld [vmem:[%s423 + $0x90] sm:$0xff]
                %462 = vst [vmem:[%s424 + $0x90] sm:$0xff] %v461
                %v463 = vld [vmem:[%s423 + $0x98] sm:$0xff]
                %464 = vst [vmem:[%s424 + $0x98] sm:$0xff] %v463
                %v465 = vld [vmem:[%s423 + $0xa0] sm:$0xff]
                %466 = vst [vmem:[%s424 + $0xa0] sm:$0xff] %v465
                %v467 = vld [vmem:[%s423 + $0xa8] sm:$0xff]
                %468 = vst [vmem:[%s424 + $0xa8] sm:$0xff] %v467
                %v469 = vld [vmem:[%s423 + $0xb0] sm:$0xff]
                %470 = vst [vmem:[%s424 + $0xb0] sm:$0xff] %v469
                %v471 = vld [vmem:[%s423 + $0xb8] sm:$0xff]
                %472 = vst [vmem:[%s424 + $0xb8] sm:$0xff] %v471
                %v473 = vld [vmem:[%s423 + $0xc0] sm:$0xff]
                %474 = vst [vmem:[%s424 + $0xc0] sm:$0xff] %v473
                %v475 = vld [vmem:[%s423 + $0xc8] sm:$0xff]
                %476 = vst [vmem:[%s424 + $0xc8] sm:$0xff] %v475
                %v477 = vld [vmem:[%s423 + $0xd0] sm:$0xff]
                %478 = vst [vmem:[%s424 + $0xd0] sm:$0xff] %v477
                %v479 = vld [vmem:[%s423 + $0xd8] sm:$0xff]
                %480 = vst [vmem:[%s424 + $0xd8] sm:$0xff] %v479
                %v481 = vld [vmem:[%s423 + $0xe0] sm:$0xff]
                %482 = vst [vmem:[%s424 + $0xe0] sm:$0xff] %v481
                %v483 = vld [vmem:[%s423 + $0xe8] sm:$0xff]
                %484 = vst [vmem:[%s424 + $0xe8] sm:$0xff] %v483
                %v485 = vld [vmem:[%s423 + $0xf0] sm:$0xff]
                %486 = vst [vmem:[%s424 + $0xf0] sm:$0xff] %v485
                %v487 = vld [vmem:[%s423 + $0xf8] sm:$0xff]
                %488 = vst [vmem:[%s424 + $0xf8] sm:$0xff] %v487
                %v489 = vld [vmem:[%s423 + $0x100] sm:$0xff]
                %490 = vst [vmem:[%s424 + $0x100] sm:$0xff] %v489
                %v491 = vld [vmem:[%s423 + $0x108] sm:$0xff]
                %492 = vst [vmem:[%s424 + $0x108] sm:$0xff] %v491
                %v493 = vld [vmem:[%s423 + $0x110] sm:$0xff]
                %494 = vst [vmem:[%s424 + $0x110] sm:$0xff] %v493
                %v495 = vld [vmem:[%s423 + $0x118] sm:$0xff]
                %496 = vst [vmem:[%s424 + $0x118] sm:$0xff] %v495
                %v497 = vld [vmem:[%s423 + $0x120] sm:$0xff]
                %498 = vst [vmem:[%s424 + $0x120] sm:$0xff] %v497
                %v499 = vld [vmem:[%s423 + $0x128] sm:$0xff]
                %500 = vst [vmem:[%s424 + $0x128] sm:$0xff] %v499
                %v501 = vld [vmem:[%s423 + $0x130] sm:$0xff]
                %502 = vst [vmem:[%s424 + $0x130] sm:$0xff] %v501
                %v503 = vld [vmem:[%s423 + $0x138] sm:$0xff]
                %504 = vst [vmem:[%s424 + $0x138] sm:$0xff] %v503
                %v505 = vld [vmem:[%s423 + $0x140] sm:$0xff]
                %506 = vst [vmem:[%s424 + $0x140] sm:$0xff] %v505
                %v507 = vld [vmem:[%s423 + $0x148] sm:$0xff]
                %508 = vst [vmem:[%s424 + $0x148] sm:$0xff] %v507
                %v509 = vld [vmem:[%s423 + $0x150] sm:$0xff]
                %510 = vst [vmem:[%s424 + $0x150] sm:$0xff] %v509
                %v511 = vld [vmem:[%s423 + $0x158] sm:$0xff]
                %512 = vst [vmem:[%s424 + $0x158] sm:$0xff] %v511
                %v513 = vld [vmem:[%s423 + $0x160] sm:$0xff]
                %514 = vst [vmem:[%s424 + $0x160] sm:$0xff] %v513
                %v515 = vld [vmem:[%s423 + $0x168] sm:$0xff]
                %516 = vst [vmem:[%s424 + $0x168] sm:$0xff] %v515
                %v517 = vld [vmem:[%s423 + $0x170] sm:$0xff]
                %518 = vst [vmem:[%s424 + $0x170] sm:$0xff] %v517
                %v519 = vld [vmem:[%s423 + $0x178] sm:$0xff]
                %520 = vst [vmem:[%s424 + $0x178] sm:$0xff] %v519
                %v521 = vld [vmem:[%s423 + $0x180] sm:$0xff]
                %522 = vst [vmem:[%s424 + $0x180] sm:$0xff] %v521
                %v523 = vld [vmem:[%s423 + $0x188] sm:$0xff]
                %524 = vst [vmem:[%s424 + $0x188] sm:$0xff] %v523
                %v525 = vld [vmem:[%s423 + $0x190] sm:$0xff]
                %526 = vst [vmem:[%s424 + $0x190] sm:$0xff] %v525
                %v527 = vld [vmem:[%s423 + $0x198] sm:$0xff]
                %528 = vst [vmem:[%s424 + $0x198] sm:$0xff] %v527
                %v529 = vld [vmem:[%s423 + $0x1a0] sm:$0xff]
                %530 = vst [vmem:[%s424 + $0x1a0] sm:$0xff] %v529
                %v531 = vld [vmem:[%s423 + $0x1a8] sm:$0xff]
                %532 = vst [vmem:[%s424 + $0x1a8] sm:$0xff] %v531
                %v533 = vld [vmem:[%s423 + $0x1b0] sm:$0xff]
                %534 = vst [vmem:[%s424 + $0x1b0] sm:$0xff] %v533
                %v535 = vld [vmem:[%s423 + $0x1b8] sm:$0xff]
                %536 = vst [vmem:[%s424 + $0x1b8] sm:$0xff] %v535
                %v537 = vld [vmem:[%s423 + $0x1c0] sm:$0xff]
                %538 = vst [vmem:[%s424 + $0x1c0] sm:$0xff] %v537
                %v539 = vld [vmem:[%s423 + $0x1c8] sm:$0xff]
                %540 = vst [vmem:[%s424 + $0x1c8] sm:$0xff] %v539
                %v541 = vld [vmem:[%s423 + $0x1d0] sm:$0xff]
                %542 = vst [vmem:[%s424 + $0x1d0] sm:$0xff] %v541
                %v543 = vld [vmem:[%s423 + $0x1d8] sm:$0xff]
                %544 = vst [vmem:[%s424 + $0x1d8] sm:$0xff] %v543
                %v545 = vld [vmem:[%s423 + $0x1e0] sm:$0xff]
                %546 = vst [vmem:[%s424 + $0x1e0] sm:$0xff] %v545
                %v547 = vld [vmem:[%s423 + $0x1e8] sm:$0xff]
                %548 = vst [vmem:[%s424 + $0x1e8] sm:$0xff] %v547
                %v549 = vld [vmem:[%s423 + $0x1f0] sm:$0xff]
                %550 = vst [vmem:[%s424 + $0x1f0] sm:$0xff] %v549
                %v551 = vld [vmem:[%s423 + $0x1f8] sm:$0xff]
                %552 = vst [vmem:[%s424 + $0x1f8] sm:$0xff] %v551
              $region108: #{actor_forward.1} parent=102 // loop_footer
                %s422 = sadd.s32 1, %s418
              $region109: #{actor_forward.1} parent=102 // loop_footer_branch
                %417 = sbr.rel target = $region105
              $region110: #{actor_forward.1} parent=102 // loop_exit
                _
            $region103: #{actor_forward.1} parent=87 // pred_fallthru
              _
            %p553 = pneg %p413
            // Predicated region
            $region111: #{actor_forward.1} parent=87 // pred_check
              _
            $region112: #{actor_forward.1} parent=87 // pred_check_branch
              %555 = sbr.rel (%p413) target = $region114
            $region113: #{actor_forward.1} parent=87 // pred_region
              %s556 = sand.u32 512, 7
            $region114: #{actor_forward.1} parent=87 // pred_fallthru
              _
          $region88: #{actor_forward.1} parent=75 // pred_fallthru
            _
          // Predicated region
          $region89: #{actor_forward.1} parent=75 // pred_check
            %p398 = pneg %p394
          $region90: #{actor_forward.1} parent=75 // pred_check_branch
            %400 = sbr.rel (%p398) target = $region92
          $region91: #{actor_forward.1} parent=75 // pred_region
            %s401 = sshllo.u32 0, 512
            loop: start=0, step=1, limit=1
            $region93: #{actor_forward.1} parent=91 // loop_pre_header
              _
            $region94: #{actor_forward.1} parent=91 // loop_header
              %s403 = sphi 0, %s407
              %p404 = scmp.ge.s32.totalorder %s403, 1
              %s408 = sphi %s9, %s9
              %s409 = sphi [#allocation5], [#allocation5]
            $region95: #{actor_forward.1} parent=91 // loop_header_branch
              %406 = sbr.rel (%p404) target = $region99
            $region96: #{actor_forward.1} parent=91 // loop_body
              %v410 = vld [vmem:[%s408] sm:%s401]
              %411 = vst [vmem:[%s409] sm:%s401] %v410
            $region97: #{actor_forward.1} parent=91 // loop_footer
              %s407 = sadd.s32 1, %s403
            $region98: #{actor_forward.1} parent=91 // loop_footer_branch
              %402 = sbr.rel target = $region94
            $region99: #{actor_forward.1} parent=91 // loop_exit
              _
          $region92: #{actor_forward.1} parent=75 // pred_fallthru
            _
          // Predicated region
          $region115: #{actor_forward.1} parent=75 // pred_check
            _
          $region116: #{actor_forward.1} parent=75 // pred_check_branch
            %559 = sbr.rel (0) target = $region118
          $region117: #{actor_forward.1} parent=75 // pred_region
            %560 = vsyncadd %s392, 8192
          $region118: #{actor_forward.1} parent=75 // pred_fallthru
            _
        $region76: #{actor_forward.1} parent=51 // pred_fallthru
          _
        %v561 = vld [vmem:[#allocation7] sm:$0xff]
        %v562 = vld [vmem:[#allocation7 + $0x8] sm:$0xff]
        %v563 = vld [vmem:[#allocation7 + $0x10] sm:$0xff]
        %v564 = vld [vmem:[#allocation7 + $0x18] sm:$0xff]
        %v565 = vld [vmem:[#allocation7 + $0x20] sm:$0xff]
        %v566 = vld [vmem:[#allocation7 + $0x28] sm:$0xff]
        %v567 = vld [vmem:[#allocation7 + $0x30] sm:$0xff]
        %v568 = vld [vmem:[#allocation7 + $0x38] sm:$0xff]
        %v569 = vld [vmem:[#allocation7 + $0x40] sm:$0xff]
        %v570 = vld [vmem:[#allocation7 + $0x48] sm:$0xff]
        %v571 = vld [vmem:[#allocation7 + $0x50] sm:$0xff]
        %v572 = vld [vmem:[#allocation7 + $0x58] sm:$0xff]
        %v573 = vld [vmem:[#allocation10] sm:$0xff]
        %v574 = vld [vmem:[#allocation10 + $0x8] sm:$0xff]
        %v575 = vld [vmem:[#allocation10 + $0x10] sm:$0xff]
        %v576 = vld [vmem:[#allocation10 + $0x18] sm:$0xff]
        %v577 = vld [vmem:[#allocation10 + $0x30] sm:$0xff]
        %v578 = vld [vmem:[#allocation10 + $0x38] sm:$0xff]
        %v579 = vld [vmem:[#allocation10 + $0x40] sm:$0xff]
        %v580 = vld [vmem:[#allocation10 + $0x48] sm:$0xff]
        %v581 = vld [vmem:[#allocation10 + $0x60] sm:$0xff]
        %v582 = vld [vmem:[#allocation10 + $0x68] sm:$0xff]
        %v583 = vld [vmem:[#allocation10 + $0x70] sm:$0xff]
        %v584 = vld [vmem:[#allocation10 + $0x78] sm:$0xff]
        %v585 = vld [vmem:[#allocation10 + $0x90] sm:$0xff]
        %v586 = vld [vmem:[#allocation10 + $0x98] sm:$0xff]
        %v587 = vld [vmem:[#allocation10 + $0xa0] sm:$0xff]
        %v588 = vld [vmem:[#allocation10 + $0xa8] sm:$0xff]
        %v589 = vld [vmem:[#allocation10 + $0xc0] sm:$0xff]
        %v590 = vld [vmem:[#allocation10 + $0xc8] sm:$0xff]
        %v591 = vld [vmem:[#allocation10 + $0xd0] sm:$0xff]
        %v592 = vld [vmem:[#allocation10 + $0xd8] sm:$0xff]
        %v593 = vld [vmem:[#allocation10 + $0xf0] sm:$0xff]
        %v594 = vld [vmem:[#allocation10 + $0xf8] sm:$0xff]
        %v595 = vld [vmem:[#allocation10 + $0x100] sm:$0xff]
        %v596 = vld [vmem:[#allocation10 + $0x108] sm:$0xff]
        %v597 = vld [vmem:[#allocation10 + $0x120] sm:$0xff]
        %v598 = vld [vmem:[#allocation10 + $0x128] sm:$0xff]
        %v599 = vld [vmem:[#allocation10 + $0x130] sm:$0xff]
        %v600 = vld [vmem:[#allocation10 + $0x138] sm:$0xff]
        %v601 = vld [vmem:[#allocation10 + $0x150] sm:$0xff]
        %v602 = vld [vmem:[#allocation10 + $0x158] sm:$0xff]
        %v603 = vld [vmem:[#allocation10 + $0x160] sm:$0xff]
        %v604 = vld [vmem:[#allocation10 + $0x168] sm:$0xff]
        %v605 = vld [vmem:[#allocation10 + $0x180] sm:$0xff]
        %v606 = vld [vmem:[#allocation10 + $0x188] sm:$0xff]
        %v607 = vld [vmem:[#allocation10 + $0x190] sm:$0xff]
        %v608 = vld [vmem:[#allocation10 + $0x198] sm:$0xff]
        %v609 = vld [vmem:[#allocation10 + $0x1b0] sm:$0xff]
        %v610 = vld [vmem:[#allocation10 + $0x1b8] sm:$0xff]
        %v611 = vld [vmem:[#allocation10 + $0x1c0] sm:$0xff]
        %v612 = vld [vmem:[#allocation10 + $0x1c8] sm:$0xff]
        %v613 = vld [vmem:[#allocation10 + $0x1e0] sm:$0xff]
        %v614 = vld [vmem:[#allocation10 + $0x1e8] sm:$0xff]
        %v615 = vld [vmem:[#allocation10 + $0x1f0] sm:$0xff]
        %v616 = vld [vmem:[#allocation10 + $0x1f8] sm:$0xff]
        %v617 = vld [vmem:[#allocation10 + $0x210] sm:$0xff]
        %v618 = vld [vmem:[#allocation10 + $0x218] sm:$0xff]
        %v619 = vld [vmem:[#allocation10 + $0x220] sm:$0xff]
        %v620 = vld [vmem:[#allocation10 + $0x228] sm:$0xff]
        %v621 = vld [vmem:[#allocation10 + $0x240] sm:$0xff]
        %v622 = vld [vmem:[#allocation10 + $0x248] sm:$0xff]
        %v623 = vld [vmem:[#allocation10 + $0x250] sm:$0xff]
        %v624 = vld [vmem:[#allocation10 + $0x258] sm:$0xff]
        %v625 = vld [vmem:[#allocation10 + $0x270] sm:$0xff]
        %v626 = vld [vmem:[#allocation10 + $0x278] sm:$0xff]
        %v627 = vld [vmem:[#allocation10 + $0x280] sm:$0xff]
        %v628 = vld [vmem:[#allocation10 + $0x288] sm:$0xff]
        %v629 = vld [vmem:[#allocation10 + $0x2a0] sm:$0xff]
        %v630 = vld [vmem:[#allocation10 + $0x2a8] sm:$0xff]
        %v631 = vld [vmem:[#allocation10 + $0x2b0] sm:$0xff]
        %v632 = vld [vmem:[#allocation10 + $0x2b8] sm:$0xff]
        %v633 = vld [vmem:[#allocation10 + $0x2d0] sm:$0xff]
        %v634 = vld [vmem:[#allocation10 + $0x2d8] sm:$0xff]
        %v635 = vld [vmem:[#allocation10 + $0x2e0] sm:$0xff]
        %v636 = vld [vmem:[#allocation10 + $0x2e8] sm:$0xff]
        %v637 = vld [vmem:[#allocation10 + $0x300] sm:$0xff]
        %v638 = vld [vmem:[#allocation10 + $0x308] sm:$0xff]
        %v639 = vld [vmem:[#allocation10 + $0x310] sm:$0xff]
        %v640 = vld [vmem:[#allocation10 + $0x318] sm:$0xff]
        %v641 = vld [vmem:[#allocation10 + $0x330] sm:$0xff]
        %v642 = vld [vmem:[#allocation10 + $0x338] sm:$0xff]
        %v643 = vld [vmem:[#allocation10 + $0x340] sm:$0xff]
        %v644 = vld [vmem:[#allocation10 + $0x348] sm:$0xff]
        %v645 = vld [vmem:[#allocation10 + $0x360] sm:$0xff]
        %v646 = vld [vmem:[#allocation10 + $0x368] sm:$0xff]
        %v647 = vld [vmem:[#allocation10 + $0x370] sm:$0xff]
        %v648 = vld [vmem:[#allocation10 + $0x378] sm:$0xff]
        %v649 = vld [vmem:[#allocation10 + $0x390] sm:$0xff]
        %v650 = vld [vmem:[#allocation10 + $0x398] sm:$0xff]
        %v651 = vld [vmem:[#allocation10 + $0x3a0] sm:$0xff]
        %v652 = vld [vmem:[#allocation10 + $0x3a8] sm:$0xff]
        %v653 = vld [vmem:[#allocation10 + $0x3c0] sm:$0xff]
        %v654 = vld [vmem:[#allocation10 + $0x3c8] sm:$0xff]
        %v655 = vld [vmem:[#allocation10 + $0x3d0] sm:$0xff]
        %v656 = vld [vmem:[#allocation10 + $0x3d8] sm:$0xff]
        %v657 = vld [vmem:[#allocation10 + $0x3f0] sm:$0xff]
        %v658 = vld [vmem:[#allocation10 + $0x3f8] sm:$0xff]
        %v659 = vld [vmem:[#allocation10 + $0x400] sm:$0xff]
        %v660 = vld [vmem:[#allocation10 + $0x408] sm:$0xff]
        %v661 = vld [vmem:[#allocation10 + $0x420] sm:$0xff]
        %v662 = vld [vmem:[#allocation10 + $0x428] sm:$0xff]
        %v663 = vld [vmem:[#allocation10 + $0x430] sm:$0xff]
        %v664 = vld [vmem:[#allocation10 + $0x438] sm:$0xff]
        %v665 = vld [vmem:[#allocation10 + $0x450] sm:$0xff]
        %v666 = vld [vmem:[#allocation10 + $0x458] sm:$0xff]
        %v667 = vld [vmem:[#allocation10 + $0x460] sm:$0xff]
        %v668 = vld [vmem:[#allocation10 + $0x468] sm:$0xff]
        %v669 = vld [vmem:[#allocation10 + $0x480] sm:$0xff]
        %v670 = vld [vmem:[#allocation10 + $0x488] sm:$0xff]
        %v671 = vld [vmem:[#allocation10 + $0x490] sm:$0xff]
        %v672 = vld [vmem:[#allocation10 + $0x498] sm:$0xff]
        %v673 = vld [vmem:[#allocation10 + $0x4b0] sm:$0xff]
        %v674 = vld [vmem:[#allocation10 + $0x4b8] sm:$0xff]
        %v675 = vld [vmem:[#allocation10 + $0x4c0] sm:$0xff]
        %v676 = vld [vmem:[#allocation10 + $0x4c8] sm:$0xff]
        %v677 = vld [vmem:[#allocation10 + $0x4e0] sm:$0xff]
        %v678 = vld [vmem:[#allocation10 + $0x4e8] sm:$0xff]
        %v679 = vld [vmem:[#allocation10 + $0x4f0] sm:$0xff]
        %v680 = vld [vmem:[#allocation10 + $0x4f8] sm:$0xff]
        %v681 = vld [vmem:[#allocation10 + $0x510] sm:$0xff]
        %v682 = vld [vmem:[#allocation10 + $0x518] sm:$0xff]
        %v683 = vld [vmem:[#allocation10 + $0x520] sm:$0xff]
        %v684 = vld [vmem:[#allocation10 + $0x528] sm:$0xff]
        %v685 = vld [vmem:[#allocation10 + $0x540] sm:$0xff]
        %v686 = vld [vmem:[#allocation10 + $0x548] sm:$0xff]
        %v687 = vld [vmem:[#allocation10 + $0x550] sm:$0xff]
        %v688 = vld [vmem:[#allocation10 + $0x558] sm:$0xff]
        %v689 = vld [vmem:[#allocation10 + $0x570] sm:$0xff]
        %v690 = vld [vmem:[#allocation10 + $0x578] sm:$0xff]
        %v691 = vld [vmem:[#allocation10 + $0x580] sm:$0xff]
        %v692 = vld [vmem:[#allocation10 + $0x588] sm:$0xff]
        %v693 = vld [vmem:[#allocation10 + $0x5a0] sm:$0xff]
        %v694 = vld [vmem:[#allocation10 + $0x5a8] sm:$0xff]
        %v695 = vld [vmem:[#allocation10 + $0x5b0] sm:$0xff]
        %v696 = vld [vmem:[#allocation10 + $0x5b8] sm:$0xff]
        %v697 = vld [vmem:[#allocation10 + $0x5d0] sm:$0xff]
        %v698 = vld [vmem:[#allocation10 + $0x5d8] sm:$0xff]
        %v699 = vld [vmem:[#allocation10 + $0x5e0] sm:$0xff]
        %v700 = vld [vmem:[#allocation10 + $0x5e8] sm:$0xff]
        %v701 = vld [vmem:[#allocation10 + $0x20] sm:$0xff]
        %v702 = vld [vmem:[#allocation10 + $0x28] sm:$0xff]
        %v703 = vld [vmem:[#allocation10 + $0x50] sm:$0xff]
        %v704 = vld [vmem:[#allocation10 + $0x58] sm:$0xff]
        %v705 = vld [vmem:[#allocation10 + $0x80] sm:$0xff]
        %v706 = vld [vmem:[#allocation10 + $0x88] sm:$0xff]
        %v707 = vld [vmem:[#allocation10 + $0xb0] sm:$0xff]
        %v708 = vld [vmem:[#allocation10 + $0xb8] sm:$0xff]
        %v709 = vld [vmem:[#allocation10 + $0xe0] sm:$0xff]
        %v710 = vld [vmem:[#allocation10 + $0xe8] sm:$0xff]
        %v711 = vld [vmem:[#allocation10 + $0x110] sm:$0xff]
        %v712 = vld [vmem:[#allocation10 + $0x118] sm:$0xff]
        %v713 = vld [vmem:[#allocation10 + $0x140] sm:$0xff]
        %v714 = vld [vmem:[#allocation10 + $0x148] sm:$0xff]
        %v715 = vld [vmem:[#allocation10 + $0x170] sm:$0xff]
        %v716 = vld [vmem:[#allocation10 + $0x178] sm:$0xff]
        %v717 = vld [vmem:[#allocation10 + $0x1a0] sm:$0xff]
        %v718 = vld [vmem:[#allocation10 + $0x1a8] sm:$0xff]
        %v719 = vld [vmem:[#allocation10 + $0x1d0] sm:$0xff]
        %v720 = vld [vmem:[#allocation10 + $0x1d8] sm:$0xff]
        %v721 = vld [vmem:[#allocation10 + $0x200] sm:$0xff]
        %v722 = vld [vmem:[#allocation10 + $0x208] sm:$0xff]
        %v723 = vld [vmem:[#allocation10 + $0x230] sm:$0xff]
        %v724 = vld [vmem:[#allocation10 + $0x238] sm:$0xff]
        %v725 = vld [vmem:[#allocation10 + $0x260] sm:$0xff]
        %v726 = vld [vmem:[#allocation10 + $0x268] sm:$0xff]
        %v727 = vld [vmem:[#allocation10 + $0x290] sm:$0xff]
        %v728 = vld [vmem:[#allocation10 + $0x298] sm:$0xff]
        %v729 = vld [vmem:[#allocation10 + $0x2c0] sm:$0xff]
        %v730 = vld [vmem:[#allocation10 + $0x2c8] sm:$0xff]
        %v731 = vld [vmem:[#allocation10 + $0x2f0] sm:$0xff]
        %v732 = vld [vmem:[#allocation10 + $0x2f8] sm:$0xff]
        %v733 = vld [vmem:[#allocation10 + $0x320] sm:$0xff]
        %v734 = vld [vmem:[#allocation10 + $0x328] sm:$0xff]
        %v735 = vld [vmem:[#allocation10 + $0x350] sm:$0xff]
        %v736 = vld [vmem:[#allocation10 + $0x358] sm:$0xff]
        %v737 = vld [vmem:[#allocation10 + $0x380] sm:$0xff]
        %v738 = vld [vmem:[#allocation10 + $0x388] sm:$0xff]
        %v739 = vld [vmem:[#allocation10 + $0x3b0] sm:$0xff]
        %v740 = vld [vmem:[#allocation10 + $0x3b8] sm:$0xff]
        %v741 = vld [vmem:[#allocation10 + $0x3e0] sm:$0xff]
        %v742 = vld [vmem:[#allocation10 + $0x3e8] sm:$0xff]
        %v743 = vld [vmem:[#allocation10 + $0x410] sm:$0xff]
        %v744 = vld [vmem:[#allocation10 + $0x418] sm:$0xff]
        %v745 = vld [vmem:[#allocation10 + $0x440] sm:$0xff]
        %v746 = vld [vmem:[#allocation10 + $0x448] sm:$0xff]
        %v747 = vld [vmem:[#allocation10 + $0x470] sm:$0xff]
        %v748 = vld [vmem:[#allocation10 + $0x478] sm:$0xff]
        %v749 = vld [vmem:[#allocation10 + $0x4a0] sm:$0xff]
        %v750 = vld [vmem:[#allocation10 + $0x4a8] sm:$0xff]
        %v751 = vld [vmem:[#allocation10 + $0x4d0] sm:$0xff]
        %v752 = vld [vmem:[#allocation10 + $0x4d8] sm:$0xff]
        %v753 = vld [vmem:[#allocation10 + $0x500] sm:$0xff]
        %v754 = vld [vmem:[#allocation10 + $0x508] sm:$0xff]
        %v755 = vld [vmem:[#allocation10 + $0x530] sm:$0xff]
        %v756 = vld [vmem:[#allocation10 + $0x538] sm:$0xff]
        %v757 = vld [vmem:[#allocation10 + $0x560] sm:$0xff]
        %v758 = vld [vmem:[#allocation10 + $0x568] sm:$0xff]
        %v759 = vld [vmem:[#allocation10 + $0x590] sm:$0xff]
        %v760 = vld [vmem:[#allocation10 + $0x598] sm:$0xff]
        %v761 = vld [vmem:[#allocation10 + $0x5c0] sm:$0xff]
        %v762 = vld [vmem:[#allocation10 + $0x5c8] sm:$0xff]
        %v763 = vld [vmem:[#allocation10 + $0x5f0] sm:$0xff]
        %v764 = vld [vmem:[#allocation10 + $0x5f8] sm:$0xff]
        %v765 = vld [vmem:[%s2] sm:$0x3f]
        %v767 = vlaneseq
        %v768 = vshrl.u32 %v767, 7
        %v769 = vsub.s32 0, %v768
        %v770 = vrot.slane %v765, %v769
        %v771 = vlaneseq
        %v772 = vshrl.u32 %v771, 7
        %v773 = vsub.s32 1, %v772
        %v774 = vrot.slane %v765, %v773
        %v775 = vlaneseq
        %v776 = vshrl.u32 %v775, 7
        %v777 = vsub.s32 2, %v776
        %v778 = vrot.slane %v765, %v777
        %v779 = vlaneseq
        %v780 = vshrl.u32 %v779, 7
        %v781 = vsub.s32 3, %v780
        %v782 = vrot.slane %v765, %v781
        %v783 = vlaneseq
        %v784 = vshrl.u32 %v783, 7
        %v785 = vsub.s32 4, %v784
        %v786 = vrot.slane %v765, %v785
        %v787 = vlaneseq
        %v788 = vshrl.u32 %v787, 7
        %v789 = vsub.s32 5, %v788
        %v790 = vrot.slane %v765, %v789
        %v797 = vld [vmem:[%s4] sm:$0x3]
        %v799 = vlaneseq
        %v800 = vshrl.u32 %v799, 7
        %v801 = vsub.s32 0, %v800
        %v802 = vrot.slane %v797, %v801
        %v803 = vlaneseq
        %v804 = vshrl.u32 %v803, 7
        %v805 = vsub.s32 1, %v804
        %v806 = vrot.slane %v797, %v805
        %v809 = vld [vmem:[#allocation2] sm:$0xf]
        %v810 = vld [vmem:[%s362] sm:$0x3]
        %vm811 = vcmask 130048
        %v813 = vsel %vm811, %v810, 0
        %815 = vmatprep.subr.mxu0 %v562
        %816 = vmatpush1.msra.mxu0 %v561
        %817 = vmatprep.subr.mxu0 %v568
        %818 = vmatpush1.msra.mxu0 %v567
        %819 = vmatprep.subr.mxu0 0.0
        %820 = vmatpush1.msra.mxu0 0.0
        %821 = vmatprep.subr.mxu0 0.0
        %822 = vmatpush1.msra.mxu0 0.0
        %823 = vmatprep.subr.mxu0 0.0
        %824 = vmatpush1.msra.mxu0 0.0
        %825 = vmatprep.subr.mxu0 0.0
        %826 = vmatpush1.msra.mxu0 0.0
        %827 = vmatprep.subr.mxu0 0.0
        %828 = vmatpush1.msra.mxu0 0.0
        %829 = vmatprep.subr.mxu0 0.0
        %830 = vmatpush1.msra.mxu0 0.0
        %831 = vmatprep.subr.mxu0 0.0
        %832 = vmatpush1.msra.mxu0 0.0
        %833 = vmatprep.subr.mxu0 0.0
        %834 = vmatpush1.msra.mxu0 0.0
        %835 = vmatprep.subr.mxu0 0.0
        %836 = vmatpush1.msra.mxu0 0.0
        %837 = vmatprep.subr.mxu0 0.0
        %838 = vmatpush1.msra.mxu0 0.0
        %839 = vmatprep.subr.mxu0 0.0
        %840 = vmatpush1.msra.mxu0 0.0
        %841 = vmatprep.subr.mxu0 0.0
        %842 = vmatpush1.msra.mxu0 0.0
        %843 = vmatprep.subr.mxu0 0.0
        %844 = vmatpush1.msra.mxu0 0.0
        %845 = vmatprep.subr.mxu0 0.0
        %846 = vmatpush1.msra.mxu0 0.0
        %847 = vmatprep.subr.mxu0 0.0
        %848 = vmatpush1.msra.mxu0 0.0
        %849 = vmatprep.subr.mxu0 0.0
        %850 = vmatpush1.msra.mxu0 0.0
        %851 = vmatprep.subr.mxu0 0.0
        %852 = vmatpush1.msra.mxu0 0.0
        %853 = vmatprep.subr.mxu0 0.0
        %854 = vmatpush1.msra.mxu0 0.0
        %855 = vmatprep.subr.mxu0 0.0
        %856 = vmatpush1.msra.mxu0 0.0
        %857 = vmatprep.subr.mxu0 0.0
        %858 = vmatpush1.msra.mxu0 0.0
        %859 = vmatprep.subr.mxu0 0.0
        %860 = vmatpush1.msra.mxu0 0.0
        %861 = vmatprep.subr.mxu0 0.0
        %862 = vmatpush1.msra.mxu0 0.0
        %863 = vmatprep.subr.mxu0 0.0
        %864 = vmatpush1.msra.mxu0 0.0
        %865 = vmatprep.subr.mxu0 0.0
        %866 = vmatpush1.msra.mxu0 0.0
        %867 = vmatprep.subr.mxu0 0.0
        %868 = vmatpush1.msra.mxu0 0.0
        %869 = vmatprep.subr.mxu0 0.0
        %870 = vmatpush1.msra.mxu0 0.0
        %871 = vmatprep.subr.mxu0 0.0
        %872 = vmatpush1.msra.mxu0 0.0
        %873 = vmatprep.subr.mxu0 0.0
        %874 = vmatpush1.msra.mxu0 0.0
        %875 = vmatprep.subr.mxu0 0.0
        %876 = vmatpush1.msra.mxu0 0.0
        %877 = vmatprep.subr.mxu0 0.0
        %878 = vmatpush1.msra.mxu0 0.0
        %879 = vmatprep.mubr.f32.mxu0 0.0
        %880 = vmatmul.mubr.f32.gmra.mrb[0].mxu0 %v813
        %v881 = vpop.f32.mrb[0].mxu0
        %v882 = vadd.f32 %v770, %v881
        %v883 = vpop.f32.mrb[0].mxu0
        %v884 = vadd.f32 %v774, %v883
        %885 = vdwg.mxu0
        %886 = vmatprep.subr.mxu0 %v564
        %887 = vmatpush1.msra.mxu0 %v563
        %888 = vmatprep.subr.mxu0 %v570
        %889 = vmatpush1.msra.mxu0 %v569
        %890 = vmatprep.subr.mxu0 0.0
        %891 = vmatpush1.msra.mxu0 0.0
        %892 = vmatprep.subr.mxu0 0.0
        %893 = vmatpush1.msra.mxu0 0.0
        %894 = vmatprep.subr.mxu0 0.0
        %895 = vmatpush1.msra.mxu0 0.0
        %896 = vmatprep.subr.mxu0 0.0
        %897 = vmatpush1.msra.mxu0 0.0
        %898 = vmatprep.subr.mxu0 0.0
        %899 = vmatpush1.msra.mxu0 0.0
        %900 = vmatprep.subr.mxu0 0.0
        %901 = vmatpush1.msra.mxu0 0.0
        %902 = vmatprep.subr.mxu0 0.0
        %903 = vmatpush1.msra.mxu0 0.0
        %904 = vmatprep.subr.mxu0 0.0
        %905 = vmatpush1.msra.mxu0 0.0
        %906 = vmatprep.subr.mxu0 0.0
        %907 = vmatpush1.msra.mxu0 0.0
        %908 = vmatprep.subr.mxu0 0.0
        %909 = vmatpush1.msra.mxu0 0.0
        %910 = vmatprep.subr.mxu0 0.0
        %911 = vmatpush1.msra.mxu0 0.0
        %912 = vmatprep.subr.mxu0 0.0
        %913 = vmatpush1.msra.mxu0 0.0
        %914 = vmatprep.subr.mxu0 0.0
        %915 = vmatpush1.msra.mxu0 0.0
        %916 = vmatprep.subr.mxu0 0.0
        %917 = vmatpush1.msra.mxu0 0.0
        %918 = vmatprep.subr.mxu0 0.0
        %919 = vmatpush1.msra.mxu0 0.0
        %920 = vmatprep.subr.mxu0 0.0
        %921 = vmatpush1.msra.mxu0 0.0
        %922 = vmatprep.subr.mxu0 0.0
        %923 = vmatpush1.msra.mxu0 0.0
        %924 = vmatprep.subr.mxu0 0.0
        %925 = vmatpush1.msra.mxu0 0.0
        %926 = vmatprep.subr.mxu0 0.0
        %927 = vmatpush1.msra.mxu0 0.0
        %928 = vmatprep.subr.mxu0 0.0
        %929 = vmatpush1.msra.mxu0 0.0
        %930 = vmatprep.subr.mxu0 0.0
        %931 = vmatpush1.msra.mxu0 0.0
        %932 = vmatprep.subr.mxu0 0.0
        %933 = vmatpush1.msra.mxu0 0.0
        %934 = vmatprep.subr.mxu0 0.0
        %935 = vmatpush1.msra.mxu0 0.0
        %936 = vmatprep.subr.mxu0 0.0
        %937 = vmatpush1.msra.mxu0 0.0
        %938 = vmatprep.subr.mxu0 0.0
        %939 = vmatpush1.msra.mxu0 0.0
        %940 = vmatprep.subr.mxu0 0.0
        %941 = vmatpush1.msra.mxu0 0.0
        %942 = vmatprep.subr.mxu0 0.0
        %943 = vmatpush1.msra.mxu0 0.0
        %944 = vmatprep.subr.mxu0 0.0
        %945 = vmatpush1.msra.mxu0 0.0
        %946 = vmatprep.subr.mxu0 0.0
        %947 = vmatpush1.msra.mxu0 0.0
        %948 = vmatprep.subr.mxu0 0.0
        %949 = vmatpush1.msra.mxu0 0.0
        %950 = vmatprep.mubr.f32.mxu0 0.0
        %951 = vmatmul.mubr.f32.gmra.mrb[0].mxu0 %v813
        %v952 = vpop.f32.mrb[0].mxu0
        %v953 = vadd.f32 %v778, %v952
        %v954 = vpop.f32.mrb[0].mxu0
        %v955 = vadd.f32 %v782, %v954
        %956 = vdwg.mxu0
        %957 = vmatprep.subr.mxu0 %v566
        %958 = vmatpush1.msra.mxu0 %v565
        %959 = vmatprep.subr.mxu0 %v572
        %960 = vmatpush1.msra.mxu0 %v571
        %961 = vmatprep.subr.mxu0 0.0
        %962 = vmatpush1.msra.mxu0 0.0
        %963 = vmatprep.subr.mxu0 0.0
        %964 = vmatpush1.msra.mxu0 0.0
        %965 = vmatprep.subr.mxu0 0.0
        %966 = vmatpush1.msra.mxu0 0.0
        %967 = vmatprep.subr.mxu0 0.0
        %968 = vmatpush1.msra.mxu0 0.0
        %969 = vmatprep.subr.mxu0 0.0
        %970 = vmatpush1.msra.mxu0 0.0
        %971 = vmatprep.subr.mxu0 0.0
        %972 = vmatpush1.msra.mxu0 0.0
        %973 = vmatprep.subr.mxu0 0.0
        %974 = vmatpush1.msra.mxu0 0.0
        %975 = vmatprep.subr.mxu0 0.0
        %976 = vmatpush1.msra.mxu0 0.0
        %977 = vmatprep.subr.mxu0 0.0
        %978 = vmatpush1.msra.mxu0 0.0
        %979 = vmatprep.subr.mxu0 0.0
        %980 = vmatpush1.msra.mxu0 0.0
        %981 = vmatprep.subr.mxu0 0.0
        %982 = vmatpush1.msra.mxu0 0.0
        %983 = vmatprep.subr.mxu0 0.0
        %984 = vmatpush1.msra.mxu0 0.0
        %985 = vmatprep.subr.mxu0 0.0
        %986 = vmatpush1.msra.mxu0 0.0
        %987 = vmatprep.subr.mxu0 0.0
        %988 = vmatpush1.msra.mxu0 0.0
        %989 = vmatprep.subr.mxu0 0.0
        %990 = vmatpush1.msra.mxu0 0.0
        %991 = vmatprep.subr.mxu0 0.0
        %992 = vmatpush1.msra.mxu0 0.0
        %993 = vmatprep.subr.mxu0 0.0
        %994 = vmatpush1.msra.mxu0 0.0
        %995 = vmatprep.subr.mxu0 0.0
        %996 = vmatpush1.msra.mxu0 0.0
        %997 = vmatprep.subr.mxu0 0.0
        %998 = vmatpush1.msra.mxu0 0.0
        %999 = vmatprep.subr.mxu0 0.0
        %1000 = vmatpush1.msra.mxu0 0.0
        %1001 = vmatprep.subr.mxu0 0.0
        %1002 = vmatpush1.msra.mxu0 0.0
        %1003 = vmatprep.subr.mxu0 0.0
        %1004 = vmatpush1.msra.mxu0 0.0
        %1005 = vmatprep.subr.mxu0 0.0
        %1006 = vmatpush1.msra.mxu0 0.0
        %1007 = vmatprep.subr.mxu0 0.0
        %1008 = vmatpush1.msra.mxu0 0.0
        %1009 = vmatprep.subr.mxu0 0.0
        %1010 = vmatpush1.msra.mxu0 0.0
        %1011 = vmatprep.subr.mxu0 0.0
        %1012 = vmatpush1.msra.mxu0 0.0
        %1013 = vmatprep.subr.mxu0 0.0
        %1014 = vmatpush1.msra.mxu0 0.0
        %1015 = vmatprep.subr.mxu0 0.0
        %1016 = vmatpush1.msra.mxu0 0.0
        %1017 = vmatprep.subr.mxu0 0.0
        %1018 = vmatpush1.msra.mxu0 0.0
        %1019 = vmatprep.subr.mxu0 0.0
        %1020 = vmatpush1.msra.mxu0 0.0
        %1021 = vmatprep.mubr.f32.mxu0 0.0
        %1022 = vmatmul.mubr.f32.gmra.mrb[0].mxu0 %v813
        %v1023 = vpop.f32.mrb[0].mxu0
        %v1024 = vadd.f32 %v786, %v1023
        %v1025 = vpop.f32.mrb[0].mxu0
        %v1026 = vadd.f32 %v790, %v1025
        %1027 = vdwg.mxu0
        %v1030 = vunpack.c.l.s4 1983009808
        %v1031 = vunpack.c.0.s8 %v1030
        %v1032 = vlaneseq
        %v1033 = vshrl.u32 %v1032, 7
        %v1034 = vsub.s32 %v1031, %v1033
        %v1035 = vrot.slane %v809, %v1034
        %v1036 = vcombine.high %v1035, %v1035
        %1039 = vmatprep.subr.mxu0 %v574
        %1040 = vmatpush1.msra.mxu0 %v573
        %1041 = vmatprep.subr.mxu0 %v578
        %1042 = vmatpush1.msra.mxu0 %v577
        %1043 = vmatprep.subr.mxu0 %v582
        %1044 = vmatpush1.msra.mxu0 %v581
        %1045 = vmatprep.subr.mxu0 %v586
        %1046 = vmatpush1.msra.mxu0 %v585
        %1047 = vmatprep.subr.mxu0 %v590
        %1048 = vmatpush1.msra.mxu0 %v589
        %1049 = vmatprep.subr.mxu0 %v594
        %1050 = vmatpush1.msra.mxu0 %v593
        %1051 = vmatprep.subr.mxu0 %v598
        %1052 = vmatpush1.msra.mxu0 %v597
        %1053 = vmatprep.subr.mxu0 %v602
        %1054 = vmatpush1.msra.mxu0 %v601
        %1055 = vmatprep.subr.mxu0 %v606
        %1056 = vmatpush1.msra.mxu0 %v605
        %1057 = vmatprep.subr.mxu0 %v610
        %1058 = vmatpush1.msra.mxu0 %v609
        %1059 = vmatprep.subr.mxu0 %v614
        %1060 = vmatpush1.msra.mxu0 %v613
        %1061 = vmatprep.subr.mxu0 %v618
        %1062 = vmatpush1.msra.mxu0 %v617
        %1063 = vmatprep.subr.mxu0 %v622
        %1064 = vmatpush1.msra.mxu0 %v621
        %1065 = vmatprep.subr.mxu0 %v626
        %1066 = vmatpush1.msra.mxu0 %v625
        %1067 = vmatprep.subr.mxu0 %v630
        %1068 = vmatpush1.msra.mxu0 %v629
        %1069 = vmatprep.subr.mxu0 %v634
        %1070 = vmatpush1.msra.mxu0 %v633
        %1071 = vmatprep.subr.mxu0 %v638
        %1072 = vmatpush1.msra.mxu0 %v637
        %1073 = vmatprep.subr.mxu0 %v642
        %1074 = vmatpush1.msra.mxu0 %v641
        %1075 = vmatprep.subr.mxu0 %v646
        %1076 = vmatpush1.msra.mxu0 %v645
        %1077 = vmatprep.subr.mxu0 %v650
        %1078 = vmatpush1.msra.mxu0 %v649
        %1079 = vmatprep.subr.mxu0 %v654
        %1080 = vmatpush1.msra.mxu0 %v653
        %1081 = vmatprep.subr.mxu0 %v658
        %1082 = vmatpush1.msra.mxu0 %v657
        %1083 = vmatprep.subr.mxu0 %v662
        %1084 = vmatpush1.msra.mxu0 %v661
        %1085 = vmatprep.subr.mxu0 %v666
        %1086 = vmatpush1.msra.mxu0 %v665
        %1087 = vmatprep.subr.mxu0 %v670
        %1088 = vmatpush1.msra.mxu0 %v669
        %1089 = vmatprep.subr.mxu0 %v674
        %1090 = vmatpush1.msra.mxu0 %v673
        %1091 = vmatprep.subr.mxu0 %v678
        %1092 = vmatpush1.msra.mxu0 %v677
        %1093 = vmatprep.subr.mxu0 %v682
        %1094 = vmatpush1.msra.mxu0 %v681
        %1095 = vmatprep.subr.mxu0 %v686
        %1096 = vmatpush1.msra.mxu0 %v685
        %1097 = vmatprep.subr.mxu0 %v690
        %1098 = vmatpush1.msra.mxu0 %v689
        %1099 = vmatprep.subr.mxu0 %v694
        %1100 = vmatpush1.msra.mxu0 %v693
        %1101 = vmatprep.subr.mxu0 %v698
        %1102 = vmatpush1.msra.mxu0 %v697
        %1103 = vmatprep.mubr.f32.mxu0 %v1036
        %1104 = vmatmul.mubr.f32.gmra.mrb[0].mxu0 %v1035
        %v1105 = vpop.f32.mrb[0].mxu0
        %v1106 = vadd.f32 0.0, %v1105
        %v1107 = vpop.f32.mrb[0].mxu0
        %v1108 = vadd.f32 0.0, %v1107
        %1109 = vdwg.mxu0
        %1110 = vmatprep.subr.mxu0 %v576
        %1111 = vmatpush1.msra.mxu0 %v575
        %1112 = vmatprep.subr.mxu0 %v580
        %1113 = vmatpush1.msra.mxu0 %v579
        %1114 = vmatprep.subr.mxu0 %v584
        %1115 = vmatpush1.msra.mxu0 %v583
        %1116 = vmatprep.subr.mxu0 %v588
        %1117 = vmatpush1.msra.mxu0 %v587
        %1118 = vmatprep.subr.mxu0 %v592
        %1119 = vmatpush1.msra.mxu0 %v591
        %1120 = vmatprep.subr.mxu0 %v596
        %1121 = vmatpush1.msra.mxu0 %v595
        %1122 = vmatprep.subr.mxu0 %v600
        %1123 = vmatpush1.msra.mxu0 %v599
        %1124 = vmatprep.subr.mxu0 %v604
        %1125 = vmatpush1.msra.mxu0 %v603
        %1126 = vmatprep.subr.mxu0 %v608
        %1127 = vmatpush1.msra.mxu0 %v607
        %1128 = vmatprep.subr.mxu0 %v612
        %1129 = vmatpush1.msra.mxu0 %v611
        %1130 = vmatprep.subr.mxu0 %v616
        %1131 = vmatpush1.msra.mxu0 %v615
        %1132 = vmatprep.subr.mxu0 %v620
        %1133 = vmatpush1.msra.mxu0 %v619
        %1134 = vmatprep.subr.mxu0 %v624
        %1135 = vmatpush1.msra.mxu0 %v623
        %1136 = vmatprep.subr.mxu0 %v628
        %1137 = vmatpush1.msra.mxu0 %v627
        %1138 = vmatprep.subr.mxu0 %v632
        %1139 = vmatpush1.msra.mxu0 %v631
        %1140 = vmatprep.subr.mxu0 %v636
        %1141 = vmatpush1.msra.mxu0 %v635
        %1142 = vmatprep.subr.mxu0 %v640
        %1143 = vmatpush1.msra.mxu0 %v639
        %1144 = vmatprep.subr.mxu0 %v644
        %1145 = vmatpush1.msra.mxu0 %v643
        %1146 = vmatprep.subr.mxu0 %v648
        %1147 = vmatpush1.msra.mxu0 %v647
        %1148 = vmatprep.subr.mxu0 %v652
        %1149 = vmatpush1.msra.mxu0 %v651
        %1150 = vmatprep.subr.mxu0 %v656
        %1151 = vmatpush1.msra.mxu0 %v655
        %1152 = vmatprep.subr.mxu0 %v660
        %1153 = vmatpush1.msra.mxu0 %v659
        %1154 = vmatprep.subr.mxu0 %v664
        %1155 = vmatpush1.msra.mxu0 %v663
        %1156 = vmatprep.subr.mxu0 %v668
        %1157 = vmatpush1.msra.mxu0 %v667
        %1158 = vmatprep.subr.mxu0 %v672
        %1159 = vmatpush1.msra.mxu0 %v671
        %1160 = vmatprep.subr.mxu0 %v676
        %1161 = vmatpush1.msra.mxu0 %v675
        %1162 = vmatprep.subr.mxu0 %v680
        %1163 = vmatpush1.msra.mxu0 %v679
        %1164 = vmatprep.subr.mxu0 %v684
        %1165 = vmatpush1.msra.mxu0 %v683
        %1166 = vmatprep.subr.mxu0 %v688
        %1167 = vmatpush1.msra.mxu0 %v687
        %1168 = vmatprep.subr.mxu0 %v692
        %1169 = vmatpush1.msra.mxu0 %v691
        %1170 = vmatprep.subr.mxu0 %v696
        %1171 = vmatpush1.msra.mxu0 %v695
        %1172 = vmatprep.subr.mxu0 %v700
        %1173 = vmatpush1.msra.mxu0 %v699
        %1174 = vmatprep.mubr.f32.mxu0 %v1036
        %1175 = vmatmul.mubr.f32.gmra.mrb[0].mxu0 %v1035
        %v1176 = vpop.f32.mrb[0].mxu0
        %v1177 = vadd.f32 0.0, %v1176
        %v1178 = vpop.f32.mrb[0].mxu0
        %v1179 = vadd.f32 0.0, %v1178
        %1180 = vdwg.mxu0
        %v1181 = vadd.f32 %v882, %v1106
        %v1182 = vadd.f32 %v884, %v1108
        %v1183 = vxor.u32 %v1181, 2147483648
        %v1184 = vxor.u32 %v1182, 2147483648
        %v1185 = vmul.f32 %v1183, 1.442695
        %v1186 = vpow.pop %v1185
        %v1187 = vmul.f32 %v1184, 1.442695
        %v1188 = vpow.pop %v1187
        %v1189 = vadd.f32 %v1186, 1.0
        %v1190 = vadd.f32 %v1188, 1.0
        %v1191 = vrcp.pop %v1189
        %v1192 = vmul.f32 1.0, %v1191
        %v1193 = vrcp.pop %v1190
        %v1194 = vmul.f32 1.0, %v1193
        %v1195 = vadd.f32 %v953, %v1177
        %v1196 = vadd.f32 %v955, %v1179
        %v1197 = vxor.u32 %v1195, 2147483648
        %v1198 = vxor.u32 %v1196, 2147483648
        %v1199 = vmul.f32 %v1197, 1.442695
        %v1200 = vpow.pop %v1199
        %v1201 = vmul.f32 %v1198, 1.442695
        %v1202 = vpow.pop %v1201
        %v1203 = vadd.f32 %v1200, 1.0
        %v1204 = vadd.f32 %v1202, 1.0
        %v1205 = vrcp.pop %v1203
        %v1206 = vmul.f32 1.0, %v1205
        %v1207 = vrcp.pop %v1204
        %v1208 = vmul.f32 1.0, %v1207
        %1209 = vmatprep.subr.mxu0 %v702
        %1210 = vmatpush1.msra.mxu0 %v701
        %1211 = vmatprep.subr.mxu0 %v704
        %1212 = vmatpush1.msra.mxu0 %v703
        %1213 = vmatprep.subr.mxu0 %v706
        %1214 = vmatpush1.msra.mxu0 %v705
        %1215 = vmatprep.subr.mxu0 %v708
        %1216 = vmatpush1.msra.mxu0 %v707
        %1217 = vmatprep.subr.mxu0 %v710
        %1218 = vmatpush1.msra.mxu0 %v709
        %1219 = vmatprep.subr.mxu0 %v712
        %1220 = vmatpush1.msra.mxu0 %v711
        %1221 = vmatprep.subr.mxu0 %v714
        %1222 = vmatpush1.msra.mxu0 %v713
        %1223 = vmatprep.subr.mxu0 %v716
        %1224 = vmatpush1.msra.mxu0 %v715
        %1225 = vmatprep.subr.mxu0 %v718
        %1226 = vmatpush1.msra.mxu0 %v717
        %1227 = vmatprep.subr.mxu0 %v720
        %1228 = vmatpush1.msra.mxu0 %v719
        %1229 = vmatprep.subr.mxu0 %v722
        %1230 = vmatpush1.msra.mxu0 %v721
        %1231 = vmatprep.subr.mxu0 %v724
        %1232 = vmatpush1.msra.mxu0 %v723
        %1233 = vmatprep.subr.mxu0 %v726
        %1234 = vmatpush1.msra.mxu0 %v725
        %1235 = vmatprep.subr.mxu0 %v728
        %1236 = vmatpush1.msra.mxu0 %v727
        %1237 = vmatprep.subr.mxu0 %v730
        %1238 = vmatpush1.msra.mxu0 %v729
        %1239 = vmatprep.subr.mxu0 %v732
        %1240 = vmatpush1.msra.mxu0 %v731
        %1241 = vmatprep.subr.mxu0 %v734
        %1242 = vmatpush1.msra.mxu0 %v733
        %1243 = vmatprep.subr.mxu0 %v736
        %1244 = vmatpush1.msra.mxu0 %v735
        %1245 = vmatprep.subr.mxu0 %v738
        %1246 = vmatpush1.msra.mxu0 %v737
        %1247 = vmatprep.subr.mxu0 %v740
        %1248 = vmatpush1.msra.mxu0 %v739
        %1249 = vmatprep.subr.mxu0 %v742
        %1250 = vmatpush1.msra.mxu0 %v741
        %1251 = vmatprep.subr.mxu0 %v744
        %1252 = vmatpush1.msra.mxu0 %v743
        %1253 = vmatprep.subr.mxu0 %v746
        %1254 = vmatpush1.msra.mxu0 %v745
        %1255 = vmatprep.subr.mxu0 %v748
        %1256 = vmatpush1.msra.mxu0 %v747
        %1257 = vmatprep.subr.mxu0 %v750
        %1258 = vmatpush1.msra.mxu0 %v749
        %1259 = vmatprep.subr.mxu0 %v752
        %1260 = vmatpush1.msra.mxu0 %v751
        %1261 = vmatprep.subr.mxu0 %v754
        %1262 = vmatpush1.msra.mxu0 %v753
        %1263 = vmatprep.subr.mxu0 %v756
        %1264 = vmatpush1.msra.mxu0 %v755
        %1265 = vmatprep.subr.mxu0 %v758
        %1266 = vmatpush1.msra.mxu0 %v757
        %1267 = vmatprep.subr.mxu0 %v760
        %1268 = vmatpush1.msra.mxu0 %v759
        %1269 = vmatprep.subr.mxu0 %v762
        %1270 = vmatpush1.msra.mxu0 %v761
        %1271 = vmatprep.subr.mxu0 %v764
        %1272 = vmatpush1.msra.mxu0 %v763
        %1273 = vmatprep.mubr.f32.mxu0 %v1036
        %1274 = vmatmul.mubr.f32.gmra.mrb[0].mxu0 %v1035
        %v1275 = vpop.f32.mrb[0].mxu0
        %v1276 = vadd.f32 %v802, %v1275
        %v1277 = vpop.f32.mrb[0].mxu0
        %v1278 = vadd.f32 %v806, %v1277
        %1279 = vdwg.mxu0
        %v1280 = vmul.f32 %v1192, %v1276
        %v1281 = vmul.f32 %v1194, %v1278
        %v1282 = vadd.f32 %v1024, %v1280
        %v1283 = vadd.f32 %v1026, %v1281
        %v1284 = vtanh.pop %v1282
        %v1285 = vtanh.pop %v1283
        %v1286 = vsub.f32 1.0, %v1206
        %v1287 = vsub.f32 1.0, %v1208
        %v1288 = vmul.f32 %v1286, %v1284
        %v1289 = vmul.f32 %v1287, %v1285
        %v1290 = vmul.f32 %v1206, %v1035
        %v1291 = vmul.f32 %v1208, %v1036
        %v1292 = vadd.f32 %v1288, %v1290
        %v1293 = vadd.f32 %v1289, %v1291
        %s1294 = scalar_lea.vmem %s362, 2
        %v1295 = vld [vmem:[%s1294] sm:$0x3]
        %v1297 = vsel %vm811, %v1295, 0
        %1299 = vmatprep.subr.mxu0 %v562
        %1300 = vmatpush1.msra.mxu0 %v561
        %1301 = vmatprep.subr.mxu0 %v568
        %1302 = vmatpush1.msra.mxu0 %v567
        %1303 = vmatprep.subr.mxu0 0.0
        %1304 = vmatpush1.msra.mxu0 0.0
        %1305 = vmatprep.subr.mxu0 0.0
        %1306 = vmatpush1.msra.mxu0 0.0
        %1307 = vmatprep.subr.mxu0 0.0
        %1308 = vmatpush1.msra.mxu0 0.0
        %1309 = vmatprep.subr.mxu0 0.0
        %1310 = vmatpush1.msra.mxu0 0.0
        %1311 = vmatprep.subr.mxu0 0.0
        %1312 = vmatpush1.msra.mxu0 0.0
        %1313 = vmatprep.subr.mxu0 0.0
        %1314 = vmatpush1.msra.mxu0 0.0
        %1315 = vmatprep.subr.mxu0 0.0
        %1316 = vmatpush1.msra.mxu0 0.0
        %1317 = vmatprep.subr.mxu0 0.0
        %1318 = vmatpush1.msra.mxu0 0.0
        %1319 = vmatprep.subr.mxu0 0.0
        %1320 = vmatpush1.msra.mxu0 0.0
        %1321 = vmatprep.subr.mxu0 0.0
        %1322 = vmatpush1.msra.mxu0 0.0
        %1323 = vmatprep.subr.mxu0 0.0
        %1324 = vmatpush1.msra.mxu0 0.0
        %1325 = vmatprep.subr.mxu0 0.0
        %1326 = vmatpush1.msra.mxu0 0.0
        %1327 = vmatprep.subr.mxu0 0.0
        %1328 = vmatpush1.msra.mxu0 0.0
        %1329 = vmatprep.subr.mxu0 0.0
        %1330 = vmatpush1.msra.mxu0 0.0
        %1331 = vmatprep.subr.mxu0 0.0
        %1332 = vmatpush1.msra.mxu0 0.0
        %1333 = vmatprep.subr.mxu0 0.0
        %1334 = vmatpush1.msra.mxu0 0.0
        %1335 = vmatprep.subr.mxu0 0.0
        %1336 = vmatpush1.msra.mxu0 0.0
        %1337 = vmatprep.subr.mxu0 0.0
        %1338 = vmatpush1.msra.mxu0 0.0
        %1339 = vmatprep.subr.mxu0 0.0
        %1340 = vmatpush1.msra.mxu0 0.0
        %1341 = vmatprep.subr.mxu0 0.0
        %1342 = vmatpush1.msra.mxu0 0.0
        %1343 = vmatprep.subr.mxu0 0.0
        %1344 = vmatpush1.msra.mxu0 0.0
        %1345 = vmatprep.subr.mxu0 0.0
        %1346 = vmatpush1.msra.mxu0 0.0
        %1347 = vmatprep.subr.mxu0 0.0
        %1348 = vmatpush1.msra.mxu0 0.0
        %1349 = vmatprep.subr.mxu0 0.0
        %1350 = vmatpush1.msra.mxu0 0.0
        %1351 = vmatprep.subr.mxu0 0.0
        %1352 = vmatpush1.msra.mxu0 0.0
        %1353 = vmatprep.subr.mxu0 0.0
        %1354 = vmatpush1.msra.mxu0 0.0
        %1355 = vmatprep.subr.mxu0 0.0
        %1356 = vmatpush1.msra.mxu0 0.0
        %1357 = vmatprep.subr.mxu0 0.0
        %1358 = vmatpush1.msra.mxu0 0.0
        %1359 = vmatprep.subr.mxu0 0.0
        %1360 = vmatpush1.msra.mxu0 0.0
        %1361 = vmatprep.subr.mxu0 0.0
        %1362 = vmatpush1.msra.mxu0 0.0
        %1363 = vmatprep.mubr.f32.mxu0 0.0
        %1364 = vmatmul.mubr.f32.gmra.mrb[0].mxu0 %v1297
        %v1365 = vpop.f32.mrb[0].mxu0
        %v1366 = vadd.f32 %v770, %v1365
        %v1367 = vpop.f32.mrb[0].mxu0
        %v1368 = vadd.f32 %v774, %v1367
        %1369 = vdwg.mxu0
        %1370 = vmatprep.subr.mxu0 %v564
        %1371 = vmatpush1.msra.mxu0 %v563
        %1372 = vmatprep.subr.mxu0 %v570
        %1373 = vmatpush1.msra.mxu0 %v569
        %1374 = vmatprep.subr.mxu0 0.0
        %1375 = vmatpush1.msra.mxu0 0.0
        %1376 = vmatprep.subr.mxu0 0.0
        %1377 = vmatpush1.msra.mxu0 0.0
        %1378 = vmatprep.subr.mxu0 0.0
        %1379 = vmatpush1.msra.mxu0 0.0
        %1380 = vmatprep.subr.mxu0 0.0
        %1381 = vmatpush1.msra.mxu0 0.0
        %1382 = vmatprep.subr.mxu0 0.0
        %1383 = vmatpush1.msra.mxu0 0.0
        %1384 = vmatprep.subr.mxu0 0.0
        %1385 = vmatpush1.msra.mxu0 0.0
        %1386 = vmatprep.subr.mxu0 0.0
        %1387 = vmatpush1.msra.mxu0 0.0
        %1388 = vmatprep.subr.mxu0 0.0
        %1389 = vmatpush1.msra.mxu0 0.0
        %1390 = vmatprep.subr.mxu0 0.0
        %1391 = vmatpush1.msra.mxu0 0.0
        %1392 = vmatprep.subr.mxu0 0.0
        %1393 = vmatpush1.msra.mxu0 0.0
        %1394 = vmatprep.subr.mxu0 0.0
        %1395 = vmatpush1.msra.mxu0 0.0
        %1396 = vmatprep.subr.mxu0 0.0
        %1397 = vmatpush1.msra.mxu0 0.0
        %1398 = vmatprep.subr.mxu0 0.0
        %1399 = vmatpush1.msra.mxu0 0.0
        %1400 = vmatprep.subr.mxu0 0.0
        %1401 = vmatpush1.msra.mxu0 0.0
        %1402 = vmatprep.subr.mxu0 0.0
        %1403 = vmatpush1.msra.mxu0 0.0
        %1404 = vmatprep.subr.mxu0 0.0
        %1405 = vmatpush1.msra.mxu0 0.0
        %1406 = vmatprep.subr.mxu0 0.0
        %1407 = vmatpush1.msra.mxu0 0.0
        %1408 = vmatprep.subr.mxu0 0.0
        %1409 = vmatpush1.msra.mxu0 0.0
        %1410 = vmatprep.subr.mxu0 0.0
        %1411 = vmatpush1.msra.mxu0 0.0
        %1412 = vmatprep.subr.mxu0 0.0
        %1413 = vmatpush1.msra.mxu0 0.0
        %1414 = vmatprep.subr.mxu0 0.0
        %1415 = vmatpush1.msra.mxu0 0.0
        %1416 = vmatprep.subr.mxu0 0.0
        %1417 = vmatpush1.msra.mxu0 0.0
        %1418 = vmatprep.subr.mxu0 0.0
        %1419 = vmatpush1.msra.mxu0 0.0
        %1420 = vmatprep.subr.mxu0 0.0
        %1421 = vmatpush1.msra.mxu0 0.0
        %1422 = vmatprep.subr.mxu0 0.0
        %1423 = vmatpush1.msra.mxu0 0.0
        %1424 = vmatprep.subr.mxu0 0.0
        %1425 = vmatpush1.msra.mxu0 0.0
        %1426 = vmatprep.subr.mxu0 0.0
        %1427 = vmatpush1.msra.mxu0 0.0
        %1428 = vmatprep.subr.mxu0 0.0
        %1429 = vmatpush1.msra.mxu0 0.0
        %1430 = vmatprep.subr.mxu0 0.0
        %1431 = vmatpush1.msra.mxu0 0.0
        %1432 = vmatprep.subr.mxu0 0.0
        %1433 = vmatpush1.msra.mxu0 0.0
        %1434 = vmatprep.mubr.f32.mxu0 0.0
        %1435 = vmatmul.mubr.f32.gmra.mrb[0].mxu0 %v1297
        %v1436 = vpop.f32.mrb[0].mxu0
        %v1437 = vadd.f32 %v778, %v1436
        %v1438 = vpop.f32.mrb[0].mxu0
        %v1439 = vadd.f32 %v782, %v1438
        %1440 = vdwg.mxu0
        %1441 = vmatprep.subr.mxu0 %v566
        %1442 = vmatpush1.msra.mxu0 %v565
        %1443 = vmatprep.subr.mxu0 %v572
        %1444 = vmatpush1.msra.mxu0 %v571
        %1445 = vmatprep.subr.mxu0 0.0
        %1446 = vmatpush1.msra.mxu0 0.0
        %1447 = vmatprep.subr.mxu0 0.0
        %1448 = vmatpush1.msra.mxu0 0.0
        %1449 = vmatprep.subr.mxu0 0.0
        %1450 = vmatpush1.msra.mxu0 0.0
        %1451 = vmatprep.subr.mxu0 0.0
        %1452 = vmatpush1.msra.mxu0 0.0
        %1453 = vmatprep.subr.mxu0 0.0
        %1454 = vmatpush1.msra.mxu0 0.0
        %1455 = vmatprep.subr.mxu0 0.0
        %1456 = vmatpush1.msra.mxu0 0.0
        %1457 = vmatprep.subr.mxu0 0.0
        %1458 = vmatpush1.msra.mxu0 0.0
        %1459 = vmatprep.subr.mxu0 0.0
        %1460 = vmatpush1.msra.mxu0 0.0
        %1461 = vmatprep.subr.mxu0 0.0
        %1462 = vmatpush1.msra.mxu0 0.0
        %1463 = vmatprep.subr.mxu0 0.0
        %1464 = vmatpush1.msra.mxu0 0.0
        %1465 = vmatprep.subr.mxu0 0.0
        %1466 = vmatpush1.msra.mxu0 0.0
        %1467 = vmatprep.subr.mxu0 0.0
        %1468 = vmatpush1.msra.mxu0 0.0
        %1469 = vmatprep.subr.mxu0 0.0
        %1470 = vmatpush1.msra.mxu0 0.0
        %1471 = vmatprep.subr.mxu0 0.0
        %1472 = vmatpush1.msra.mxu0 0.0
        %1473 = vmatprep.subr.mxu0 0.0
        %1474 = vmatpush1.msra.mxu0 0.0
        %1475 = vmatprep.subr.mxu0 0.0
        %1476 = vmatpush1.msra.mxu0 0.0
        %1477 = vmatprep.subr.mxu0 0.0
        %1478 = vmatpush1.msra.mxu0 0.0
        %1479 = vmatprep.subr.mxu0 0.0
        %1480 = vmatpush1.msra.mxu0 0.0
        %1481 = vmatprep.subr.mxu0 0.0
        %1482 = vmatpush1.msra.mxu0 0.0
        %1483 = vmatprep.subr.mxu0 0.0
        %1484 = vmatpush1.msra.mxu0 0.0
        %1485 = vmatprep.subr.mxu0 0.0
        %1486 = vmatpush1.msra.mxu0 0.0
        %1487 = vmatprep.subr.mxu0 0.0
        %1488 = vmatpush1.msra.mxu0 0.0
        %1489 = vmatprep.subr.mxu0 0.0
        %1490 = vmatpush1.msra.mxu0 0.0
        %1491 = vmatprep.subr.mxu0 0.0
        %1492 = vmatpush1.msra.mxu0 0.0
        %1493 = vmatprep.subr.mxu0 0.0
        %1494 = vmatpush1.msra.mxu0 0.0
        %1495 = vmatprep.subr.mxu0 0.0
        %1496 = vmatpush1.msra.mxu0 0.0
        %1497 = vmatprep.subr.mxu0 0.0
        %1498 = vmatpush1.msra.mxu0 0.0
        %1499 = vmatprep.subr.mxu0 0.0
        %1500 = vmatpush1.msra.mxu0 0.0
        %1501 = vmatprep.subr.mxu0 0.0
        %1502 = vmatpush1.msra.mxu0 0.0
        %1503 = vmatprep.subr.mxu0 0.0
        %1504 = vmatpush1.msra.mxu0 0.0
        %1505 = vmatprep.mubr.f32.mxu0 0.0
        %1506 = vmatmul.mubr.f32.gmra.mrb[0].mxu0 %v1297
        %v1507 = vpop.f32.mrb[0].mxu0
        %v1508 = vadd.f32 %v786, %v1507
        %v1509 = vpop.f32.mrb[0].mxu0
        %v1510 = vadd.f32 %v790, %v1509
        %1511 = vdwg.mxu0
        %1512 = vmatprep.subr.mxu0 %v574
        %1513 = vmatpush1.msra.mxu0 %v573
        %1514 = vmatprep.subr.mxu0 %v578
        %1515 = vmatpush1.msra.mxu0 %v577
        %1516 = vmatprep.subr.mxu0 %v582
        %1517 = vmatpush1.msra.mxu0 %v581
        %1518 = vmatprep.subr.mxu0 %v586
        %1519 = vmatpush1.msra.mxu0 %v585
        %1520 = vmatprep.subr.mxu0 %v590
        %1521 = vmatpush1.msra.mxu0 %v589
        %1522 = vmatprep.subr.mxu0 %v594
        %1523 = vmatpush1.msra.mxu0 %v593
        %1524 = vmatprep.subr.mxu0 %v598
        %1525 = vmatpush1.msra.mxu0 %v597
        %1526 = vmatprep.subr.mxu0 %v602
        %1527 = vmatpush1.msra.mxu0 %v601
        %1528 = vmatprep.subr.mxu0 %v606
        %1529 = vmatpush1.msra.mxu0 %v605
        %1530 = vmatprep.subr.mxu0 %v610
        %1531 = vmatpush1.msra.mxu0 %v609
        %1532 = vmatprep.subr.mxu0 %v614
        %1533 = vmatpush1.msra.mxu0 %v613
        %1534 = vmatprep.subr.mxu0 %v618
        %1535 = vmatpush1.msra.mxu0 %v617
        %1536 = vmatprep.subr.mxu0 %v622
        %1537 = vmatpush1.msra.mxu0 %v621
        %1538 = vmatprep.subr.mxu0 %v626
        %1539 = vmatpush1.msra.mxu0 %v625
        %1540 = vmatprep.subr.mxu0 %v630
        %1541 = vmatpush1.msra.mxu0 %v629
        %1542 = vmatprep.subr.mxu0 %v634
        %1543 = vmatpush1.msra.mxu0 %v633
        %1544 = vmatprep.subr.mxu0 %v638
        %1545 = vmatpush1.msra.mxu0 %v637
        %1546 = vmatprep.subr.mxu0 %v642
        %1547 = vmatpush1.msra.mxu0 %v641
        %1548 = vmatprep.subr.mxu0 %v646
        %1549 = vmatpush1.msra.mxu0 %v645
        %1550 = vmatprep.subr.mxu0 %v650
        %1551 = vmatpush1.msra.mxu0 %v649
        %1552 = vmatprep.subr.mxu0 %v654
        %1553 = vmatpush1.msra.mxu0 %v653
        %1554 = vmatprep.subr.mxu0 %v658
        %1555 = vmatpush1.msra.mxu0 %v657
        %1556 = vmatprep.subr.mxu0 %v662
        %1557 = vmatpush1.msra.mxu0 %v661
        %1558 = vmatprep.subr.mxu0 %v666
        %1559 = vmatpush1.msra.mxu0 %v665
        %1560 = vmatprep.subr.mxu0 %v670
        %1561 = vmatpush1.msra.mxu0 %v669
        %1562 = vmatprep.subr.mxu0 %v674
        %1563 = vmatpush1.msra.mxu0 %v673
        %1564 = vmatprep.subr.mxu0 %v678
        %1565 = vmatpush1.msra.mxu0 %v677
        %1566 = vmatprep.subr.mxu0 %v682
        %1567 = vmatpush1.msra.mxu0 %v681
        %1568 = vmatprep.subr.mxu0 %v686
        %1569 = vmatpush1.msra.mxu0 %v685
        %1570 = vmatprep.subr.mxu0 %v690
        %1571 = vmatpush1.msra.mxu0 %v689
        %1572 = vmatprep.subr.mxu0 %v694
        %1573 = vmatpush1.msra.mxu0 %v693
        %1574 = vmatprep.subr.mxu0 %v698
        %1575 = vmatpush1.msra.mxu0 %v697
        %1576 = vmatprep.mubr.f32.mxu0 %v1293
        %1577 = vmatmul.mubr.f32.gmra.mrb[0].mxu0 %v1292
        %v1578 = vpop.f32.mrb[0].mxu0
        %v1579 = vadd.f32 0.0, %v1578
        %v1580 = vpop.f32.mrb[0].mxu0
        %v1581 = vadd.f32 0.0, %v1580
        %1582 = vdwg.mxu0
        %1583 = vmatprep.subr.mxu0 %v576
        %1584 = vmatpush1.msra.mxu0 %v575
        %1585 = vmatprep.subr.mxu0 %v580
        %1586 = vmatpush1.msra.mxu0 %v579
        %1587 = vmatprep.subr.mxu0 %v584
        %1588 = vmatpush1.msra.mxu0 %v583
        %1589 = vmatprep.subr.mxu0 %v588
        %1590 = vmatpush1.msra.mxu0 %v587
        %1591 = vmatprep.subr.mxu0 %v592
        %1592 = vmatpush1.msra.mxu0 %v591
        %1593 = vmatprep.subr.mxu0 %v596
        %1594 = vmatpush1.msra.mxu0 %v595
        %1595 = vmatprep.subr.mxu0 %v600
        %1596 = vmatpush1.msra.mxu0 %v599
        %1597 = vmatprep.subr.mxu0 %v604
        %1598 = vmatpush1.msra.mxu0 %v603
        %1599 = vmatprep.subr.mxu0 %v608
        %1600 = vmatpush1.msra.mxu0 %v607
        %1601 = vmatprep.subr.mxu0 %v612
        %1602 = vmatpush1.msra.mxu0 %v611
        %1603 = vmatprep.subr.mxu0 %v616
        %1604 = vmatpush1.msra.mxu0 %v615
        %1605 = vmatprep.subr.mxu0 %v620
        %1606 = vmatpush1.msra.mxu0 %v619
        %1607 = vmatprep.subr.mxu0 %v624
        %1608 = vmatpush1.msra.mxu0 %v623
        %1609 = vmatprep.subr.mxu0 %v628
        %1610 = vmatpush1.msra.mxu0 %v627
        %1611 = vmatprep.subr.mxu0 %v632
        %1612 = vmatpush1.msra.mxu0 %v631
        %1613 = vmatprep.subr.mxu0 %v636
        %1614 = vmatpush1.msra.mxu0 %v635
        %1615 = vmatprep.subr.mxu0 %v640
        %1616 = vmatpush1.msra.mxu0 %v639
        %1617 = vmatprep.subr.mxu0 %v644
        %1618 = vmatpush1.msra.mxu0 %v643
        %1619 = vmatprep.subr.mxu0 %v648
        %1620 = vmatpush1.msra.mxu0 %v647
        %1621 = vmatprep.subr.mxu0 %v652
        %1622 = vmatpush1.msra.mxu0 %v651
        %1623 = vmatprep.subr.mxu0 %v656
        %1624 = vmatpush1.msra.mxu0 %v655
        %1625 = vmatprep.subr.mxu0 %v660
        %1626 = vmatpush1.msra.mxu0 %v659
        %1627 = vmatprep.subr.mxu0 %v664
        %1628 = vmatpush1.msra.mxu0 %v663
        %1629 = vmatprep.subr.mxu0 %v668
        %1630 = vmatpush1.msra.mxu0 %v667
        %1631 = vmatprep.subr.mxu0 %v672
        %1632 = vmatpush1.msra.mxu0 %v671
        %1633 = vmatprep.subr.mxu0 %v676
        %1634 = vmatpush1.msra.mxu0 %v675
        %1635 = vmatprep.subr.mxu0 %v680
        %1636 = vmatpush1.msra.mxu0 %v679
        %1637 = vmatprep.subr.mxu0 %v684
        %1638 = vmatpush1.msra.mxu0 %v683
        %1639 = vmatprep.subr.mxu0 %v688
        %1640 = vmatpush1.msra.mxu0 %v687
        %1641 = vmatprep.subr.mxu0 %v692
        %1642 = vmatpush1.msra.mxu0 %v691
        %1643 = vmatprep.subr.mxu0 %v696
        %1644 = vmatpush1.msra.mxu0 %v695
        %1645 = vmatprep.subr.mxu0 %v700
        %1646 = vmatpush1.msra.mxu0 %v699
        %1647 = vmatprep.mubr.f32.mxu0 %v1293
        %1648 = vmatmul.mubr.f32.gmra.mrb[0].mxu0 %v1292
        %v1649 = vpop.f32.mrb[0].mxu0
        %v1650 = vadd.f32 0.0, %v1649
        %v1651 = vpop.f32.mrb[0].mxu0
        %v1652 = vadd.f32 0.0, %v1651
        %1653 = vdwg.mxu0
        %v1654 = vadd.f32 %v1366, %v1579
        %v1655 = vadd.f32 %v1368, %v1581
        %v1656 = vxor.u32 %v1654, 2147483648
        %v1657 = vxor.u32 %v1655, 2147483648
        %v1658 = vmul.f32 %v1656, 1.442695
        %v1659 = vpow.pop %v1658
        %v1660 = vmul.f32 %v1657, 1.442695
        %v1661 = vpow.pop %v1660
        %v1662 = vadd.f32 %v1659, 1.0
        %v1663 = vadd.f32 %v1661, 1.0
        %v1664 = vrcp.pop %v1662
        %v1665 = vmul.f32 1.0, %v1664
        %v1666 = vrcp.pop %v1663
        %v1667 = vmul.f32 1.0, %v1666
        %v1668 = vadd.f32 %v1437, %v1650
        %v1669 = vadd.f32 %v1439, %v1652
        %v1670 = vxor.u32 %v1668, 2147483648
        %v1671 = vxor.u32 %v1669, 2147483648
        %v1672 = vmul.f32 %v1670, 1.442695
        %v1673 = vpow.pop %v1672
        %v1674 = vmul.f32 %v1671, 1.442695
        %v1675 = vpow.pop %v1674
        %v1676 = vadd.f32 %v1673, 1.0
        %v1677 = vadd.f32 %v1675, 1.0
        %v1678 = vrcp.pop %v1676
        %v1679 = vmul.f32 1.0, %v1678
        %v1680 = vrcp.pop %v1677
        %v1681 = vmul.f32 1.0, %v1680
        %1682 = vmatprep.subr.mxu0 %v702
        %1683 = vmatpush1.msra.mxu0 %v701
        %1684 = vmatprep.subr.mxu0 %v704
        %1685 = vmatpush1.msra.mxu0 %v703
        %1686 = vmatprep.subr.mxu0 %v706
        %1687 = vmatpush1.msra.mxu0 %v705
        %1688 = vmatprep.subr.mxu0 %v708
        %1689 = vmatpush1.msra.mxu0 %v707
        %1690 = vmatprep.subr.mxu0 %v710
        %1691 = vmatpush1.msra.mxu0 %v709
        %1692 = vmatprep.subr.mxu0 %v712
        %1693 = vmatpush1.msra.mxu0 %v711
        %1694 = vmatprep.subr.mxu0 %v714
        %1695 = vmatpush1.msra.mxu0 %v713
        %1696 = vmatprep.subr.mxu0 %v716
        %1697 = vmatpush1.msra.mxu0 %v715
        %1698 = vmatprep.subr.mxu0 %v718
        %1699 = vmatpush1.msra.mxu0 %v717
        %1700 = vmatprep.subr.mxu0 %v720
        %1701 = vmatpush1.msra.mxu0 %v719
        %1702 = vmatprep.subr.mxu0 %v722
        %1703 = vmatpush1.msra.mxu0 %v721
        %1704 = vmatprep.subr.mxu0 %v724
        %1705 = vmatpush1.msra.mxu0 %v723
        %1706 = vmatprep.subr.mxu0 %v726
        %1707 = vmatpush1.msra.mxu0 %v725
        %1708 = vmatprep.subr.mxu0 %v728
        %1709 = vmatpush1.msra.mxu0 %v727
        %1710 = vmatprep.subr.mxu0 %v730
        %1711 = vmatpush1.msra.mxu0 %v729
        %1712 = vmatprep.subr.mxu0 %v732
        %1713 = vmatpush1.msra.mxu0 %v731
        %1714 = vmatprep.subr.mxu0 %v734
        %1715 = vmatpush1.msra.mxu0 %v733
        %1716 = vmatprep.subr.mxu0 %v736
        %1717 = vmatpush1.msra.mxu0 %v735
        %1718 = vmatprep.subr.mxu0 %v738
        %1719 = vmatpush1.msra.mxu0 %v737
        %1720 = vmatprep.subr.mxu0 %v740
        %1721 = vmatpush1.msra.mxu0 %v739
        %1722 = vmatprep.subr.mxu0 %v742
        %1723 = vmatpush1.msra.mxu0 %v741
        %1724 = vmatprep.subr.mxu0 %v744
        %1725 = vmatpush1.msra.mxu0 %v743
        %1726 = vmatprep.subr.mxu0 %v746
        %1727 = vmatpush1.msra.mxu0 %v745
        %1728 = vmatprep.subr.mxu0 %v748
        %1729 = vmatpush1.msra.mxu0 %v747
        %1730 = vmatprep.subr.mxu0 %v750
        %1731 = vmatpush1.msra.mxu0 %v749
        %1732 = vmatprep.subr.mxu0 %v752
        %1733 = vmatpush1.msra.mxu0 %v751
        %1734 = vmatprep.subr.mxu0 %v754
        %1735 = vmatpush1.msra.mxu0 %v753
        %1736 = vmatprep.subr.mxu0 %v756
        %1737 = vmatpush1.msra.mxu0 %v755
        %1738 = vmatprep.subr.mxu0 %v758
        %1739 = vmatpush1.msra.mxu0 %v757
        %1740 = vmatprep.subr.mxu0 %v760
        %1741 = vmatpush1.msra.mxu0 %v759
        %1742 = vmatprep.subr.mxu0 %v762
        %1743 = vmatpush1.msra.mxu0 %v761
        %1744 = vmatprep.subr.mxu0 %v764
        %1745 = vmatpush1.msra.mxu0 %v763
        %1746 = vmatprep.mubr.f32.mxu0 %v1293
        %1747 = vmatmul.mubr.f32.gmra.mrb[0].mxu0 %v1292
        %v1748 = vpop.f32.mrb[0].mxu0
        %v1749 = vadd.f32 %v802, %v1748
        %v1750 = vpop.f32.mrb[0].mxu0
        %v1751 = vadd.f32 %v806, %v1750
        %1752 = vdwg.mxu0
        %v1753 = vmul.f32 %v1665, %v1749
        %v1754 = vmul.f32 %v1667, %v1751
        %v1755 = vadd.f32 %v1508, %v1753
        %v1756 = vadd.f32 %v1510, %v1754
        %v1757 = vtanh.pop %v1755
        %v1758 = vtanh.pop %v1756
        %v1759 = vsub.f32 1.0, %v1679
        %v1760 = vsub.f32 1.0, %v1681
        %v1761 = vmul.f32 %v1759, %v1757
        %v1762 = vmul.f32 %v1760, %v1758
        %v1763 = vmul.f32 %v1679, %v1292
        %v1764 = vmul.f32 %v1681, %v1293
        %v1765 = vadd.f32 %v1761, %v1763
        %v1766 = vadd.f32 %v1762, %v1764
        %s1767 = scalar_lea.vmem %s362, 4
        %v1768 = vld [vmem:[%s1767] sm:$0x3]
        %v1770 = vsel %vm811, %v1768, 0
        %1772 = vmatprep.subr.mxu0 %v562
        %1773 = vmatpush1.msra.mxu0 %v561
        %1774 = vmatprep.subr.mxu0 %v568
        %1775 = vmatpush1.msra.mxu0 %v567
        %1776 = vmatprep.subr.mxu0 0.0
        %1777 = vmatpush1.msra.mxu0 0.0
        %1778 = vmatprep.subr.mxu0 0.0
        %1779 = vmatpush1.msra.mxu0 0.0
        %1780 = vmatprep.subr.mxu0 0.0
        %1781 = vmatpush1.msra.mxu0 0.0
        %1782 = vmatprep.subr.mxu0 0.0
        %1783 = vmatpush1.msra.mxu0 0.0
        %1784 = vmatprep.subr.mxu0 0.0
        %1785 = vmatpush1.msra.mxu0 0.0
        %1786 = vmatprep.subr.mxu0 0.0
        %1787 = vmatpush1.msra.mxu0 0.0
        %1788 = vmatprep.subr.mxu0 0.0
        %1789 = vmatpush1.msra.mxu0 0.0
        %1790 = vmatprep.subr.mxu0 0.0
        %1791 = vmatpush1.msra.mxu0 0.0
        %1792 = vmatprep.subr.mxu0 0.0
        %1793 = vmatpush1.msra.mxu0 0.0
        %1794 = vmatprep.subr.mxu0 0.0
        %1795 = vmatpush1.msra.mxu0 0.0
        %1796 = vmatprep.subr.mxu0 0.0
        %1797 = vmatpush1.msra.mxu0 0.0
        %1798 = vmatprep.subr.mxu0 0.0
        %1799 = vmatpush1.msra.mxu0 0.0
        %1800 = vmatprep.subr.mxu0 0.0
        %1801 = vmatpush1.msra.mxu0 0.0
        %1802 = vmatprep.subr.mxu0 0.0
        %1803 = vmatpush1.msra.mxu0 0.0
        %1804 = vmatprep.subr.mxu0 0.0
        %1805 = vmatpush1.msra.mxu0 0.0
        %1806 = vmatprep.subr.mxu0 0.0
        %1807 = vmatpush1.msra.mxu0 0.0
        %1808 = vmatprep.subr.mxu0 0.0
        %1809 = vmatpush1.msra.mxu0 0.0
        %1810 = vmatprep.subr.mxu0 0.0
        %1811 = vmatpush1.msra.mxu0 0.0
        %1812 = vmatprep.subr.mxu0 0.0
        %1813 = vmatpush1.msra.mxu0 0.0
        %1814 = vmatprep.subr.mxu0 0.0
        %1815 = vmatpush1.msra.mxu0 0.0
        %1816 = vmatprep.subr.mxu0 0.0
        %1817 = vmatpush1.msra.mxu0 0.0
        %1818 = vmatprep.subr.mxu0 0.0
        %1819 = vmatpush1.msra.mxu0 0.0
        %1820 = vmatprep.subr.mxu0 0.0
        %1821 = vmatpush1.msra.mxu0 0.0
        %1822 = vmatprep.subr.mxu0 0.0
        %1823 = vmatpush1.msra.mxu0 0.0
        %1824 = vmatprep.subr.mxu0 0.0
        %1825 = vmatpush1.msra.mxu0 0.0
        %1826 = vmatprep.subr.mxu0 0.0
        %1827 = vmatpush1.msra.mxu0 0.0
        %1828 = vmatprep.subr.mxu0 0.0
        %1829 = vmatpush1.msra.mxu0 0.0
        %1830 = vmatprep.subr.mxu0 0.0
        %1831 = vmatpush1.msra.mxu0 0.0
        %1832 = vmatprep.subr.mxu0 0.0
        %1833 = vmatpush1.msra.mxu0 0.0
        %1834 = vmatprep.subr.mxu0 0.0
        %1835 = vmatpush1.msra.mxu0 0.0
        %1836 = vmatprep.mubr.f32.mxu0 0.0
        %1837 = vmatmul.mubr.f32.gmra.mrb[0].mxu0 %v1770
        %v1838 = vpop.f32.mrb[0].mxu0
        %v1839 = vadd.f32 %v770, %v1838
        %v1840 = vpop.f32.mrb[0].mxu0
        %v1841 = vadd.f32 %v774, %v1840
        %1842 = vdwg.mxu0
        %1843 = vmatprep.subr.mxu0 %v564
        %1844 = vmatpush1.msra.mxu0 %v563
        %1845 = vmatprep.subr.mxu0 %v570
        %1846 = vmatpush1.msra.mxu0 %v569
        %1847 = vmatprep.subr.mxu0 0.0
        %1848 = vmatpush1.msra.mxu0 0.0
        %1849 = vmatprep.subr.mxu0 0.0
        %1850 = vmatpush1.msra.mxu0 0.0
        %1851 = vmatprep.subr.mxu0 0.0
        %1852 = vmatpush1.msra.mxu0 0.0
        %1853 = vmatprep.subr.mxu0 0.0
        %1854 = vmatpush1.msra.mxu0 0.0
        %1855 = vmatprep.subr.mxu0 0.0
        %1856 = vmatpush1.msra.mxu0 0.0
        %1857 = vmatprep.subr.mxu0 0.0
        %1858 = vmatpush1.msra.mxu0 0.0
        %1859 = vmatprep.subr.mxu0 0.0
        %1860 = vmatpush1.msra.mxu0 0.0
        %1861 = vmatprep.subr.mxu0 0.0
        %1862 = vmatpush1.msra.mxu0 0.0
        %1863 = vmatprep.subr.mxu0 0.0
        %1864 = vmatpush1.msra.mxu0 0.0
        %1865 = vmatprep.subr.mxu0 0.0
        %1866 = vmatpush1.msra.mxu0 0.0
        %1867 = vmatprep.subr.mxu0 0.0
        %1868 = vmatpush1.msra.mxu0 0.0
        %1869 = vmatprep.subr.mxu0 0.0
        %1870 = vmatpush1.msra.mxu0 0.0
        %1871 = vmatprep.subr.mxu0 0.0
        %1872 = vmatpush1.msra.mxu0 0.0
        %1873 = vmatprep.subr.mxu0 0.0
        %1874 = vmatpush1.msra.mxu0 0.0
        %1875 = vmatprep.subr.mxu0 0.0
        %1876 = vmatpush1.msra.mxu0 0.0
        %1877 = vmatprep.subr.mxu0 0.0
        %1878 = vmatpush1.msra.mxu0 0.0
        %1879 = vmatprep.subr.mxu0 0.0
        %1880 = vmatpush1.msra.mxu0 0.0
        %1881 = vmatprep.subr.mxu0 0.0
        %1882 = vmatpush1.msra.mxu0 0.0
        %1883 = vmatprep.subr.mxu0 0.0
        %1884 = vmatpush1.msra.mxu0 0.0
        %1885 = vmatprep.subr.mxu0 0.0
        %1886 = vmatpush1.msra.mxu0 0.0
        %1887 = vmatprep.subr.mxu0 0.0
        %1888 = vmatpush1.msra.mxu0 0.0
        %1889 = vmatprep.subr.mxu0 0.0
        %1890 = vmatpush1.msra.mxu0 0.0
        %1891 = vmatprep.subr.mxu0 0.0
        %1892 = vmatpush1.msra.mxu0 0.0
        %1893 = vmatprep.subr.mxu0 0.0
        %1894 = vmatpush1.msra.mxu0 0.0
        %1895 = vmatprep.subr.mxu0 0.0
        %1896 = vmatpush1.msra.mxu0 0.0
        %1897 = vmatprep.subr.mxu0 0.0
        %1898 = vmatpush1.msra.mxu0 0.0
        %1899 = vmatprep.subr.mxu0 0.0
        %1900 = vmatpush1.msra.mxu0 0.0
        %1901 = vmatprep.subr.mxu0 0.0
        %1902 = vmatpush1.msra.mxu0 0.0
        %1903 = vmatprep.subr.mxu0 0.0
        %1904 = vmatpush1.msra.mxu0 0.0
        %1905 = vmatprep.subr.mxu0 0.0
        %1906 = vmatpush1.msra.mxu0 0.0
        %1907 = vmatprep.mubr.f32.mxu0 0.0
        %1908 = vmatmul.mubr.f32.gmra.mrb[0].mxu0 %v1770
        %v1909 = vpop.f32.mrb[0].mxu0
        %v1910 = vadd.f32 %v778, %v1909
        %v1911 = vpop.f32.mrb[0].mxu0
        %v1912 = vadd.f32 %v782, %v1911
        %1913 = vdwg.mxu0
        %1914 = vmatprep.subr.mxu0 %v566
        %1915 = vmatpush1.msra.mxu0 %v565
        %1916 = vmatprep.subr.mxu0 %v572
        %1917 = vmatpush1.msra.mxu0 %v571
        %1918 = vmatprep.subr.mxu0 0.0
        %1919 = vmatpush1.msra.mxu0 0.0
        %1920 = vmatprep.subr.mxu0 0.0
        %1921 = vmatpush1.msra.mxu0 0.0
        %1922 = vmatprep.subr.mxu0 0.0
        %1923 = vmatpush1.msra.mxu0 0.0
        %1924 = vmatprep.subr.mxu0 0.0
        %1925 = vmatpush1.msra.mxu0 0.0
        %1926 = vmatprep.subr.mxu0 0.0
        %1927 = vmatpush1.msra.mxu0 0.0
        %1928 = vmatprep.subr.mxu0 0.0
        %1929 = vmatpush1.msra.mxu0 0.0
        %1930 = vmatprep.subr.mxu0 0.0
        %1931 = vmatpush1.msra.mxu0 0.0
        %1932 = vmatprep.subr.mxu0 0.0
        %1933 = vmatpush1.msra.mxu0 0.0
        %1934 = vmatprep.subr.mxu0 0.0
        %1935 = vmatpush1.msra.mxu0 0.0
        %1936 = vmatprep.subr.mxu0 0.0
        %1937 = vmatpush1.msra.mxu0 0.0
        %1938 = vmatprep.subr.mxu0 0.0
        %1939 = vmatpush1.msra.mxu0 0.0
        %1940 = vmatprep.subr.mxu0 0.0
        %1941 = vmatpush1.msra.mxu0 0.0
        %1942 = vmatprep.subr.mxu0 0.0
        %1943 = vmatpush1.msra.mxu0 0.0
        %1944 = vmatprep.subr.mxu0 0.0
        %1945 = vmatpush1.msra.mxu0 0.0
        %1946 = vmatprep.subr.mxu0 0.0
        %1947 = vmatpush1.msra.mxu0 0.0
        %1948 = vmatprep.subr.mxu0 0.0
        %1949 = vmatpush1.msra.mxu0 0.0
        %1950 = vmatprep.subr.mxu0 0.0
        %1951 = vmatpush1.msra.mxu0 0.0
        %1952 = vmatprep.subr.mxu0 0.0
        %1953 = vmatpush1.msra.mxu0 0.0
        %1954 = vmatprep.subr.mxu0 0.0
        %1955 = vmatpush1.msra.mxu0 0.0
        %1956 = vmatprep.subr.mxu0 0.0
        %1957 = vmatpush1.msra.mxu0 0.0
        %1958 = vmatprep.subr.mxu0 0.0
        %1959 = vmatpush1.msra.mxu0 0.0
        %1960 = vmatprep.subr.mxu0 0.0
        %1961 = vmatpush1.msra.mxu0 0.0
        %1962 = vmatprep.subr.mxu0 0.0
        %1963 = vmatpush1.msra.mxu0 0.0
        %1964 = vmatprep.subr.mxu0 0.0
        %1965 = vmatpush1.msra.mxu0 0.0
        %1966 = vmatprep.subr.mxu0 0.0
        %1967 = vmatpush1.msra.mxu0 0.0
        %1968 = vmatprep.subr.mxu0 0.0
        %1969 = vmatpush1.msra.mxu0 0.0
        %1970 = vmatprep.subr.mxu0 0.0
        %1971 = vmatpush1.msra.mxu0 0.0
        %1972 = vmatprep.subr.mxu0 0.0
        %1973 = vmatpush1.msra.mxu0 0.0
        %1974 = vmatprep.subr.mxu0 0.0
        %1975 = vmatpush1.msra.mxu0 0.0
        %1976 = vmatprep.subr.mxu0 0.0
        %1977 = vmatpush1.msra.mxu0 0.0
        %1978 = vmatprep.mubr.f32.mxu0 0.0
        %1979 = vmatmul.mubr.f32.gmra.mrb[0].mxu0 %v1770
        %v1980 = vpop.f32.mrb[0].mxu0
        %v1981 = vadd.f32 %v786, %v1980
        %v1982 = vpop.f32.mrb[0].mxu0
        %v1983 = vadd.f32 %v790, %v1982
        %1984 = vdwg.mxu0
        %1985 = vmatprep.subr.mxu0 %v574
        %1986 = vmatpush1.msra.mxu0 %v573
        %1987 = vmatprep.subr.mxu0 %v578
        %1988 = vmatpush1.msra.mxu0 %v577
        %1989 = vmatprep.subr.mxu0 %v582
        %1990 = vmatpush1.msra.mxu0 %v581
        %1991 = vmatprep.subr.mxu0 %v586
        %1992 = vmatpush1.msra.mxu0 %v585
        %1993 = vmatprep.subr.mxu0 %v590
        %1994 = vmatpush1.msra.mxu0 %v589
        %1995 = vmatprep.subr.mxu0 %v594
        %1996 = vmatpush1.msra.mxu0 %v593
        %1997 = vmatprep.subr.mxu0 %v598
        %1998 = vmatpush1.msra.mxu0 %v597
        %1999 = vmatprep.subr.mxu0 %v602
        %2000 = vmatpush1.msra.mxu0 %v601
        %2001 = vmatprep.subr.mxu0 %v606
        %2002 = vmatpush1.msra.mxu0 %v605
        %2003 = vmatprep.subr.mxu0 %v610
        %2004 = vmatpush1.msra.mxu0 %v609
        %2005 = vmatprep.subr.mxu0 %v614
        %2006 = vmatpush1.msra.mxu0 %v613
        %2007 = vmatprep.subr.mxu0 %v618
        %2008 = vmatpush1.msra.mxu0 %v617
        %2009 = vmatprep.subr.mxu0 %v622
        %2010 = vmatpush1.msra.mxu0 %v621
        %2011 = vmatprep.subr.mxu0 %v626
        %2012 = vmatpush1.msra.mxu0 %v625
        %2013 = vmatprep.subr.mxu0 %v630
        %2014 = vmatpush1.msra.mxu0 %v629
        %2015 = vmatprep.subr.mxu0 %v634
        %2016 = vmatpush1.msra.mxu0 %v633
        %2017 = vmatprep.subr.mxu0 %v638
        %2018 = vmatpush1.msra.mxu0 %v637
        %2019 = vmatprep.subr.mxu0 %v642
        %2020 = vmatpush1.msra.mxu0 %v641
        %2021 = vmatprep.subr.mxu0 %v646
        %2022 = vmatpush1.msra.mxu0 %v645
        %2023 = vmatprep.subr.mxu0 %v650
        %2024 = vmatpush1.msra.mxu0 %v649
        %2025 = vmatprep.subr.mxu0 %v654
        %2026 = vmatpush1.msra.mxu0 %v653
        %2027 = vmatprep.subr.mxu0 %v658
        %2028 = vmatpush1.msra.mxu0 %v657
        %2029 = vmatprep.subr.mxu0 %v662
        %2030 = vmatpush1.msra.mxu0 %v661
        %2031 = vmatprep.subr.mxu0 %v666
        %2032 = vmatpush1.msra.mxu0 %v665
        %2033 = vmatprep.subr.mxu0 %v670
        %2034 = vmatpush1.msra.mxu0 %v669
        %2035 = vmatprep.subr.mxu0 %v674
        %2036 = vmatpush1.msra.mxu0 %v673
        %2037 = vmatprep.subr.mxu0 %v678
        %2038 = vmatpush1.msra.mxu0 %v677
        %2039 = vmatprep.subr.mxu0 %v682
        %2040 = vmatpush1.msra.mxu0 %v681
        %2041 = vmatprep.subr.mxu0 %v686
        %2042 = vmatpush1.msra.mxu0 %v685
        %2043 = vmatprep.subr.mxu0 %v690
        %2044 = vmatpush1.msra.mxu0 %v689
        %2045 = vmatprep.subr.mxu0 %v694
        %2046 = vmatpush1.msra.mxu0 %v693
        %2047 = vmatprep.subr.mxu0 %v698
        %2048 = vmatpush1.msra.mxu0 %v697
        %2049 = vmatprep.mubr.f32.mxu0 %v1766
        %2050 = vmatmul.mubr.f32.gmra.mrb[0].mxu0 %v1765
        %v2051 = vpop.f32.mrb[0].mxu0
        %v2052 = vadd.f32 0.0, %v2051
        %v2053 = vpop.f32.mrb[0].mxu0
        %v2054 = vadd.f32 0.0, %v2053
        %2055 = vdwg.mxu0
        %2056 = vmatprep.subr.mxu0 %v576
        %2057 = vmatpush1.msra.mxu0 %v575
        %2058 = vmatprep.subr.mxu0 %v580
        %2059 = vmatpush1.msra.mxu0 %v579
        %2060 = vmatprep.subr.mxu0 %v584
        %2061 = vmatpush1.msra.mxu0 %v583
        %2062 = vmatprep.subr.mxu0 %v588
        %2063 = vmatpush1.msra.mxu0 %v587
        %2064 = vmatprep.subr.mxu0 %v592
        %2065 = vmatpush1.msra.mxu0 %v591
        %2066 = vmatprep.subr.mxu0 %v596
        %2067 = vmatpush1.msra.mxu0 %v595
        %2068 = vmatprep.subr.mxu0 %v600
        %2069 = vmatpush1.msra.mxu0 %v599
        %2070 = vmatprep.subr.mxu0 %v604
        %2071 = vmatpush1.msra.mxu0 %v603
        %2072 = vmatprep.subr.mxu0 %v608
        %2073 = vmatpush1.msra.mxu0 %v607
        %2074 = vmatprep.subr.mxu0 %v612
        %2075 = vmatpush1.msra.mxu0 %v611
        %2076 = vmatprep.subr.mxu0 %v616
        %2077 = vmatpush1.msra.mxu0 %v615
        %2078 = vmatprep.subr.mxu0 %v620
        %2079 = vmatpush1.msra.mxu0 %v619
        %2080 = vmatprep.subr.mxu0 %v624
        %2081 = vmatpush1.msra.mxu0 %v623
        %2082 = vmatprep.subr.mxu0 %v628
        %2083 = vmatpush1.msra.mxu0 %v627
        %2084 = vmatprep.subr.mxu0 %v632
        %2085 = vmatpush1.msra.mxu0 %v631
        %2086 = vmatprep.subr.mxu0 %v636
        %2087 = vmatpush1.msra.mxu0 %v635
        %2088 = vmatprep.subr.mxu0 %v640
        %2089 = vmatpush1.msra.mxu0 %v639
        %2090 = vmatprep.subr.mxu0 %v644
        %2091 = vmatpush1.msra.mxu0 %v643
        %2092 = vmatprep.subr.mxu0 %v648
        %2093 = vmatpush1.msra.mxu0 %v647
        %2094 = vmatprep.subr.mxu0 %v652
        %2095 = vmatpush1.msra.mxu0 %v651
        %2096 = vmatprep.subr.mxu0 %v656
        %2097 = vmatpush1.msra.mxu0 %v655
        %2098 = vmatprep.subr.mxu0 %v660
        %2099 = vmatpush1.msra.mxu0 %v659
        %2100 = vmatprep.subr.mxu0 %v664
        %2101 = vmatpush1.msra.mxu0 %v663
        %2102 = vmatprep.subr.mxu0 %v668
        %2103 = vmatpush1.msra.mxu0 %v667
        %2104 = vmatprep.subr.mxu0 %v672
        %2105 = vmatpush1.msra.mxu0 %v671
        %2106 = vmatprep.subr.mxu0 %v676
        %2107 = vmatpush1.msra.mxu0 %v675
        %2108 = vmatprep.subr.mxu0 %v680
        %2109 = vmatpush1.msra.mxu0 %v679
        %2110 = vmatprep.subr.mxu0 %v684
        %2111 = vmatpush1.msra.mxu0 %v683
        %2112 = vmatprep.subr.mxu0 %v688
        %2113 = vmatpush1.msra.mxu0 %v687
        %2114 = vmatprep.subr.mxu0 %v692
        %2115 = vmatpush1.msra.mxu0 %v691
        %2116 = vmatprep.subr.mxu0 %v696
        %2117 = vmatpush1.msra.mxu0 %v695
        %2118 = vmatprep.subr.mxu0 %v700
        %2119 = vmatpush1.msra.mxu0 %v699
        %2120 = vmatprep.mubr.f32.mxu0 %v1766
        %2121 = vmatmul.mubr.f32.gmra.mrb[0].mxu0 %v1765
        %v2122 = vpop.f32.mrb[0].mxu0
        %v2123 = vadd.f32 0.0, %v2122
        %v2124 = vpop.f32.mrb[0].mxu0
        %v2125 = vadd.f32 0.0, %v2124
        %2126 = vdwg.mxu0
        %v2127 = vadd.f32 %v1839, %v2052
        %v2128 = vadd.f32 %v1841, %v2054
        %v2129 = vxor.u32 %v2127, 2147483648
        %v2130 = vxor.u32 %v2128, 2147483648
        %v2131 = vmul.f32 %v2129, 1.442695
        %v2132 = vpow.pop %v2131
        %v2133 = vmul.f32 %v2130, 1.442695
        %v2134 = vpow.pop %v2133
        %v2135 = vadd.f32 %v2132, 1.0
        %v2136 = vadd.f32 %v2134, 1.0
        %v2137 = vrcp.pop %v2135
        %v2138 = vmul.f32 1.0, %v2137
        %v2139 = vrcp.pop %v2136
        %v2140 = vmul.f32 1.0, %v2139
        %v2141 = vadd.f32 %v1910, %v2123
        %v2142 = vadd.f32 %v1912, %v2125
        %v2143 = vxor.u32 %v2141, 2147483648
        %v2144 = vxor.u32 %v2142, 2147483648
        %v2145 = vmul.f32 %v2143, 1.442695
        %v2146 = vpow.pop %v2145
        %v2147 = vmul.f32 %v2144, 1.442695
        %v2148 = vpow.pop %v2147
        %v2149 = vadd.f32 %v2146, 1.0
        %v2150 = vadd.f32 %v2148, 1.0
        %v2151 = vrcp.pop %v2149
        %v2152 = vmul.f32 1.0, %v2151
        %v2153 = vrcp.pop %v2150
        %v2154 = vmul.f32 1.0, %v2153
        %2155 = vmatprep.subr.mxu0 %v702
        %2156 = vmatpush1.msra.mxu0 %v701
        %2157 = vmatprep.subr.mxu0 %v704
        %2158 = vmatpush1.msra.mxu0 %v703
        %2159 = vmatprep.subr.mxu0 %v706
        %2160 = vmatpush1.msra.mxu0 %v705
        %2161 = vmatprep.subr.mxu0 %v708
        %2162 = vmatpush1.msra.mxu0 %v707
        %2163 = vmatprep.subr.mxu0 %v710
        %2164 = vmatpush1.msra.mxu0 %v709
        %2165 = vmatprep.subr.mxu0 %v712
        %2166 = vmatpush1.msra.mxu0 %v711
        %2167 = vmatprep.subr.mxu0 %v714
        %2168 = vmatpush1.msra.mxu0 %v713
        %2169 = vmatprep.subr.mxu0 %v716
        %2170 = vmatpush1.msra.mxu0 %v715
        %2171 = vmatprep.subr.mxu0 %v718
        %2172 = vmatpush1.msra.mxu0 %v717
        %2173 = vmatprep.subr.mxu0 %v720
        %2174 = vmatpush1.msra.mxu0 %v719
        %2175 = vmatprep.subr.mxu0 %v722
        %2176 = vmatpush1.msra.mxu0 %v721
        %2177 = vmatprep.subr.mxu0 %v724
        %2178 = vmatpush1.msra.mxu0 %v723
        %2179 = vmatprep.subr.mxu0 %v726
        %2180 = vmatpush1.msra.mxu0 %v725
        %2181 = vmatprep.subr.mxu0 %v728
        %2182 = vmatpush1.msra.mxu0 %v727
        %2183 = vmatprep.subr.mxu0 %v730
        %2184 = vmatpush1.msra.mxu0 %v729
        %2185 = vmatprep.subr.mxu0 %v732
        %2186 = vmatpush1.msra.mxu0 %v731
        %2187 = vmatprep.subr.mxu0 %v734
        %2188 = vmatpush1.msra.mxu0 %v733
        %2189 = vmatprep.subr.mxu0 %v736
        %2190 = vmatpush1.msra.mxu0 %v735
        %2191 = vmatprep.subr.mxu0 %v738
        %2192 = vmatpush1.msra.mxu0 %v737
        %2193 = vmatprep.subr.mxu0 %v740
        %2194 = vmatpush1.msra.mxu0 %v739
        %2195 = vmatprep.subr.mxu0 %v742
        %2196 = vmatpush1.msra.mxu0 %v741
        %2197 = vmatprep.subr.mxu0 %v744
        %2198 = vmatpush1.msra.mxu0 %v743
        %2199 = vmatprep.subr.mxu0 %v746
        %2200 = vmatpush1.msra.mxu0 %v745
        %2201 = vmatprep.subr.mxu0 %v748
        %2202 = vmatpush1.msra.mxu0 %v747
        %2203 = vmatprep.subr.mxu0 %v750
        %2204 = vmatpush1.msra.mxu0 %v749
        %2205 = vmatprep.subr.mxu0 %v752
        %2206 = vmatpush1.msra.mxu0 %v751
        %2207 = vmatprep.subr.mxu0 %v754
        %2208 = vmatpush1.msra.mxu0 %v753
        %2209 = vmatprep.subr.mxu0 %v756
        %2210 = vmatpush1.msra.mxu0 %v755
        %2211 = vmatprep.subr.mxu0 %v758
        %2212 = vmatpush1.msra.mxu0 %v757
        %2213 = vmatprep.subr.mxu0 %v760
        %2214 = vmatpush1.msra.mxu0 %v759
        %2215 = vmatprep.subr.mxu0 %v762
        %2216 = vmatpush1.msra.mxu0 %v761
        %2217 = vmatprep.subr.mxu0 %v764
        %2218 = vmatpush1.msra.mxu0 %v763
        %2219 = vmatprep.mubr.f32.mxu0 %v1766
        %2220 = vmatmul.mubr.f32.gmra.mrb[0].mxu0 %v1765
        %v2221 = vpop.f32.mrb[0].mxu0
        %v2222 = vadd.f32 %v802, %v2221
        %v2223 = vpop.f32.mrb[0].mxu0
        %v2224 = vadd.f32 %v806, %v2223
        %2225 = vdwg.mxu0
        %v2226 = vmul.f32 %v2138, %v2222
        %v2227 = vmul.f32 %v2140, %v2224
        %v2228 = vadd.f32 %v1981, %v2226
        %v2229 = vadd.f32 %v1983, %v2227
        %v2230 = vtanh.pop %v2228
        %v2231 = vtanh.pop %v2229
        %v2232 = vsub.f32 1.0, %v2152
        %v2233 = vsub.f32 1.0, %v2154
        %v2234 = vmul.f32 %v2232, %v2230
        %v2235 = vmul.f32 %v2233, %v2231
        %v2236 = vmul.f32 %v2152, %v1765
        %v2237 = vmul.f32 %v2154, %v1766
        %v2238 = vadd.f32 %v2234, %v2236
        %v2239 = vadd.f32 %v2235, %v2237
        %s2240 = scalar_lea.vmem %s362, 6
        %v2241 = vld [vmem:[%s2240] sm:$0x3]
        %v2243 = vsel %vm811, %v2241, 0
        %2245 = vmatprep.subr.mxu0 %v562
        %2246 = vmatpush1.msra.mxu0 %v561
        %2247 = vmatprep.subr.mxu0 %v568
        %2248 = vmatpush1.msra.mxu0 %v567
        %2249 = vmatprep.subr.mxu0 0.0
        %2250 = vmatpush1.msra.mxu0 0.0
        %2251 = vmatprep.subr.mxu0 0.0
        %2252 = vmatpush1.msra.mxu0 0.0
        %2253 = vmatprep.subr.mxu0 0.0
        %2254 = vmatpush1.msra.mxu0 0.0
        %2255 = vmatprep.subr.mxu0 0.0
        %2256 = vmatpush1.msra.mxu0 0.0
        %2257 = vmatprep.subr.mxu0 0.0
        %2258 = vmatpush1.msra.mxu0 0.0
        %2259 = vmatprep.subr.mxu0 0.0
        %2260 = vmatpush1.msra.mxu0 0.0
        %2261 = vmatprep.subr.mxu0 0.0
        %2262 = vmatpush1.msra.mxu0 0.0
        %2263 = vmatprep.subr.mxu0 0.0
        %2264 = vmatpush1.msra.mxu0 0.0
        %2265 = vmatprep.subr.mxu0 0.0
        %2266 = vmatpush1.msra.mxu0 0.0
        %2267 = vmatprep.subr.mxu0 0.0
        %2268 = vmatpush1.msra.mxu0 0.0
        %2269 = vmatprep.subr.mxu0 0.0
        %2270 = vmatpush1.msra.mxu0 0.0
        %2271 = vmatprep.subr.mxu0 0.0
        %2272 = vmatpush1.msra.mxu0 0.0
        %2273 = vmatprep.subr.mxu0 0.0
        %2274 = vmatpush1.msra.mxu0 0.0
        %2275 = vmatprep.subr.mxu0 0.0
        %2276 = vmatpush1.msra.mxu0 0.0
        %2277 = vmatprep.subr.mxu0 0.0
        %2278 = vmatpush1.msra.mxu0 0.0
        %2279 = vmatprep.subr.mxu0 0.0
        %2280 = vmatpush1.msra.mxu0 0.0
        %2281 = vmatprep.subr.mxu0 0.0
        %2282 = vmatpush1.msra.mxu0 0.0
        %2283 = vmatprep.subr.mxu0 0.0
        %2284 = vmatpush1.msra.mxu0 0.0
        %2285 = vmatprep.subr.mxu0 0.0
        %2286 = vmatpush1.msra.mxu0 0.0
        %2287 = vmatprep.subr.mxu0 0.0
        %2288 = vmatpush1.msra.mxu0 0.0
        %2289 = vmatprep.subr.mxu0 0.0
        %2290 = vmatpush1.msra.mxu0 0.0
        %2291 = vmatprep.subr.mxu0 0.0
        %2292 = vmatpush1.msra.mxu0 0.0
        %2293 = vmatprep.subr.mxu0 0.0
        %2294 = vmatpush1.msra.mxu0 0.0
        %2295 = vmatprep.subr.mxu0 0.0
        %2296 = vmatpush1.msra.mxu0 0.0
        %2297 = vmatprep.subr.mxu0 0.0
        %2298 = vmatpush1.msra.mxu0 0.0
        %2299 = vmatprep.subr.mxu0 0.0
        %2300 = vmatpush1.msra.mxu0 0.0
        %2301 = vmatprep.subr.mxu0 0.0
        %2302 = vmatpush1.msra.mxu0 0.0
        %2303 = vmatprep.subr.mxu0 0.0
        %2304 = vmatpush1.msra.mxu0 0.0
        %2305 = vmatprep.subr.mxu0 0.0
        %2306 = vmatpush1.msra.mxu0 0.0
        %2307 = vmatprep.subr.mxu0 0.0
        %2308 = vmatpush1.msra.mxu0 0.0
        %2309 = vmatprep.mubr.f32.mxu0 0.0
        %2310 = vmatmul.mubr.f32.gmra.mrb[0].mxu0 %v2243
        %v2311 = vpop.f32.mrb[0].mxu0
        %v2312 = vadd.f32 %v770, %v2311
        %v2313 = vpop.f32.mrb[0].mxu0
        %v2314 = vadd.f32 %v774, %v2313
        %2315 = vdwg.mxu0
        %2316 = vmatprep.subr.mxu0 %v564
        %2317 = vmatpush1.msra.mxu0 %v563
        %2318 = vmatprep.subr.mxu0 %v570
        %2319 = vmatpush1.msra.mxu0 %v569
        %2320 = vmatprep.subr.mxu0 0.0
        %2321 = vmatpush1.msra.mxu0 0.0
        %2322 = vmatprep.subr.mxu0 0.0
        %2323 = vmatpush1.msra.mxu0 0.0
        %2324 = vmatprep.subr.mxu0 0.0
        %2325 = vmatpush1.msra.mxu0 0.0
        %2326 = vmatprep.subr.mxu0 0.0
        %2327 = vmatpush1.msra.mxu0 0.0
        %2328 = vmatprep.subr.mxu0 0.0
        %2329 = vmatpush1.msra.mxu0 0.0
        %2330 = vmatprep.subr.mxu0 0.0
        %2331 = vmatpush1.msra.mxu0 0.0
        %2332 = vmatprep.subr.mxu0 0.0
        %2333 = vmatpush1.msra.mxu0 0.0
        %2334 = vmatprep.subr.mxu0 0.0
        %2335 = vmatpush1.msra.mxu0 0.0
        %2336 = vmatprep.subr.mxu0 0.0
        %2337 = vmatpush1.msra.mxu0 0.0
        %2338 = vmatprep.subr.mxu0 0.0
        %2339 = vmatpush1.msra.mxu0 0.0
        %2340 = vmatprep.subr.mxu0 0.0
        %2341 = vmatpush1.msra.mxu0 0.0
        %2342 = vmatprep.subr.mxu0 0.0
        %2343 = vmatpush1.msra.mxu0 0.0
        %2344 = vmatprep.subr.mxu0 0.0
        %2345 = vmatpush1.msra.mxu0 0.0
        %2346 = vmatprep.subr.mxu0 0.0
        %2347 = vmatpush1.msra.mxu0 0.0
        %2348 = vmatprep.subr.mxu0 0.0
        %2349 = vmatpush1.msra.mxu0 0.0
        %2350 = vmatprep.subr.mxu0 0.0
        %2351 = vmatpush1.msra.mxu0 0.0
        %2352 = vmatprep.subr.mxu0 0.0
        %2353 = vmatpush1.msra.mxu0 0.0
        %2354 = vmatprep.subr.mxu0 0.0
        %2355 = vmatpush1.msra.mxu0 0.0
        %2356 = vmatprep.subr.mxu0 0.0
        %2357 = vmatpush1.msra.mxu0 0.0
        %2358 = vmatprep.subr.mxu0 0.0
        %2359 = vmatpush1.msra.mxu0 0.0
        %2360 = vmatprep.subr.mxu0 0.0
        %2361 = vmatpush1.msra.mxu0 0.0
        %2362 = vmatprep.subr.mxu0 0.0
        %2363 = vmatpush1.msra.mxu0 0.0
        %2364 = vmatprep.subr.mxu0 0.0
        %2365 = vmatpush1.msra.mxu0 0.0
        %2366 = vmatprep.subr.mxu0 0.0
        %2367 = vmatpush1.msra.mxu0 0.0
        %2368 = vmatprep.subr.mxu0 0.0
        %2369 = vmatpush1.msra.mxu0 0.0
        %2370 = vmatprep.subr.mxu0 0.0
        %2371 = vmatpush1.msra.mxu0 0.0
        %2372 = vmatprep.subr.mxu0 0.0
        %2373 = vmatpush1.msra.mxu0 0.0
        %2374 = vmatprep.subr.mxu0 0.0
        %2375 = vmatpush1.msra.mxu0 0.0
        %2376 = vmatprep.subr.mxu0 0.0
        %2377 = vmatpush1.msra.mxu0 0.0
        %2378 = vmatprep.subr.mxu0 0.0
        %2379 = vmatpush1.msra.mxu0 0.0
        %2380 = vmatprep.mubr.f32.mxu0 0.0
        %2381 = vmatmul.mubr.f32.gmra.mrb[0].mxu0 %v2243
        %v2382 = vpop.f32.mrb[0].mxu0
        %v2383 = vadd.f32 %v778, %v2382
        %v2384 = vpop.f32.mrb[0].mxu0
        %v2385 = vadd.f32 %v782, %v2384
        %2386 = vdwg.mxu0
        %2387 = vmatprep.subr.mxu0 %v566
        %2388 = vmatpush1.msra.mxu0 %v565
        %2389 = vmatprep.subr.mxu0 %v572
        %2390 = vmatpush1.msra.mxu0 %v571
        %2391 = vmatprep.subr.mxu0 0.0
        %2392 = vmatpush1.msra.mxu0 0.0
        %2393 = vmatprep.subr.mxu0 0.0
        %2394 = vmatpush1.msra.mxu0 0.0
        %2395 = vmatprep.subr.mxu0 0.0
        %2396 = vmatpush1.msra.mxu0 0.0
        %2397 = vmatprep.subr.mxu0 0.0
        %2398 = vmatpush1.msra.mxu0 0.0
        %2399 = vmatprep.subr.mxu0 0.0
        %2400 = vmatpush1.msra.mxu0 0.0
        %2401 = vmatprep.subr.mxu0 0.0
        %2402 = vmatpush1.msra.mxu0 0.0
        %2403 = vmatprep.subr.mxu0 0.0
        %2404 = vmatpush1.msra.mxu0 0.0
        %2405 = vmatprep.subr.mxu0 0.0
        %2406 = vmatpush1.msra.mxu0 0.0
        %2407 = vmatprep.subr.mxu0 0.0
        %2408 = vmatpush1.msra.mxu0 0.0
        %2409 = vmatprep.subr.mxu0 0.0
        %2410 = vmatpush1.msra.mxu0 0.0
        %2411 = vmatprep.subr.mxu0 0.0
        %2412 = vmatpush1.msra.mxu0 0.0
        %2413 = vmatprep.subr.mxu0 0.0
        %2414 = vmatpush1.msra.mxu0 0.0
        %2415 = vmatprep.subr.mxu0 0.0
        %2416 = vmatpush1.msra.mxu0 0.0
        %2417 = vmatprep.subr.mxu0 0.0
        %2418 = vmatpush1.msra.mxu0 0.0
        %2419 = vmatprep.subr.mxu0 0.0
        %2420 = vmatpush1.msra.mxu0 0.0
        %2421 = vmatprep.subr.mxu0 0.0
        %2422 = vmatpush1.msra.mxu0 0.0
        %2423 = vmatprep.subr.mxu0 0.0
        %2424 = vmatpush1.msra.mxu0 0.0
        %2425 = vmatprep.subr.mxu0 0.0
        %2426 = vmatpush1.msra.mxu0 0.0
        %2427 = vmatprep.subr.mxu0 0.0
        %2428 = vmatpush1.msra.mxu0 0.0
        %2429 = vmatprep.subr.mxu0 0.0
        %2430 = vmatpush1.msra.mxu0 0.0
        %2431 = vmatprep.subr.mxu0 0.0
        %2432 = vmatpush1.msra.mxu0 0.0
        %2433 = vmatprep.subr.mxu0 0.0
        %2434 = vmatpush1.msra.mxu0 0.0
        %2435 = vmatprep.subr.mxu0 0.0
        %2436 = vmatpush1.msra.mxu0 0.0
        %2437 = vmatprep.subr.mxu0 0.0
        %2438 = vmatpush1.msra.mxu0 0.0
        %2439 = vmatprep.subr.mxu0 0.0
        %2440 = vmatpush1.msra.mxu0 0.0
        %2441 = vmatprep.subr.mxu0 0.0
        %2442 = vmatpush1.msra.mxu0 0.0
        %2443 = vmatprep.subr.mxu0 0.0
        %2444 = vmatpush1.msra.mxu0 0.0
        %2445 = vmatprep.subr.mxu0 0.0
        %2446 = vmatpush1.msra.mxu0 0.0
        %2447 = vmatprep.subr.mxu0 0.0
        %2448 = vmatpush1.msra.mxu0 0.0
        %2449 = vmatprep.subr.mxu0 0.0
        %2450 = vmatpush1.msra.mxu0 0.0
        %2451 = vmatprep.mubr.f32.mxu0 0.0
        %2452 = vmatmul.mubr.f32.gmra.mrb[0].mxu0 %v2243
        %v2453 = vpop.f32.mrb[0].mxu0
        %v2454 = vadd.f32 %v786, %v2453
        %v2455 = vpop.f32.mrb[0].mxu0
        %v2456 = vadd.f32 %v790, %v2455
        %2457 = vdwg.mxu0
        %2458 = vmatprep.subr.mxu0 %v574
        %2459 = vmatpush1.msra.mxu0 %v573
        %2460 = vmatprep.subr.mxu0 %v578
        %2461 = vmatpush1.msra.mxu0 %v577
        %2462 = vmatprep.subr.mxu0 %v582
        %2463 = vmatpush1.msra.mxu0 %v581
        %2464 = vmatprep.subr.mxu0 %v586
        %2465 = vmatpush1.msra.mxu0 %v585
        %2466 = vmatprep.subr.mxu0 %v590
        %2467 = vmatpush1.msra.mxu0 %v589
        %2468 = vmatprep.subr.mxu0 %v594
        %2469 = vmatpush1.msra.mxu0 %v593
        %2470 = vmatprep.subr.mxu0 %v598
        %2471 = vmatpush1.msra.mxu0 %v597
        %2472 = vmatprep.subr.mxu0 %v602
        %2473 = vmatpush1.msra.mxu0 %v601
        %2474 = vmatprep.subr.mxu0 %v606
        %2475 = vmatpush1.msra.mxu0 %v605
        %2476 = vmatprep.subr.mxu0 %v610
        %2477 = vmatpush1.msra.mxu0 %v609
        %2478 = vmatprep.subr.mxu0 %v614
        %2479 = vmatpush1.msra.mxu0 %v613
        %2480 = vmatprep.subr.mxu0 %v618
        %2481 = vmatpush1.msra.mxu0 %v617
        %2482 = vmatprep.subr.mxu0 %v622
        %2483 = vmatpush1.msra.mxu0 %v621
        %2484 = vmatprep.subr.mxu0 %v626
        %2485 = vmatpush1.msra.mxu0 %v625
        %2486 = vmatprep.subr.mxu0 %v630
        %2487 = vmatpush1.msra.mxu0 %v629
        %2488 = vmatprep.subr.mxu0 %v634
        %2489 = vmatpush1.msra.mxu0 %v633
        %2490 = vmatprep.subr.mxu0 %v638
        %2491 = vmatpush1.msra.mxu0 %v637
        %2492 = vmatprep.subr.mxu0 %v642
        %2493 = vmatpush1.msra.mxu0 %v641
        %2494 = vmatprep.subr.mxu0 %v646
        %2495 = vmatpush1.msra.mxu0 %v645
        %2496 = vmatprep.subr.mxu0 %v650
        %2497 = vmatpush1.msra.mxu0 %v649
        %2498 = vmatprep.subr.mxu0 %v654
        %2499 = vmatpush1.msra.mxu0 %v653
        %2500 = vmatprep.subr.mxu0 %v658
        %2501 = vmatpush1.msra.mxu0 %v657
        %2502 = vmatprep.subr.mxu0 %v662
        %2503 = vmatpush1.msra.mxu0 %v661
        %2504 = vmatprep.subr.mxu0 %v666
        %2505 = vmatpush1.msra.mxu0 %v665
        %2506 = vmatprep.subr.mxu0 %v670
        %2507 = vmatpush1.msra.mxu0 %v669
        %2508 = vmatprep.subr.mxu0 %v674
        %2509 = vmatpush1.msra.mxu0 %v673
        %2510 = vmatprep.subr.mxu0 %v678
        %2511 = vmatpush1.msra.mxu0 %v677
        %2512 = vmatprep.subr.mxu0 %v682
        %2513 = vmatpush1.msra.mxu0 %v681
        %2514 = vmatprep.subr.mxu0 %v686
        %2515 = vmatpush1.msra.mxu0 %v685
        %2516 = vmatprep.subr.mxu0 %v690
        %2517 = vmatpush1.msra.mxu0 %v689
        %2518 = vmatprep.subr.mxu0 %v694
        %2519 = vmatpush1.msra.mxu0 %v693
        %2520 = vmatprep.subr.mxu0 %v698
        %2521 = vmatpush1.msra.mxu0 %v697
        %2522 = vmatprep.mubr.f32.mxu0 %v2239
        %2523 = vmatmul.mubr.f32.gmra.mrb[0].mxu0 %v2238
        %v2524 = vpop.f32.mrb[0].mxu0
        %v2525 = vadd.f32 0.0, %v2524
        %v2526 = vpop.f32.mrb[0].mxu0
        %v2527 = vadd.f32 0.0, %v2526
        %2528 = vdwg.mxu0
        %2529 = vmatprep.subr.mxu0 %v576
        %2530 = vmatpush1.msra.mxu0 %v575
        %2531 = vmatprep.subr.mxu0 %v580
        %2532 = vmatpush1.msra.mxu0 %v579
        %2533 = vmatprep.subr.mxu0 %v584
        %2534 = vmatpush1.msra.mxu0 %v583
        %2535 = vmatprep.subr.mxu0 %v588
        %2536 = vmatpush1.msra.mxu0 %v587
        %2537 = vmatprep.subr.mxu0 %v592
        %2538 = vmatpush1.msra.mxu0 %v591
        %2539 = vmatprep.subr.mxu0 %v596
        %2540 = vmatpush1.msra.mxu0 %v595
        %2541 = vmatprep.subr.mxu0 %v600
        %2542 = vmatpush1.msra.mxu0 %v599
        %2543 = vmatprep.subr.mxu0 %v604
        %2544 = vmatpush1.msra.mxu0 %v603
        %2545 = vmatprep.subr.mxu0 %v608
        %2546 = vmatpush1.msra.mxu0 %v607
        %2547 = vmatprep.subr.mxu0 %v612
        %2548 = vmatpush1.msra.mxu0 %v611
        %2549 = vmatprep.subr.mxu0 %v616
        %2550 = vmatpush1.msra.mxu0 %v615
        %2551 = vmatprep.subr.mxu0 %v620
        %2552 = vmatpush1.msra.mxu0 %v619
        %2553 = vmatprep.subr.mxu0 %v624
        %2554 = vmatpush1.msra.mxu0 %v623
        %2555 = vmatprep.subr.mxu0 %v628
        %2556 = vmatpush1.msra.mxu0 %v627
        %2557 = vmatprep.subr.mxu0 %v632
        %2558 = vmatpush1.msra.mxu0 %v631
        %2559 = vmatprep.subr.mxu0 %v636
        %2560 = vmatpush1.msra.mxu0 %v635
        %2561 = vmatprep.subr.mxu0 %v640
        %2562 = vmatpush1.msra.mxu0 %v639
        %2563 = vmatprep.subr.mxu0 %v644
        %2564 = vmatpush1.msra.mxu0 %v643
        %2565 = vmatprep.subr.mxu0 %v648
        %2566 = vmatpush1.msra.mxu0 %v647
        %2567 = vmatprep.subr.mxu0 %v652
        %2568 = vmatpush1.msra.mxu0 %v651
        %2569 = vmatprep.subr.mxu0 %v656
        %2570 = vmatpush1.msra.mxu0 %v655
        %2571 = vmatprep.subr.mxu0 %v660
        %2572 = vmatpush1.msra.mxu0 %v659
        %2573 = vmatprep.subr.mxu0 %v664
        %2574 = vmatpush1.msra.mxu0 %v663
        %2575 = vmatprep.subr.mxu0 %v668
        %2576 = vmatpush1.msra.mxu0 %v667
        %2577 = vmatprep.subr.mxu0 %v672
        %2578 = vmatpush1.msra.mxu0 %v671
        %2579 = vmatprep.subr.mxu0 %v676
        %2580 = vmatpush1.msra.mxu0 %v675
        %2581 = vmatprep.subr.mxu0 %v680
        %2582 = vmatpush1.msra.mxu0 %v679
        %2583 = vmatprep.subr.mxu0 %v684
        %2584 = vmatpush1.msra.mxu0 %v683
        %2585 = vmatprep.subr.mxu0 %v688
        %2586 = vmatpush1.msra.mxu0 %v687
        %2587 = vmatprep.subr.mxu0 %v692
        %2588 = vmatpush1.msra.mxu0 %v691
        %2589 = vmatprep.subr.mxu0 %v696
        %2590 = vmatpush1.msra.mxu0 %v695
        %2591 = vmatprep.subr.mxu0 %v700
        %2592 = vmatpush1.msra.mxu0 %v699
        %2593 = vmatprep.mubr.f32.mxu0 %v2239
        %2594 = vmatmul.mubr.f32.gmra.mrb[0].mxu0 %v2238
        %v2595 = vpop.f32.mrb[0].mxu0
        %v2596 = vadd.f32 0.0, %v2595
        %v2597 = vpop.f32.mrb[0].mxu0
        %v2598 = vadd.f32 0.0, %v2597
        %2599 = vdwg.mxu0
        %v2600 = vadd.f32 %v2312, %v2525
        %v2601 = vadd.f32 %v2314, %v2527
        %v2602 = vxor.u32 %v2600, 2147483648
        %v2603 = vxor.u32 %v2601, 2147483648
        %v2604 = vmul.f32 %v2602, 1.442695
        %v2605 = vpow.pop %v2604
        %v2606 = vmul.f32 %v2603, 1.442695
        %v2607 = vpow.pop %v2606
        %v2608 = vadd.f32 %v2605, 1.0
        %v2609 = vadd.f32 %v2607, 1.0
        %v2610 = vrcp.pop %v2608
        %v2611 = vmul.f32 1.0, %v2610
        %v2612 = vrcp.pop %v2609
        %v2613 = vmul.f32 1.0, %v2612
        %v2614 = vadd.f32 %v2383, %v2596
        %v2615 = vadd.f32 %v2385, %v2598
        %v2616 = vxor.u32 %v2614, 2147483648
        %v2617 = vxor.u32 %v2615, 2147483648
        %v2618 = vmul.f32 %v2616, 1.442695
        %v2619 = vpow.pop %v2618
        %v2620 = vmul.f32 %v2617, 1.442695
        %v2621 = vpow.pop %v2620
        %v2622 = vadd.f32 %v2619, 1.0
        %v2623 = vadd.f32 %v2621, 1.0
        %v2624 = vrcp.pop %v2622
        %v2625 = vmul.f32 1.0, %v2624
        %v2626 = vrcp.pop %v2623
        %v2627 = vmul.f32 1.0, %v2626
        %2628 = vmatprep.subr.mxu0 %v702
        %2629 = vmatpush1.msra.mxu0 %v701
        %2630 = vmatprep.subr.mxu0 %v704
        %2631 = vmatpush1.msra.mxu0 %v703
        %2632 = vmatprep.subr.mxu0 %v706
        %2633 = vmatpush1.msra.mxu0 %v705
        %2634 = vmatprep.subr.mxu0 %v708
        %2635 = vmatpush1.msra.mxu0 %v707
        %2636 = vmatprep.subr.mxu0 %v710
        %2637 = vmatpush1.msra.mxu0 %v709
        %2638 = vmatprep.subr.mxu0 %v712
        %2639 = vmatpush1.msra.mxu0 %v711
        %2640 = vmatprep.subr.mxu0 %v714
        %2641 = vmatpush1.msra.mxu0 %v713
        %2642 = vmatprep.subr.mxu0 %v716
        %2643 = vmatpush1.msra.mxu0 %v715
        %2644 = vmatprep.subr.mxu0 %v718
        %2645 = vmatpush1.msra.mxu0 %v717
        %2646 = vmatprep.subr.mxu0 %v720
        %2647 = vmatpush1.msra.mxu0 %v719
        %2648 = vmatprep.subr.mxu0 %v722
        %2649 = vmatpush1.msra.mxu0 %v721
        %2650 = vmatprep.subr.mxu0 %v724
        %2651 = vmatpush1.msra.mxu0 %v723
        %2652 = vmatprep.subr.mxu0 %v726
        %2653 = vmatpush1.msra.mxu0 %v725
        %2654 = vmatprep.subr.mxu0 %v728
        %2655 = vmatpush1.msra.mxu0 %v727
        %2656 = vmatprep.subr.mxu0 %v730
        %2657 = vmatpush1.msra.mxu0 %v729
        %2658 = vmatprep.subr.mxu0 %v732
        %2659 = vmatpush1.msra.mxu0 %v731
        %2660 = vmatprep.subr.mxu0 %v734
        %2661 = vmatpush1.msra.mxu0 %v733
        %2662 = vmatprep.subr.mxu0 %v736
        %2663 = vmatpush1.msra.mxu0 %v735
        %2664 = vmatprep.subr.mxu0 %v738
        %2665 = vmatpush1.msra.mxu0 %v737
        %2666 = vmatprep.subr.mxu0 %v740
        %2667 = vmatpush1.msra.mxu0 %v739
        %2668 = vmatprep.subr.mxu0 %v742
        %2669 = vmatpush1.msra.mxu0 %v741
        %2670 = vmatprep.subr.mxu0 %v744
        %2671 = vmatpush1.msra.mxu0 %v743
        %2672 = vmatprep.subr.mxu0 %v746
        %2673 = vmatpush1.msra.mxu0 %v745
        %2674 = vmatprep.subr.mxu0 %v748
        %2675 = vmatpush1.msra.mxu0 %v747
        %2676 = vmatprep.subr.mxu0 %v750
        %2677 = vmatpush1.msra.mxu0 %v749
        %2678 = vmatprep.subr.mxu0 %v752
        %2679 = vmatpush1.msra.mxu0 %v751
        %2680 = vmatprep.subr.mxu0 %v754
        %2681 = vmatpush1.msra.mxu0 %v753
        %2682 = vmatprep.subr.mxu0 %v756
        %2683 = vmatpush1.msra.mxu0 %v755
        %2684 = vmatprep.subr.mxu0 %v758
        %2685 = vmatpush1.msra.mxu0 %v757
        %2686 = vmatprep.subr.mxu0 %v760
        %2687 = vmatpush1.msra.mxu0 %v759
        %2688 = vmatprep.subr.mxu0 %v762
        %2689 = vmatpush1.msra.mxu0 %v761
        %2690 = vmatprep.subr.mxu0 %v764
        %2691 = vmatpush1.msra.mxu0 %v763
        %2692 = vmatprep.mubr.f32.mxu0 %v2239
        %2693 = vmatmul.mubr.f32.gmra.mrb[0].mxu0 %v2238
        %v2694 = vpop.f32.mrb[0].mxu0
        %v2695 = vadd.f32 %v802, %v2694
        %v2696 = vpop.f32.mrb[0].mxu0
        %v2697 = vadd.f32 %v806, %v2696
        %2698 = vdwg.mxu0
        %v2699 = vmul.f32 %v2611, %v2695
        %v2700 = vmul.f32 %v2613, %v2697
        %v2701 = vadd.f32 %v2454, %v2699
        %v2702 = vadd.f32 %v2456, %v2700
        %v2703 = vtanh.pop %v2701
        %v2704 = vtanh.pop %v2702
        %v2705 = vsub.f32 1.0, %v2625
        %v2706 = vsub.f32 1.0, %v2627
        %v2707 = vmul.f32 %v2705, %v2703
        %v2708 = vmul.f32 %v2706, %v2704
        %v2709 = vmul.f32 %v2625, %v2238
        %v2710 = vmul.f32 %v2627, %v2239
        %v2711 = vadd.f32 %v2707, %v2709
        %v2712 = vadd.f32 %v2708, %v2710
        %v2715 = vcombine.low %v2711, %v2712
        %v2717 = vunpack.c.l.s4 1983009808
        %v2718 = vunpack.c.0.s8 %v2717
        %v2719 = vlaneseq
        %v2720 = vshrl.u32 %v2719, 7
        %v2721 = vsub.s32 %v2718, %v2720
        %v2722 = vrot.slane %v2715, %v2721
        %2724 = vst [vmem:[#allocation2] sm:$0xf] %v2722
        %p2725 = scmp.eq.s32.totalorder %s26, 1
        // Predicated region
        $region119: #{actor_forward.1} parent=51 // pred_check
          %p2726 = pneg %p2725
        $region120: #{actor_forward.1} parent=51 // pred_check_branch
          %2728 = sbr.rel (%p2726) target = $region122
        $region121: #{actor_forward.1} parent=51 // pred_region
          %s2729 = smul.u32 8, 32
          %s2730 = smul.u32 %s2729, 8
          %s2731 = sshll.u32 %s2730, 4
          %2732 = dma.done [#allocation6], %s2731
          %v2733 = vld [vmem:[#allocation3] sm:$0xff]
          %v2734 = vld [vmem:[#allocation3 + $0x8] sm:$0xff]
          %v2735 = vld [vmem:[#allocation3 + $0x10] sm:$0xff]
          %v2736 = vld [vmem:[#allocation3 + $0x18] sm:$0xff]
          %v2737 = vld [vmem:[#allocation3 + $0x20] sm:$0xff]
          %v2738 = vld [vmem:[#allocation3 + $0x28] sm:$0xff]
          %v2739 = vld [vmem:[#allocation3 + $0x30] sm:$0xff]
          %v2740 = vld [vmem:[#allocation3 + $0x38] sm:$0xff]
          %v2741 = vld [vmem:[#allocation3 + $0x40] sm:$0xff]
          %v2742 = vld [vmem:[#allocation3 + $0x48] sm:$0xff]
          %v2743 = vld [vmem:[#allocation3 + $0x50] sm:$0xff]
          %v2744 = vld [vmem:[#allocation3 + $0x58] sm:$0xff]
          %v2745 = vld [vmem:[#allocation3 + $0x60] sm:$0xff]
          %v2746 = vld [vmem:[#allocation3 + $0x68] sm:$0xff]
          %v2747 = vld [vmem:[#allocation3 + $0x70] sm:$0xff]
          %v2748 = vld [vmem:[#allocation3 + $0x78] sm:$0xff]
          %v2749 = vld [vmem:[#allocation3 + $0x80] sm:$0xff]
          %v2750 = vld [vmem:[#allocation3 + $0x88] sm:$0xff]
          %v2751 = vld [vmem:[#allocation3 + $0x90] sm:$0xff]
          %v2752 = vld [vmem:[#allocation3 + $0x98] sm:$0xff]
          %v2753 = vld [vmem:[#allocation3 + $0xa0] sm:$0xff]
          %v2754 = vld [vmem:[#allocation3 + $0xa8] sm:$0xff]
          %v2755 = vld [vmem:[#allocation3 + $0xb0] sm:$0xff]
          %v2756 = vld [vmem:[#allocation3 + $0xb8] sm:$0xff]
          %v2757 = vld [vmem:[#allocation3 + $0xc0] sm:$0xff]
          %v2758 = vld [vmem:[#allocation3 + $0xc8] sm:$0xff]
          %v2759 = vld [vmem:[#allocation3 + $0xd0] sm:$0xff]
          %v2760 = vld [vmem:[#allocation3 + $0xd8] sm:$0xff]
          %v2761 = vld [vmem:[#allocation3 + $0xe0] sm:$0xff]
          %v2762 = vld [vmem:[#allocation3 + $0xe8] sm:$0xff]
          %v2763 = vld [vmem:[#allocation3 + $0xf0] sm:$0xff]
          %v2764 = vld [vmem:[#allocation3 + $0xf8] sm:$0xff]
          %v2765 = vld [vmem:[#allocation3 + $0x100] sm:$0xff]
          %v2766 = vld [vmem:[#allocation3 + $0x108] sm:$0xff]
          %v2767 = vld [vmem:[#allocation3 + $0x110] sm:$0xff]
          %v2768 = vld [vmem:[#allocation3 + $0x118] sm:$0xff]
          %v2769 = vld [vmem:[#allocation3 + $0x120] sm:$0xff]
          %v2770 = vld [vmem:[#allocation3 + $0x128] sm:$0xff]
          %v2771 = vld [vmem:[#allocation3 + $0x130] sm:$0xff]
          %v2772 = vld [vmem:[#allocation3 + $0x138] sm:$0xff]
          %v2773 = vld [vmem:[#allocation3 + $0x140] sm:$0xff]
          %v2774 = vld [vmem:[#allocation3 + $0x148] sm:$0xff]
          %v2775 = vld [vmem:[#allocation3 + $0x150] sm:$0xff]
          %v2776 = vld [vmem:[#allocation3 + $0x158] sm:$0xff]
          %v2777 = vld [vmem:[#allocation3 + $0x160] sm:$0xff]
          %v2778 = vld [vmem:[#allocation3 + $0x168] sm:$0xff]
          %v2779 = vld [vmem:[#allocation3 + $0x170] sm:$0xff]
          %v2780 = vld [vmem:[#allocation3 + $0x178] sm:$0xff]
          %v2781 = vld [vmem:[#allocation3 + $0x180] sm:$0xff]
          %v2782 = vld [vmem:[#allocation3 + $0x188] sm:$0xff]
          %v2783 = vld [vmem:[#allocation3 + $0x190] sm:$0xff]
          %v2784 = vld [vmem:[#allocation3 + $0x198] sm:$0xff]
          %v2785 = vld [vmem:[#allocation3 + $0x1a0] sm:$0xff]
          %v2786 = vld [vmem:[#allocation3 + $0x1a8] sm:$0xff]
          %v2787 = vld [vmem:[#allocation3 + $0x1b0] sm:$0xff]
          %v2788 = vld [vmem:[#allocation3 + $0x1b8] sm:$0xff]
          %v2789 = vld [vmem:[#allocation3 + $0x1c0] sm:$0xff]
          %v2790 = vld [vmem:[#allocation3 + $0x1c8] sm:$0xff]
          %v2791 = vld [vmem:[#allocation3 + $0x1d0] sm:$0xff]
          %v2792 = vld [vmem:[#allocation3 + $0x1d8] sm:$0xff]
          %v2793 = vld [vmem:[#allocation3 + $0x1e0] sm:$0xff]
          %v2794 = vld [vmem:[#allocation3 + $0x1e8] sm:$0xff]
          %v2795 = vld [vmem:[#allocation3 + $0x1f0] sm:$0xff]
          %v2796 = vld [vmem:[#allocation3 + $0x1f8] sm:$0xff]
          %v2797 = vld [vmem:[#allocation3 + $0x200] sm:$0xff]
          %v2798 = vld [vmem:[#allocation3 + $0x208] sm:$0xff]
          %v2799 = vld [vmem:[#allocation3 + $0x210] sm:$0xff]
          %v2800 = vld [vmem:[#allocation3 + $0x218] sm:$0xff]
          %v2801 = vld [vmem:[#allocation3 + $0x220] sm:$0xff]
          %v2802 = vld [vmem:[#allocation3 + $0x228] sm:$0xff]
          %v2803 = vld [vmem:[#allocation3 + $0x230] sm:$0xff]
          %v2804 = vld [vmem:[#allocation3 + $0x238] sm:$0xff]
          %v2805 = vld [vmem:[#allocation3 + $0x240] sm:$0xff]
          %v2806 = vld [vmem:[#allocation3 + $0x248] sm:$0xff]
          %v2807 = vld [vmem:[#allocation3 + $0x250] sm:$0xff]
          %v2808 = vld [vmem:[#allocation3 + $0x258] sm:$0xff]
          %v2809 = vld [vmem:[#allocation3 + $0x260] sm:$0xff]
          %v2810 = vld [vmem:[#allocation3 + $0x268] sm:$0xff]
          %v2811 = vld [vmem:[#allocation3 + $0x270] sm:$0xff]
          %v2812 = vld [vmem:[#allocation3 + $0x278] sm:$0xff]
          %v2813 = vld [vmem:[#allocation3 + $0x280] sm:$0xff]
          %v2814 = vld [vmem:[#allocation3 + $0x288] sm:$0xff]
          %v2815 = vld [vmem:[#allocation3 + $0x290] sm:$0xff]
          %v2816 = vld [vmem:[#allocation3 + $0x298] sm:$0xff]
          %v2817 = vld [vmem:[#allocation3 + $0x2a0] sm:$0xff]
          %v2818 = vld [vmem:[#allocation3 + $0x2a8] sm:$0xff]
          %v2819 = vld [vmem:[#allocation3 + $0x2b0] sm:$0xff]
          %v2820 = vld [vmem:[#allocation3 + $0x2b8] sm:$0xff]
          %v2821 = vld [vmem:[#allocation3 + $0x2c0] sm:$0xff]
          %v2822 = vld [vmem:[#allocation3 + $0x2c8] sm:$0xff]
          %v2823 = vld [vmem:[#allocation3 + $0x2d0] sm:$0xff]
          %v2824 = vld [vmem:[#allocation3 + $0x2d8] sm:$0xff]
          %v2825 = vld [vmem:[#allocation3 + $0x2e0] sm:$0xff]
          %v2826 = vld [vmem:[#allocation3 + $0x2e8] sm:$0xff]
          %v2827 = vld [vmem:[#allocation3 + $0x2f0] sm:$0xff]
          %v2828 = vld [vmem:[#allocation3 + $0x2f8] sm:$0xff]
          %v2829 = vld [vmem:[#allocation3 + $0x300] sm:$0xff]
          %v2830 = vld [vmem:[#allocation3 + $0x308] sm:$0xff]
          %v2831 = vld [vmem:[#allocation3 + $0x310] sm:$0xff]
          %v2832 = vld [vmem:[#allocation3 + $0x318] sm:$0xff]
          %v2833 = vld [vmem:[#allocation3 + $0x320] sm:$0xff]
          %v2834 = vld [vmem:[#allocation3 + $0x328] sm:$0xff]
          %v2835 = vld [vmem:[#allocation3 + $0x330] sm:$0xff]
          %v2836 = vld [vmem:[#allocation3 + $0x338] sm:$0xff]
          %v2837 = vld [vmem:[#allocation3 + $0x340] sm:$0xff]
          %v2838 = vld [vmem:[#allocation3 + $0x348] sm:$0xff]
          %v2839 = vld [vmem:[#allocation3 + $0x350] sm:$0xff]
          %v2840 = vld [vmem:[#allocation3 + $0x358] sm:$0xff]
          %v2841 = vld [vmem:[#allocation3 + $0x360] sm:$0xff]
          %v2842 = vld [vmem:[#allocation3 + $0x368] sm:$0xff]
          %v2843 = vld [vmem:[#allocation3 + $0x370] sm:$0xff]
          %v2844 = vld [vmem:[#allocation3 + $0x378] sm:$0xff]
          %v2845 = vld [vmem:[#allocation3 + $0x380] sm:$0xff]
          %v2846 = vld [vmem:[#allocation3 + $0x388] sm:$0xff]
          %v2847 = vld [vmem:[#allocation3 + $0x390] sm:$0xff]
          %v2848 = vld [vmem:[#allocation3 + $0x398] sm:$0xff]
          %v2849 = vld [vmem:[#allocation3 + $0x3a0] sm:$0xff]
          %v2850 = vld [vmem:[#allocation3 + $0x3a8] sm:$0xff]
          %v2851 = vld [vmem:[#allocation3 + $0x3b0] sm:$0xff]
          %v2852 = vld [vmem:[#allocation3 + $0x3b8] sm:$0xff]
          %v2853 = vld [vmem:[#allocation3 + $0x3c0] sm:$0xff]
          %v2854 = vld [vmem:[#allocation3 + $0x3c8] sm:$0xff]
          %v2855 = vld [vmem:[#allocation3 + $0x3d0] sm:$0xff]
          %v2856 = vld [vmem:[#allocation3 + $0x3d8] sm:$0xff]
          %v2857 = vld [vmem:[#allocation3 + $0x3e0] sm:$0xff]
          %v2858 = vld [vmem:[#allocation3 + $0x3e8] sm:$0xff]
          %v2859 = vld [vmem:[#allocation3 + $0x3f0] sm:$0xff]
          %v2860 = vld [vmem:[#allocation3 + $0x3f8] sm:$0xff]
          %v2861 = vld [vmem:[#allocation3 + $0x400] sm:$0xff]
          %v2862 = vld [vmem:[#allocation3 + $0x408] sm:$0xff]
          %v2863 = vld [vmem:[#allocation3 + $0x410] sm:$0xff]
          %v2864 = vld [vmem:[#allocation3 + $0x418] sm:$0xff]
          %v2865 = vld [vmem:[#allocation3 + $0x420] sm:$0xff]
          %v2866 = vld [vmem:[#allocation3 + $0x428] sm:$0xff]
          %v2867 = vld [vmem:[#allocation3 + $0x430] sm:$0xff]
          %v2868 = vld [vmem:[#allocation3 + $0x438] sm:$0xff]
          %v2869 = vld [vmem:[#allocation3 + $0x440] sm:$0xff]
          %v2870 = vld [vmem:[#allocation3 + $0x448] sm:$0xff]
          %v2871 = vld [vmem:[#allocation3 + $0x450] sm:$0xff]
          %v2872 = vld [vmem:[#allocation3 + $0x458] sm:$0xff]
          %v2873 = vld [vmem:[#allocation3 + $0x460] sm:$0xff]
          %v2874 = vld [vmem:[#allocation3 + $0x468] sm:$0xff]
          %v2875 = vld [vmem:[#allocation3 + $0x470] sm:$0xff]
          %v2876 = vld [vmem:[#allocation3 + $0x478] sm:$0xff]
          %v2877 = vld [vmem:[#allocation3 + $0x480] sm:$0xff]
          %v2878 = vld [vmem:[#allocation3 + $0x488] sm:$0xff]
          %v2879 = vld [vmem:[#allocation3 + $0x490] sm:$0xff]
          %v2880 = vld [vmem:[#allocation3 + $0x498] sm:$0xff]
          %v2881 = vld [vmem:[#allocation3 + $0x4a0] sm:$0xff]
          %v2882 = vld [vmem:[#allocation3 + $0x4a8] sm:$0xff]
          %v2883 = vld [vmem:[#allocation3 + $0x4b0] sm:$0xff]
          %v2884 = vld [vmem:[#allocation3 + $0x4b8] sm:$0xff]
          %v2885 = vld [vmem:[#allocation3 + $0x4c0] sm:$0xff]
          %v2886 = vld [vmem:[#allocation3 + $0x4c8] sm:$0xff]
          %v2887 = vld [vmem:[#allocation3 + $0x4d0] sm:$0xff]
          %v2888 = vld [vmem:[#allocation3 + $0x4d8] sm:$0xff]
          %v2889 = vld [vmem:[#allocation3 + $0x4e0] sm:$0xff]
          %v2890 = vld [vmem:[#allocation3 + $0x4e8] sm:$0xff]
          %v2891 = vld [vmem:[#allocation3 + $0x4f0] sm:$0xff]
          %v2892 = vld [vmem:[#allocation3 + $0x4f8] sm:$0xff]
          %v2893 = vld [vmem:[#allocation3 + $0x500] sm:$0xff]
          %v2894 = vld [vmem:[#allocation3 + $0x508] sm:$0xff]
          %v2895 = vld [vmem:[#allocation3 + $0x510] sm:$0xff]
          %v2896 = vld [vmem:[#allocation3 + $0x518] sm:$0xff]
          %v2897 = vld [vmem:[#allocation3 + $0x520] sm:$0xff]
          %v2898 = vld [vmem:[#allocation3 + $0x528] sm:$0xff]
          %v2899 = vld [vmem:[#allocation3 + $0x530] sm:$0xff]
          %v2900 = vld [vmem:[#allocation3 + $0x538] sm:$0xff]
          %v2901 = vld [vmem:[#allocation3 + $0x540] sm:$0xff]
          %v2902 = vld [vmem:[#allocation3 + $0x548] sm:$0xff]
          %v2903 = vld [vmem:[#allocation3 + $0x550] sm:$0xff]
          %v2904 = vld [vmem:[#allocation3 + $0x558] sm:$0xff]
          %v2905 = vld [vmem:[#allocation3 + $0x560] sm:$0xff]
          %v2906 = vld [vmem:[#allocation3 + $0x568] sm:$0xff]
          %v2907 = vld [vmem:[#allocation3 + $0x570] sm:$0xff]
          %v2908 = vld [vmem:[#allocation3 + $0x578] sm:$0xff]
          %v2909 = vld [vmem:[#allocation3 + $0x580] sm:$0xff]
          %v2910 = vld [vmem:[#allocation3 + $0x588] sm:$0xff]
          %v2911 = vld [vmem:[#allocation3 + $0x590] sm:$0xff]
          %v2912 = vld [vmem:[#allocation3 + $0x598] sm:$0xff]
          %v2913 = vld [vmem:[#allocation3 + $0x5a0] sm:$0xff]
          %v2914 = vld [vmem:[#allocation3 + $0x5a8] sm:$0xff]
          %v2915 = vld [vmem:[#allocation3 + $0x5b0] sm:$0xff]
          %v2916 = vld [vmem:[#allocation3 + $0x5b8] sm:$0xff]
          %v2917 = vld [vmem:[#allocation3 + $0x5c0] sm:$0xff]
          %v2918 = vld [vmem:[#allocation3 + $0x5c8] sm:$0xff]
          %v2919 = vld [vmem:[#allocation3 + $0x5d0] sm:$0xff]
          %v2920 = vld [vmem:[#allocation3 + $0x5d8] sm:$0xff]
          %v2921 = vld [vmem:[#allocation3 + $0x5e0] sm:$0xff]
          %v2922 = vld [vmem:[#allocation3 + $0x5e8] sm:$0xff]
          %v2923 = vld [vmem:[#allocation3 + $0x5f0] sm:$0xff]
          %v2924 = vld [vmem:[#allocation3 + $0x5f8] sm:$0xff]
          %v2925 = vld [vmem:[#allocation3 + $0x600] sm:$0xff]
          %v2926 = vld [vmem:[#allocation3 + $0x608] sm:$0xff]
          %v2927 = vld [vmem:[#allocation3 + $0x610] sm:$0xff]
          %v2928 = vld [vmem:[#allocation3 + $0x618] sm:$0xff]
          %v2929 = vld [vmem:[#allocation3 + $0x620] sm:$0xff]
          %v2930 = vld [vmem:[#allocation3 + $0x628] sm:$0xff]
          %v2931 = vld [vmem:[#allocation3 + $0x630] sm:$0xff]
          %v2932 = vld [vmem:[#allocation3 + $0x638] sm:$0xff]
          %v2933 = vld [vmem:[#allocation3 + $0x640] sm:$0xff]
          %v2934 = vld [vmem:[#allocation3 + $0x648] sm:$0xff]
          %v2935 = vld [vmem:[#allocation3 + $0x650] sm:$0xff]
          %v2936 = vld [vmem:[#allocation3 + $0x658] sm:$0xff]
          %v2937 = vld [vmem:[#allocation3 + $0x660] sm:$0xff]
          %v2938 = vld [vmem:[#allocation3 + $0x668] sm:$0xff]
          %v2939 = vld [vmem:[#allocation3 + $0x670] sm:$0xff]
          %v2940 = vld [vmem:[#allocation3 + $0x678] sm:$0xff]
          %v2941 = vld [vmem:[#allocation3 + $0x680] sm:$0xff]
          %v2942 = vld [vmem:[#allocation3 + $0x688] sm:$0xff]
          %v2943 = vld [vmem:[#allocation3 + $0x690] sm:$0xff]
          %v2944 = vld [vmem:[#allocation3 + $0x698] sm:$0xff]
          %v2945 = vld [vmem:[#allocation3 + $0x6a0] sm:$0xff]
          %v2946 = vld [vmem:[#allocation3 + $0x6a8] sm:$0xff]
          %v2947 = vld [vmem:[#allocation3 + $0x6b0] sm:$0xff]
          %v2948 = vld [vmem:[#allocation3 + $0x6b8] sm:$0xff]
          %v2949 = vld [vmem:[#allocation3 + $0x6c0] sm:$0xff]
          %v2950 = vld [vmem:[#allocation3 + $0x6c8] sm:$0xff]
          %v2951 = vld [vmem:[#allocation3 + $0x6d0] sm:$0xff]
          %v2952 = vld [vmem:[#allocation3 + $0x6d8] sm:$0xff]
          %v2953 = vld [vmem:[#allocation3 + $0x6e0] sm:$0xff]
          %v2954 = vld [vmem:[#allocation3 + $0x6e8] sm:$0xff]
          %v2955 = vld [vmem:[#allocation3 + $0x6f0] sm:$0xff]
          %v2956 = vld [vmem:[#allocation3 + $0x6f8] sm:$0xff]
          %v2957 = vld [vmem:[#allocation3 + $0x700] sm:$0xff]
          %v2958 = vld [vmem:[#allocation3 + $0x708] sm:$0xff]
          %v2959 = vld [vmem:[#allocation3 + $0x710] sm:$0xff]
          %v2960 = vld [vmem:[#allocation3 + $0x718] sm:$0xff]
          %v2961 = vld [vmem:[#allocation3 + $0x720] sm:$0xff]
          %v2962 = vld [vmem:[#allocation3 + $0x728] sm:$0xff]
          %v2963 = vld [vmem:[#allocation3 + $0x730] sm:$0xff]
          %v2964 = vld [vmem:[#allocation3 + $0x738] sm:$0xff]
          %v2965 = vld [vmem:[#allocation3 + $0x740] sm:$0xff]
          %v2966 = vld [vmem:[#allocation3 + $0x748] sm:$0xff]
          %v2967 = vld [vmem:[#allocation3 + $0x750] sm:$0xff]
          %v2968 = vld [vmem:[#allocation3 + $0x758] sm:$0xff]
          %v2969 = vld [vmem:[#allocation3 + $0x760] sm:$0xff]
          %v2970 = vld [vmem:[#allocation3 + $0x768] sm:$0xff]
          %v2971 = vld [vmem:[#allocation3 + $0x770] sm:$0xff]
          %v2972 = vld [vmem:[#allocation3 + $0x778] sm:$0xff]
          %v2973 = vld [vmem:[#allocation3 + $0x780] sm:$0xff]
          %v2974 = vld [vmem:[#allocation3 + $0x788] sm:$0xff]
          %v2975 = vld [vmem:[#allocation3 + $0x790] sm:$0xff]
          %v2976 = vld [vmem:[#allocation3 + $0x798] sm:$0xff]
          %v2977 = vld [vmem:[#allocation3 + $0x7a0] sm:$0xff]
          %v2978 = vld [vmem:[#allocation3 + $0x7a8] sm:$0xff]
          %v2979 = vld [vmem:[#allocation3 + $0x7b0] sm:$0xff]
          %v2980 = vld [vmem:[#allocation3 + $0x7b8] sm:$0xff]
          %v2981 = vld [vmem:[#allocation3 + $0x7c0] sm:$0xff]
          %v2982 = vld [vmem:[#allocation3 + $0x7c8] sm:$0xff]
          %v2983 = vld [vmem:[#allocation3 + $0x7d0] sm:$0xff]
          %v2984 = vld [vmem:[#allocation3 + $0x7d8] sm:$0xff]
          %v2985 = vld [vmem:[#allocation3 + $0x7e0] sm:$0xff]
          %v2986 = vld [vmem:[#allocation3 + $0x7e8] sm:$0xff]
          %v2987 = vld [vmem:[#allocation3 + $0x7f0] sm:$0xff]
          %v2988 = vld [vmem:[#allocation3 + $0x7f8] sm:$0xff]
          %v2989 = vld [vmem:[#allocation12] sm:$0xff]
          %v2991 = vlaneseq
          %v2992 = vshrl.u32 %v2991, 7
          %v2993 = vsub.s32 0, %v2992
          %v2994 = vrot.slane %v2989, %v2993
          %v2995 = vlaneseq
          %v2996 = vshrl.u32 %v2995, 7
          %v2997 = vsub.s32 1, %v2996
          %v2998 = vrot.slane %v2989, %v2997
          %v2999 = vlaneseq
          %v3000 = vshrl.u32 %v2999, 7
          %v3001 = vsub.s32 2, %v3000
          %v3002 = vrot.slane %v2989, %v3001
          %v3003 = vlaneseq
          %v3004 = vshrl.u32 %v3003, 7
          %v3005 = vsub.s32 3, %v3004
          %v3006 = vrot.slane %v2989, %v3005
          %v3007 = vlaneseq
          %v3008 = vshrl.u32 %v3007, 7
          %v3009 = vsub.s32 4, %v3008
          %v3010 = vrot.slane %v2989, %v3009
          %v3011 = vlaneseq
          %v3012 = vshrl.u32 %v3011, 7
          %v3013 = vsub.s32 5, %v3012
          %v3014 = vrot.slane %v2989, %v3013
          %v3015 = vlaneseq
          %v3016 = vshrl.u32 %v3015, 7
          %v3017 = vsub.s32 6, %v3016
          %v3018 = vrot.slane %v2989, %v3017
          %v3019 = vlaneseq
          %v3020 = vshrl.u32 %v3019, 7
          %v3021 = vsub.s32 7, %v3020
          %v3022 = vrot.slane %v2989, %v3021
          %3031 = vmatprep.subr.mxu0 %v2734
          %3032 = vmatpush1.msra.mxu0 %v2733
          %3033 = vmatprep.subr.mxu0 %v2742
          %3034 = vmatpush1.msra.mxu0 %v2741
          %3035 = vmatprep.subr.mxu0 %v2750
          %3036 = vmatpush1.msra.mxu0 %v2749
          %3037 = vmatprep.subr.mxu0 %v2758
          %3038 = vmatpush1.msra.mxu0 %v2757
          %3039 = vmatprep.subr.mxu0 %v2766
          %3040 = vmatpush1.msra.mxu0 %v2765
          %3041 = vmatprep.subr.mxu0 %v2774
          %3042 = vmatpush1.msra.mxu0 %v2773
          %3043 = vmatprep.subr.mxu0 %v2782
          %3044 = vmatpush1.msra.mxu0 %v2781
          %3045 = vmatprep.subr.mxu0 %v2790
          %3046 = vmatpush1.msra.mxu0 %v2789
          %3047 = vmatprep.subr.mxu0 %v2798
          %3048 = vmatpush1.msra.mxu0 %v2797
          %3049 = vmatprep.subr.mxu0 %v2806
          %3050 = vmatpush1.msra.mxu0 %v2805
          %3051 = vmatprep.subr.mxu0 %v2814
          %3052 = vmatpush1.msra.mxu0 %v2813
          %3053 = vmatprep.subr.mxu0 %v2822
          %3054 = vmatpush1.msra.mxu0 %v2821
          %3055 = vmatprep.subr.mxu0 %v2830
          %3056 = vmatpush1.msra.mxu0 %v2829
          %3057 = vmatprep.subr.mxu0 %v2838
          %3058 = vmatpush1.msra.mxu0 %v2837
          %3059 = vmatprep.subr.mxu0 %v2846
          %3060 = vmatpush1.msra.mxu0 %v2845
          %3061 = vmatprep.subr.mxu0 %v2854
          %3062 = vmatpush1.msra.mxu0 %v2853
          %3063 = vmatprep.subr.mxu0 %v2862
          %3064 = vmatpush1.msra.mxu0 %v2861
          %3065 = vmatprep.subr.mxu0 %v2870
          %3066 = vmatpush1.msra.mxu0 %v2869
          %3067 = vmatprep.subr.mxu0 %v2878
          %3068 = vmatpush1.msra.mxu0 %v2877
          %3069 = vmatprep.subr.mxu0 %v2886
          %3070 = vmatpush1.msra.mxu0 %v2885
          %3071 = vmatprep.subr.mxu0 %v2894
          %3072 = vmatpush1.msra.mxu0 %v2893
          %3073 = vmatprep.subr.mxu0 %v2902
          %3074 = vmatpush1.msra.mxu0 %v2901
          %3075 = vmatprep.subr.mxu0 %v2910
          %3076 = vmatpush1.msra.mxu0 %v2909
          %3077 = vmatprep.subr.mxu0 %v2918
          %3078 = vmatpush1.msra.mxu0 %v2917
          %3079 = vmatprep.subr.mxu0 %v2926
          %3080 = vmatpush1.msra.mxu0 %v2925
          %3081 = vmatprep.subr.mxu0 %v2934
          %3082 = vmatpush1.msra.mxu0 %v2933
          %3083 = vmatprep.subr.mxu0 %v2942
          %3084 = vmatpush1.msra.mxu0 %v2941
          %3085 = vmatprep.subr.mxu0 %v2950
          %3086 = vmatpush1.msra.mxu0 %v2949
          %3087 = vmatprep.subr.mxu0 %v2958
          %3088 = vmatpush1.msra.mxu0 %v2957
          %3089 = vmatprep.subr.mxu0 %v2966
          %3090 = vmatpush1.msra.mxu0 %v2965
          %3091 = vmatprep.subr.mxu0 %v2974
          %3092 = vmatpush1.msra.mxu0 %v2973
          %3093 = vmatprep.subr.mxu0 %v2982
          %3094 = vmatpush1.msra.mxu0 %v2981
          %3095 = vmatprep.mubr.f32.mxu0 %v2712
          %3096 = vmatmul.mubr.f32.gmra.mrb[0].mxu0 %v2711
          %v3097 = vpop.f32.mrb[0].mxu0
          %v3098 = vadd.f32 %v2994, %v3097
          %v3099 = vpop.f32.mrb[0].mxu0
          %v3100 = vadd.f32 %v2998, %v3099
          %3101 = vdwg.mxu0
          %3102 = vmatprep.subr.mxu0 %v2736
          %3103 = vmatpush1.msra.mxu0 %v2735
          %3104 = vmatprep.subr.mxu0 %v2744
          %3105 = vmatpush1.msra.mxu0 %v2743
          %3106 = vmatprep.subr.mxu0 %v2752
          %3107 = vmatpush1.msra.mxu0 %v2751
          %3108 = vmatprep.subr.mxu0 %v2760
          %3109 = vmatpush1.msra.mxu0 %v2759
          %3110 = vmatprep.subr.mxu0 %v2768
          %3111 = vmatpush1.msra.mxu0 %v2767
          %3112 = vmatprep.subr.mxu0 %v2776
          %3113 = vmatpush1.msra.mxu0 %v2775
          %3114 = vmatprep.subr.mxu0 %v2784
          %3115 = vmatpush1.msra.mxu0 %v2783
          %3116 = vmatprep.subr.mxu0 %v2792
          %3117 = vmatpush1.msra.mxu0 %v2791
          %3118 = vmatprep.subr.mxu0 %v2800
          %3119 = vmatpush1.msra.mxu0 %v2799
          %3120 = vmatprep.subr.mxu0 %v2808
          %3121 = vmatpush1.msra.mxu0 %v2807
          %3122 = vmatprep.subr.mxu0 %v2816
          %3123 = vmatpush1.msra.mxu0 %v2815
          %3124 = vmatprep.subr.mxu0 %v2824
          %3125 = vmatpush1.msra.mxu0 %v2823
          %3126 = vmatprep.subr.mxu0 %v2832
          %3127 = vmatpush1.msra.mxu0 %v2831
          %3128 = vmatprep.subr.mxu0 %v2840
          %3129 = vmatpush1.msra.mxu0 %v2839
          %3130 = vmatprep.subr.mxu0 %v2848
          %3131 = vmatpush1.msra.mxu0 %v2847
          %3132 = vmatprep.subr.mxu0 %v2856
          %3133 = vmatpush1.msra.mxu0 %v2855
          %3134 = vmatprep.subr.mxu0 %v2864
          %3135 = vmatpush1.msra.mxu0 %v2863
          %3136 = vmatprep.subr.mxu0 %v2872
          %3137 = vmatpush1.msra.mxu0 %v2871
          %3138 = vmatprep.subr.mxu0 %v2880
          %3139 = vmatpush1.msra.mxu0 %v2879
          %3140 = vmatprep.subr.mxu0 %v2888
          %3141 = vmatpush1.msra.mxu0 %v2887
          %3142 = vmatprep.subr.mxu0 %v2896
          %3143 = vmatpush1.msra.mxu0 %v2895
          %3144 = vmatprep.subr.mxu0 %v2904
          %3145 = vmatpush1.msra.mxu0 %v2903
          %3146 = vmatprep.subr.mxu0 %v2912
          %3147 = vmatpush1.msra.mxu0 %v2911
          %3148 = vmatprep.subr.mxu0 %v2920
          %3149 = vmatpush1.msra.mxu0 %v2919
          %3150 = vmatprep.subr.mxu0 %v2928
          %3151 = vmatpush1.msra.mxu0 %v2927
          %3152 = vmatprep.subr.mxu0 %v2936
          %3153 = vmatpush1.msra.mxu0 %v2935
          %3154 = vmatprep.subr.mxu0 %v2944
          %3155 = vmatpush1.msra.mxu0 %v2943
          %3156 = vmatprep.subr.mxu0 %v2952
          %3157 = vmatpush1.msra.mxu0 %v2951
          %3158 = vmatprep.subr.mxu0 %v2960
          %3159 = vmatpush1.msra.mxu0 %v2959
          %3160 = vmatprep.subr.mxu0 %v2968
          %3161 = vmatpush1.msra.mxu0 %v2967
          %3162 = vmatprep.subr.mxu0 %v2976
          %3163 = vmatpush1.msra.mxu0 %v2975
          %3164 = vmatprep.subr.mxu0 %v2984
          %3165 = vmatpush1.msra.mxu0 %v2983
          %3166 = vmatprep.mubr.f32.mxu0 %v2712
          %3167 = vmatmul.mubr.f32.gmra.mrb[0].mxu0 %v2711
          %v3168 = vpop.f32.mrb[0].mxu0
          %v3169 = vadd.f32 %v3002, %v3168
          %v3170 = vpop.f32.mrb[0].mxu0
          %v3171 = vadd.f32 %v3006, %v3170
          %3172 = vdwg.mxu0
          %3173 = vmatprep.subr.mxu0 %v2738
          %3174 = vmatpush1.msra.mxu0 %v2737
          %3175 = vmatprep.subr.mxu0 %v2746
          %3176 = vmatpush1.msra.mxu0 %v2745
          %3177 = vmatprep.subr.mxu0 %v2754
          %3178 = vmatpush1.msra.mxu0 %v2753
          %3179 = vmatprep.subr.mxu0 %v2762
          %3180 = vmatpush1.msra.mxu0 %v2761
          %3181 = vmatprep.subr.mxu0 %v2770
          %3182 = vmatpush1.msra.mxu0 %v2769
          %3183 = vmatprep.subr.mxu0 %v2778
          %3184 = vmatpush1.msra.mxu0 %v2777
          %3185 = vmatprep.subr.mxu0 %v2786
          %3186 = vmatpush1.msra.mxu0 %v2785
          %3187 = vmatprep.subr.mxu0 %v2794
          %3188 = vmatpush1.msra.mxu0 %v2793
          %3189 = vmatprep.subr.mxu0 %v2802
          %3190 = vmatpush1.msra.mxu0 %v2801
          %3191 = vmatprep.subr.mxu0 %v2810
          %3192 = vmatpush1.msra.mxu0 %v2809
          %3193 = vmatprep.subr.mxu0 %v2818
          %3194 = vmatpush1.msra.mxu0 %v2817
          %3195 = vmatprep.subr.mxu0 %v2826
          %3196 = vmatpush1.msra.mxu0 %v2825
          %3197 = vmatprep.subr.mxu0 %v2834
          %3198 = vmatpush1.msra.mxu0 %v2833
          %3199 = vmatprep.subr.mxu0 %v2842
          %3200 = vmatpush1.msra.mxu0 %v2841
          %3201 = vmatprep.subr.mxu0 %v2850
          %3202 = vmatpush1.msra.mxu0 %v2849
          %3203 = vmatprep.subr.mxu0 %v2858
          %3204 = vmatpush1.msra.mxu0 %v2857
          %3205 = vmatprep.subr.mxu0 %v2866
          %3206 = vmatpush1.msra.mxu0 %v2865
          %3207 = vmatprep.subr.mxu0 %v2874
          %3208 = vmatpush1.msra.mxu0 %v2873
          %3209 = vmatprep.subr.mxu0 %v2882
          %3210 = vmatpush1.msra.mxu0 %v2881
          %3211 = vmatprep.subr.mxu0 %v2890
          %3212 = vmatpush1.msra.mxu0 %v2889
          %3213 = vmatprep.subr.mxu0 %v2898
          %3214 = vmatpush1.msra.mxu0 %v2897
          %3215 = vmatprep.subr.mxu0 %v2906
          %3216 = vmatpush1.msra.mxu0 %v2905
          %3217 = vmatprep.subr.mxu0 %v2914
          %3218 = vmatpush1.msra.mxu0 %v2913
          %3219 = vmatprep.subr.mxu0 %v2922
          %3220 = vmatpush1.msra.mxu0 %v2921
          %3221 = vmatprep.subr.mxu0 %v2930
          %3222 = vmatpush1.msra.mxu0 %v2929
          %3223 = vmatprep.subr.mxu0 %v2938
          %3224 = vmatpush1.msra.mxu0 %v2937
          %3225 = vmatprep.subr.mxu0 %v2946
          %3226 = vmatpush1.msra.mxu0 %v2945
          %3227 = vmatprep.subr.mxu0 %v2954
          %3228 = vmatpush1.msra.mxu0 %v2953
          %3229 = vmatprep.subr.mxu0 %v2962
          %3230 = vmatpush1.msra.mxu0 %v2961
          %3231 = vmatprep.subr.mxu0 %v2970
          %3232 = vmatpush1.msra.mxu0 %v2969
          %3233 = vmatprep.subr.mxu0 %v2978
          %3234 = vmatpush1.msra.mxu0 %v2977
          %3235 = vmatprep.subr.mxu0 %v2986
          %3236 = vmatpush1.msra.mxu0 %v2985
          %3237 = vmatprep.mubr.f32.mxu0 %v2712
          %3238 = vmatmul.mubr.f32.gmra.mrb[0].mxu0 %v2711
          %v3239 = vpop.f32.mrb[0].mxu0
          %v3240 = vadd.f32 %v3010, %v3239
          %v3241 = vpop.f32.mrb[0].mxu0
          %v3242 = vadd.f32 %v3014, %v3241
          %3243 = vdwg.mxu0
          %3244 = vmatprep.subr.mxu0 %v2740
          %3245 = vmatpush1.msra.mxu0 %v2739
          %3246 = vmatprep.subr.mxu0 %v2748
          %3247 = vmatpush1.msra.mxu0 %v2747
          %3248 = vmatprep.subr.mxu0 %v2756
          %3249 = vmatpush1.msra.mxu0 %v2755
          %3250 = vmatprep.subr.mxu0 %v2764
          %3251 = vmatpush1.msra.mxu0 %v2763
          %3252 = vmatprep.subr.mxu0 %v2772
          %3253 = vmatpush1.msra.mxu0 %v2771
          %3254 = vmatprep.subr.mxu0 %v2780
          %3255 = vmatpush1.msra.mxu0 %v2779
          %3256 = vmatprep.subr.mxu0 %v2788
          %3257 = vmatpush1.msra.mxu0 %v2787
          %3258 = vmatprep.subr.mxu0 %v2796
          %3259 = vmatpush1.msra.mxu0 %v2795
          %3260 = vmatprep.subr.mxu0 %v2804
          %3261 = vmatpush1.msra.mxu0 %v2803
          %3262 = vmatprep.subr.mxu0 %v2812
          %3263 = vmatpush1.msra.mxu0 %v2811
          %3264 = vmatprep.subr.mxu0 %v2820
          %3265 = vmatpush1.msra.mxu0 %v2819
          %3266 = vmatprep.subr.mxu0 %v2828
          %3267 = vmatpush1.msra.mxu0 %v2827
          %3268 = vmatprep.subr.mxu0 %v2836
          %3269 = vmatpush1.msra.mxu0 %v2835
          %3270 = vmatprep.subr.mxu0 %v2844
          %3271 = vmatpush1.msra.mxu0 %v2843
          %3272 = vmatprep.subr.mxu0 %v2852
          %3273 = vmatpush1.msra.mxu0 %v2851
          %3274 = vmatprep.subr.mxu0 %v2860
          %3275 = vmatpush1.msra.mxu0 %v2859
          %3276 = vmatprep.subr.mxu0 %v2868
          %3277 = vmatpush1.msra.mxu0 %v2867
          %3278 = vmatprep.subr.mxu0 %v2876
          %3279 = vmatpush1.msra.mxu0 %v2875
          %3280 = vmatprep.subr.mxu0 %v2884
          %3281 = vmatpush1.msra.mxu0 %v2883
          %3282 = vmatprep.subr.mxu0 %v2892
          %3283 = vmatpush1.msra.mxu0 %v2891
          %3284 = vmatprep.subr.mxu0 %v2900
          %3285 = vmatpush1.msra.mxu0 %v2899
          %3286 = vmatprep.subr.mxu0 %v2908
          %3287 = vmatpush1.msra.mxu0 %v2907
          %3288 = vmatprep.subr.mxu0 %v2916
          %3289 = vmatpush1.msra.mxu0 %v2915
          %3290 = vmatprep.subr.mxu0 %v2924
          %3291 = vmatpush1.msra.mxu0 %v2923
          %3292 = vmatprep.subr.mxu0 %v2932
          %3293 = vmatpush1.msra.mxu0 %v2931
          %3294 = vmatprep.subr.mxu0 %v2940
          %3295 = vmatpush1.msra.mxu0 %v2939
          %3296 = vmatprep.subr.mxu0 %v2948
          %3297 = vmatpush1.msra.mxu0 %v2947
          %3298 = vmatprep.subr.mxu0 %v2956
          %3299 = vmatpush1.msra.mxu0 %v2955
          %3300 = vmatprep.subr.mxu0 %v2964
          %3301 = vmatpush1.msra.mxu0 %v2963
          %3302 = vmatprep.subr.mxu0 %v2972
          %3303 = vmatpush1.msra.mxu0 %v2971
          %3304 = vmatprep.subr.mxu0 %v2980
          %3305 = vmatpush1.msra.mxu0 %v2979
          %3306 = vmatprep.subr.mxu0 %v2988
          %3307 = vmatpush1.msra.mxu0 %v2987
          %3308 = vmatprep.mubr.f32.mxu0 %v2712
          %3309 = vmatmul.mubr.f32.gmra.mrb[0].mxu0 %v2711
          %v3310 = vpop.f32.mrb[0].mxu0
          %v3311 = vadd.f32 %v3018, %v3310
          %v3312 = vpop.f32.mrb[0].mxu0
          %v3313 = vadd.f32 %v3022, %v3312
          %3314 = vdwg.mxu0
          %v3315 = vmax.f32 %v3098, 0.0
          %v3316 = vmax.f32 %v3100, 0.0
          %v3317 = vmax.f32 %v3169, 0.0
          %v3318 = vmax.f32 %v3171, 0.0
          %v3319 = vmax.f32 %v3240, 0.0
          %v3320 = vmax.f32 %v3242, 0.0
          %v3321 = vmax.f32 %v3311, 0.0
          %v3322 = vmax.f32 %v3313, 0.0
          %v3323 = vmin.f32 %v3315, 6.0
          %v3324 = vmin.f32 %v3316, 6.0
          %v3325 = vmin.f32 %v3317, 6.0
          %v3326 = vmin.f32 %v3318, 6.0
          %v3327 = vmin.f32 %v3319, 6.0
          %v3328 = vmin.f32 %v3320, 6.0
          %v3329 = vmin.f32 %v3321, 6.0
          %v3330 = vmin.f32 %v3322, 6.0
          %s3331 = scalar_lea.sflag [#allocation6], 1
          %s3332 = smul.u32 8, 128
          %s3333 = smul.u32 %s3332, 4
          %s3334 = sshll.u32 %s3333, 4
          %3335 = dma.done %s3331, %s3334
          %v3336 = vld [vmem:[#allocation4] sm:$0xff]
          %v3337 = vld [vmem:[#allocation4 + $0x8] sm:$0xff]
          %v3338 = vld [vmem:[#allocation4 + $0x10] sm:$0xff]
          %v3339 = vld [vmem:[#allocation4 + $0x18] sm:$0xff]
          %v3340 = vld [vmem:[#allocation4 + $0x20] sm:$0xff]
          %v3341 = vld [vmem:[#allocation4 + $0x28] sm:$0xff]
          %v3342 = vld [vmem:[#allocation4 + $0x30] sm:$0xff]
          %v3343 = vld [vmem:[#allocation4 + $0x38] sm:$0xff]
          %v3344 = vld [vmem:[#allocation4 + $0x40] sm:$0xff]
          %v3345 = vld [vmem:[#allocation4 + $0x48] sm:$0xff]
          %v3346 = vld [vmem:[#allocation4 + $0x50] sm:$0xff]
          %v3347 = vld [vmem:[#allocation4 + $0x58] sm:$0xff]
          %v3348 = vld [vmem:[#allocation4 + $0x60] sm:$0xff]
          %v3349 = vld [vmem:[#allocation4 + $0x68] sm:$0xff]
          %v3350 = vld [vmem:[#allocation4 + $0x70] sm:$0xff]
          %v3351 = vld [vmem:[#allocation4 + $0x78] sm:$0xff]
          %v3352 = vld [vmem:[#allocation4 + $0x80] sm:$0xff]
          %v3353 = vld [vmem:[#allocation4 + $0x88] sm:$0xff]
          %v3354 = vld [vmem:[#allocation4 + $0x90] sm:$0xff]
          %v3355 = vld [vmem:[#allocation4 + $0x98] sm:$0xff]
          %v3356 = vld [vmem:[#allocation4 + $0xa0] sm:$0xff]
          %v3357 = vld [vmem:[#allocation4 + $0xa8] sm:$0xff]
          %v3358 = vld [vmem:[#allocation4 + $0xb0] sm:$0xff]
          %v3359 = vld [vmem:[#allocation4 + $0xb8] sm:$0xff]
          %v3360 = vld [vmem:[#allocation4 + $0xc0] sm:$0xff]
          %v3361 = vld [vmem:[#allocation4 + $0xc8] sm:$0xff]
          %v3362 = vld [vmem:[#allocation4 + $0xd0] sm:$0xff]
          %v3363 = vld [vmem:[#allocation4 + $0xd8] sm:$0xff]
          %v3364 = vld [vmem:[#allocation4 + $0xe0] sm:$0xff]
          %v3365 = vld [vmem:[#allocation4 + $0xe8] sm:$0xff]
          %v3366 = vld [vmem:[#allocation4 + $0xf0] sm:$0xff]
          %v3367 = vld [vmem:[#allocation4 + $0xf8] sm:$0xff]
          %v3368 = vld [vmem:[#allocation4 + $0x100] sm:$0xff]
          %v3369 = vld [vmem:[#allocation4 + $0x108] sm:$0xff]
          %v3370 = vld [vmem:[#allocation4 + $0x110] sm:$0xff]
          %v3371 = vld [vmem:[#allocation4 + $0x118] sm:$0xff]
          %v3372 = vld [vmem:[#allocation4 + $0x120] sm:$0xff]
          %v3373 = vld [vmem:[#allocation4 + $0x128] sm:$0xff]
          %v3374 = vld [vmem:[#allocation4 + $0x130] sm:$0xff]
          %v3375 = vld [vmem:[#allocation4 + $0x138] sm:$0xff]
          %v3376 = vld [vmem:[#allocation4 + $0x140] sm:$0xff]
          %v3377 = vld [vmem:[#allocation4 + $0x148] sm:$0xff]
          %v3378 = vld [vmem:[#allocation4 + $0x150] sm:$0xff]
          %v3379 = vld [vmem:[#allocation4 + $0x158] sm:$0xff]
          %v3380 = vld [vmem:[#allocation4 + $0x160] sm:$0xff]
          %v3381 = vld [vmem:[#allocation4 + $0x168] sm:$0xff]
          %v3382 = vld [vmem:[#allocation4 + $0x170] sm:$0xff]
          %v3383 = vld [vmem:[#allocation4 + $0x178] sm:$0xff]
          %v3384 = vld [vmem:[#allocation4 + $0x180] sm:$0xff]
          %v3385 = vld [vmem:[#allocation4 + $0x188] sm:$0xff]
          %v3386 = vld [vmem:[#allocation4 + $0x190] sm:$0xff]
          %v3387 = vld [vmem:[#allocation4 + $0x198] sm:$0xff]
          %v3388 = vld [vmem:[#allocation4 + $0x1a0] sm:$0xff]
          %v3389 = vld [vmem:[#allocation4 + $0x1a8] sm:$0xff]
          %v3390 = vld [vmem:[#allocation4 + $0x1b0] sm:$0xff]
          %v3391 = vld [vmem:[#allocation4 + $0x1b8] sm:$0xff]
          %v3392 = vld [vmem:[#allocation4 + $0x1c0] sm:$0xff]
          %v3393 = vld [vmem:[#allocation4 + $0x1c8] sm:$0xff]
          %v3394 = vld [vmem:[#allocation4 + $0x1d0] sm:$0xff]
          %v3395 = vld [vmem:[#allocation4 + $0x1d8] sm:$0xff]
          %v3396 = vld [vmem:[#allocation4 + $0x1e0] sm:$0xff]
          %v3397 = vld [vmem:[#allocation4 + $0x1e8] sm:$0xff]
          %v3398 = vld [vmem:[#allocation4 + $0x1f0] sm:$0xff]
          %v3399 = vld [vmem:[#allocation4 + $0x1f8] sm:$0xff]
          %v3400 = vld [vmem:[#allocation4 + $0x200] sm:$0xff]
          %v3401 = vld [vmem:[#allocation4 + $0x208] sm:$0xff]
          %v3402 = vld [vmem:[#allocation4 + $0x210] sm:$0xff]
          %v3403 = vld [vmem:[#allocation4 + $0x218] sm:$0xff]
          %v3404 = vld [vmem:[#allocation4 + $0x220] sm:$0xff]
          %v3405 = vld [vmem:[#allocation4 + $0x228] sm:$0xff]
          %v3406 = vld [vmem:[#allocation4 + $0x230] sm:$0xff]
          %v3407 = vld [vmem:[#allocation4 + $0x238] sm:$0xff]
          %v3408 = vld [vmem:[#allocation4 + $0x240] sm:$0xff]
          %v3409 = vld [vmem:[#allocation4 + $0x248] sm:$0xff]
          %v3410 = vld [vmem:[#allocation4 + $0x250] sm:$0xff]
          %v3411 = vld [vmem:[#allocation4 + $0x258] sm:$0xff]
          %v3412 = vld [vmem:[#allocation4 + $0x260] sm:$0xff]
          %v3413 = vld [vmem:[#allocation4 + $0x268] sm:$0xff]
          %v3414 = vld [vmem:[#allocation4 + $0x270] sm:$0xff]
          %v3415 = vld [vmem:[#allocation4 + $0x278] sm:$0xff]
          %v3416 = vld [vmem:[#allocation4 + $0x280] sm:$0xff]
          %v3417 = vld [vmem:[#allocation4 + $0x288] sm:$0xff]
          %v3418 = vld [vmem:[#allocation4 + $0x290] sm:$0xff]
          %v3419 = vld [vmem:[#allocation4 + $0x298] sm:$0xff]
          %v3420 = vld [vmem:[#allocation4 + $0x2a0] sm:$0xff]
          %v3421 = vld [vmem:[#allocation4 + $0x2a8] sm:$0xff]
          %v3422 = vld [vmem:[#allocation4 + $0x2b0] sm:$0xff]
          %v3423 = vld [vmem:[#allocation4 + $0x2b8] sm:$0xff]
          %v3424 = vld [vmem:[#allocation4 + $0x2c0] sm:$0xff]
          %v3425 = vld [vmem:[#allocation4 + $0x2c8] sm:$0xff]
          %v3426 = vld [vmem:[#allocation4 + $0x2d0] sm:$0xff]
          %v3427 = vld [vmem:[#allocation4 + $0x2d8] sm:$0xff]
          %v3428 = vld [vmem:[#allocation4 + $0x2e0] sm:$0xff]
          %v3429 = vld [vmem:[#allocation4 + $0x2e8] sm:$0xff]
          %v3430 = vld [vmem:[#allocation4 + $0x2f0] sm:$0xff]
          %v3431 = vld [vmem:[#allocation4 + $0x2f8] sm:$0xff]
          %v3432 = vld [vmem:[#allocation4 + $0x300] sm:$0xff]
          %v3433 = vld [vmem:[#allocation4 + $0x308] sm:$0xff]
          %v3434 = vld [vmem:[#allocation4 + $0x310] sm:$0xff]
          %v3435 = vld [vmem:[#allocation4 + $0x318] sm:$0xff]
          %v3436 = vld [vmem:[#allocation4 + $0x320] sm:$0xff]
          %v3437 = vld [vmem:[#allocation4 + $0x328] sm:$0xff]
          %v3438 = vld [vmem:[#allocation4 + $0x330] sm:$0xff]
          %v3439 = vld [vmem:[#allocation4 + $0x338] sm:$0xff]
          %v3440 = vld [vmem:[#allocation4 + $0x340] sm:$0xff]
          %v3441 = vld [vmem:[#allocation4 + $0x348] sm:$0xff]
          %v3442 = vld [vmem:[#allocation4 + $0x350] sm:$0xff]
          %v3443 = vld [vmem:[#allocation4 + $0x358] sm:$0xff]
          %v3444 = vld [vmem:[#allocation4 + $0x360] sm:$0xff]
          %v3445 = vld [vmem:[#allocation4 + $0x368] sm:$0xff]
          %v3446 = vld [vmem:[#allocation4 + $0x370] sm:$0xff]
          %v3447 = vld [vmem:[#allocation4 + $0x378] sm:$0xff]
          %v3448 = vld [vmem:[#allocation4 + $0x380] sm:$0xff]
          %v3449 = vld [vmem:[#allocation4 + $0x388] sm:$0xff]
          %v3450 = vld [vmem:[#allocation4 + $0x390] sm:$0xff]
          %v3451 = vld [vmem:[#allocation4 + $0x398] sm:$0xff]
          %v3452 = vld [vmem:[#allocation4 + $0x3a0] sm:$0xff]
          %v3453 = vld [vmem:[#allocation4 + $0x3a8] sm:$0xff]
          %v3454 = vld [vmem:[#allocation4 + $0x3b0] sm:$0xff]
          %v3455 = vld [vmem:[#allocation4 + $0x3b8] sm:$0xff]
          %v3456 = vld [vmem:[#allocation4 + $0x3c0] sm:$0xff]
          %v3457 = vld [vmem:[#allocation4 + $0x3c8] sm:$0xff]
          %v3458 = vld [vmem:[#allocation4 + $0x3d0] sm:$0xff]
          %v3459 = vld [vmem:[#allocation4 + $0x3d8] sm:$0xff]
          %v3460 = vld [vmem:[#allocation4 + $0x3e0] sm:$0xff]
          %v3461 = vld [vmem:[#allocation4 + $0x3e8] sm:$0xff]
          %v3462 = vld [vmem:[#allocation4 + $0x3f0] sm:$0xff]
          %v3463 = vld [vmem:[#allocation4 + $0x3f8] sm:$0xff]
          %v3464 = vld [vmem:[#allocation4 + $0x400] sm:$0xff]
          %v3465 = vld [vmem:[#allocation4 + $0x408] sm:$0xff]
          %v3466 = vld [vmem:[#allocation4 + $0x410] sm:$0xff]
          %v3467 = vld [vmem:[#allocation4 + $0x418] sm:$0xff]
          %v3468 = vld [vmem:[#allocation4 + $0x420] sm:$0xff]
          %v3469 = vld [vmem:[#allocation4 + $0x428] sm:$0xff]
          %v3470 = vld [vmem:[#allocation4 + $0x430] sm:$0xff]
          %v3471 = vld [vmem:[#allocation4 + $0x438] sm:$0xff]
          %v3472 = vld [vmem:[#allocation4 + $0x440] sm:$0xff]
          %v3473 = vld [vmem:[#allocation4 + $0x448] sm:$0xff]
          %v3474 = vld [vmem:[#allocation4 + $0x450] sm:$0xff]
          %v3475 = vld [vmem:[#allocation4 + $0x458] sm:$0xff]
          %v3476 = vld [vmem:[#allocation4 + $0x460] sm:$0xff]
          %v3477 = vld [vmem:[#allocation4 + $0x468] sm:$0xff]
          %v3478 = vld [vmem:[#allocation4 + $0x470] sm:$0xff]
          %v3479 = vld [vmem:[#allocation4 + $0x478] sm:$0xff]
          %v3480 = vld [vmem:[#allocation4 + $0x480] sm:$0xff]
          %v3481 = vld [vmem:[#allocation4 + $0x488] sm:$0xff]
          %v3482 = vld [vmem:[#allocation4 + $0x490] sm:$0xff]
          %v3483 = vld [vmem:[#allocation4 + $0x498] sm:$0xff]
          %v3484 = vld [vmem:[#allocation4 + $0x4a0] sm:$0xff]
          %v3485 = vld [vmem:[#allocation4 + $0x4a8] sm:$0xff]
          %v3486 = vld [vmem:[#allocation4 + $0x4b0] sm:$0xff]
          %v3487 = vld [vmem:[#allocation4 + $0x4b8] sm:$0xff]
          %v3488 = vld [vmem:[#allocation4 + $0x4c0] sm:$0xff]
          %v3489 = vld [vmem:[#allocation4 + $0x4c8] sm:$0xff]
          %v3490 = vld [vmem:[#allocation4 + $0x4d0] sm:$0xff]
          %v3491 = vld [vmem:[#allocation4 + $0x4d8] sm:$0xff]
          %v3492 = vld [vmem:[#allocation4 + $0x4e0] sm:$0xff]
          %v3493 = vld [vmem:[#allocation4 + $0x4e8] sm:$0xff]
          %v3494 = vld [vmem:[#allocation4 + $0x4f0] sm:$0xff]
          %v3495 = vld [vmem:[#allocation4 + $0x4f8] sm:$0xff]
          %v3496 = vld [vmem:[#allocation4 + $0x500] sm:$0xff]
          %v3497 = vld [vmem:[#allocation4 + $0x508] sm:$0xff]
          %v3498 = vld [vmem:[#allocation4 + $0x510] sm:$0xff]
          %v3499 = vld [vmem:[#allocation4 + $0x518] sm:$0xff]
          %v3500 = vld [vmem:[#allocation4 + $0x520] sm:$0xff]
          %v3501 = vld [vmem:[#allocation4 + $0x528] sm:$0xff]
          %v3502 = vld [vmem:[#allocation4 + $0x530] sm:$0xff]
          %v3503 = vld [vmem:[#allocation4 + $0x538] sm:$0xff]
          %v3504 = vld [vmem:[#allocation4 + $0x540] sm:$0xff]
          %v3505 = vld [vmem:[#allocation4 + $0x548] sm:$0xff]
          %v3506 = vld [vmem:[#allocation4 + $0x550] sm:$0xff]
          %v3507 = vld [vmem:[#allocation4 + $0x558] sm:$0xff]
          %v3508 = vld [vmem:[#allocation4 + $0x560] sm:$0xff]
          %v3509 = vld [vmem:[#allocation4 + $0x568] sm:$0xff]
          %v3510 = vld [vmem:[#allocation4 + $0x570] sm:$0xff]
          %v3511 = vld [vmem:[#allocation4 + $0x578] sm:$0xff]
          %v3512 = vld [vmem:[#allocation4 + $0x580] sm:$0xff]
          %v3513 = vld [vmem:[#allocation4 + $0x588] sm:$0xff]
          %v3514 = vld [vmem:[#allocation4 + $0x590] sm:$0xff]
          %v3515 = vld [vmem:[#allocation4 + $0x598] sm:$0xff]
          %v3516 = vld [vmem:[#allocation4 + $0x5a0] sm:$0xff]
          %v3517 = vld [vmem:[#allocation4 + $0x5a8] sm:$0xff]
          %v3518 = vld [vmem:[#allocation4 + $0x5b0] sm:$0xff]
          %v3519 = vld [vmem:[#allocation4 + $0x5b8] sm:$0xff]
          %v3520 = vld [vmem:[#allocation4 + $0x5c0] sm:$0xff]
          %v3521 = vld [vmem:[#allocation4 + $0x5c8] sm:$0xff]
          %v3522 = vld [vmem:[#allocation4 + $0x5d0] sm:$0xff]
          %v3523 = vld [vmem:[#allocation4 + $0x5d8] sm:$0xff]
          %v3524 = vld [vmem:[#allocation4 + $0x5e0] sm:$0xff]
          %v3525 = vld [vmem:[#allocation4 + $0x5e8] sm:$0xff]
          %v3526 = vld [vmem:[#allocation4 + $0x5f0] sm:$0xff]
          %v3527 = vld [vmem:[#allocation4 + $0x5f8] sm:$0xff]
          %v3528 = vld [vmem:[#allocation4 + $0x600] sm:$0xff]
          %v3529 = vld [vmem:[#allocation4 + $0x608] sm:$0xff]
          %v3530 = vld [vmem:[#allocation4 + $0x610] sm:$0xff]
          %v3531 = vld [vmem:[#allocation4 + $0x618] sm:$0xff]
          %v3532 = vld [vmem:[#allocation4 + $0x620] sm:$0xff]
          %v3533 = vld [vmem:[#allocation4 + $0x628] sm:$0xff]
          %v3534 = vld [vmem:[#allocation4 + $0x630] sm:$0xff]
          %v3535 = vld [vmem:[#allocation4 + $0x638] sm:$0xff]
          %v3536 = vld [vmem:[#allocation4 + $0x640] sm:$0xff]
          %v3537 = vld [vmem:[#allocation4 + $0x648] sm:$0xff]
          %v3538 = vld [vmem:[#allocation4 + $0x650] sm:$0xff]
          %v3539 = vld [vmem:[#allocation4 + $0x658] sm:$0xff]
          %v3540 = vld [vmem:[#allocation4 + $0x660] sm:$0xff]
          %v3541 = vld [vmem:[#allocation4 + $0x668] sm:$0xff]
          %v3542 = vld [vmem:[#allocation4 + $0x670] sm:$0xff]
          %v3543 = vld [vmem:[#allocation4 + $0x678] sm:$0xff]
          %v3544 = vld [vmem:[#allocation4 + $0x680] sm:$0xff]
          %v3545 = vld [vmem:[#allocation4 + $0x688] sm:$0xff]
          %v3546 = vld [vmem:[#allocation4 + $0x690] sm:$0xff]
          %v3547 = vld [vmem:[#allocation4 + $0x698] sm:$0xff]
          %v3548 = vld [vmem:[#allocation4 + $0x6a0] sm:$0xff]
          %v3549 = vld [vmem:[#allocation4 + $0x6a8] sm:$0xff]
          %v3550 = vld [vmem:[#allocation4 + $0x6b0] sm:$0xff]
          %v3551 = vld [vmem:[#allocation4 + $0x6b8] sm:$0xff]
          %v3552 = vld [vmem:[#allocation4 + $0x6c0] sm:$0xff]
          %v3553 = vld [vmem:[#allocation4 + $0x6c8] sm:$0xff]
          %v3554 = vld [vmem:[#allocation4 + $0x6d0] sm:$0xff]
          %v3555 = vld [vmem:[#allocation4 + $0x6d8] sm:$0xff]
          %v3556 = vld [vmem:[#allocation4 + $0x6e0] sm:$0xff]
          %v3557 = vld [vmem:[#allocation4 + $0x6e8] sm:$0xff]
          %v3558 = vld [vmem:[#allocation4 + $0x6f0] sm:$0xff]
          %v3559 = vld [vmem:[#allocation4 + $0x6f8] sm:$0xff]
          %v3560 = vld [vmem:[#allocation4 + $0x700] sm:$0xff]
          %v3561 = vld [vmem:[#allocation4 + $0x708] sm:$0xff]
          %v3562 = vld [vmem:[#allocation4 + $0x710] sm:$0xff]
          %v3563 = vld [vmem:[#allocation4 + $0x718] sm:$0xff]
          %v3564 = vld [vmem:[#allocation4 + $0x720] sm:$0xff]
          %v3565 = vld [vmem:[#allocation4 + $0x728] sm:$0xff]
          %v3566 = vld [vmem:[#allocation4 + $0x730] sm:$0xff]
          %v3567 = vld [vmem:[#allocation4 + $0x738] sm:$0xff]
          %v3568 = vld [vmem:[#allocation4 + $0x740] sm:$0xff]
          %v3569 = vld [vmem:[#allocation4 + $0x748] sm:$0xff]
          %v3570 = vld [vmem:[#allocation4 + $0x750] sm:$0xff]
          %v3571 = vld [vmem:[#allocation4 + $0x758] sm:$0xff]
          %v3572 = vld [vmem:[#allocation4 + $0x760] sm:$0xff]
          %v3573 = vld [vmem:[#allocation4 + $0x768] sm:$0xff]
          %v3574 = vld [vmem:[#allocation4 + $0x770] sm:$0xff]
          %v3575 = vld [vmem:[#allocation4 + $0x778] sm:$0xff]
          %v3576 = vld [vmem:[#allocation4 + $0x780] sm:$0xff]
          %v3577 = vld [vmem:[#allocation4 + $0x788] sm:$0xff]
          %v3578 = vld [vmem:[#allocation4 + $0x790] sm:$0xff]
          %v3579 = vld [vmem:[#allocation4 + $0x798] sm:$0xff]
          %v3580 = vld [vmem:[#allocation4 + $0x7a0] sm:$0xff]
          %v3581 = vld [vmem:[#allocation4 + $0x7a8] sm:$0xff]
          %v3582 = vld [vmem:[#allocation4 + $0x7b0] sm:$0xff]
          %v3583 = vld [vmem:[#allocation4 + $0x7b8] sm:$0xff]
          %v3584 = vld [vmem:[#allocation4 + $0x7c0] sm:$0xff]
          %v3585 = vld [vmem:[#allocation4 + $0x7c8] sm:$0xff]
          %v3586 = vld [vmem:[#allocation4 + $0x7d0] sm:$0xff]
          %v3587 = vld [vmem:[#allocation4 + $0x7d8] sm:$0xff]
          %v3588 = vld [vmem:[#allocation4 + $0x7e0] sm:$0xff]
          %v3589 = vld [vmem:[#allocation4 + $0x7e8] sm:$0xff]
          %v3590 = vld [vmem:[#allocation4 + $0x7f0] sm:$0xff]
          %v3591 = vld [vmem:[#allocation4 + $0x7f8] sm:$0xff]
          %v3592 = vld [vmem:[#allocation4 + $0x800] sm:$0xff]
          %v3593 = vld [vmem:[#allocation4 + $0x808] sm:$0xff]
          %v3594 = vld [vmem:[#allocation4 + $0x810] sm:$0xff]
          %v3595 = vld [vmem:[#allocation4 + $0x818] sm:$0xff]
          %v3596 = vld [vmem:[#allocation4 + $0x820] sm:$0xff]
          %v3597 = vld [vmem:[#allocation4 + $0x828] sm:$0xff]
          %v3598 = vld [vmem:[#allocation4 + $0x830] sm:$0xff]
          %v3599 = vld [vmem:[#allocation4 + $0x838] sm:$0xff]
          %v3600 = vld [vmem:[#allocation4 + $0x840] sm:$0xff]
          %v3601 = vld [vmem:[#allocation4 + $0x848] sm:$0xff]
          %v3602 = vld [vmem:[#allocation4 + $0x850] sm:$0xff]
          %v3603 = vld [vmem:[#allocation4 + $0x858] sm:$0xff]
          %v3604 = vld [vmem:[#allocation4 + $0x860] sm:$0xff]
          %v3605 = vld [vmem:[#allocation4 + $0x868] sm:$0xff]
          %v3606 = vld [vmem:[#allocation4 + $0x870] sm:$0xff]
          %v3607 = vld [vmem:[#allocation4 + $0x878] sm:$0xff]
          %v3608 = vld [vmem:[#allocation4 + $0x880] sm:$0xff]
          %v3609 = vld [vmem:[#allocation4 + $0x888] sm:$0xff]
          %v3610 = vld [vmem:[#allocation4 + $0x890] sm:$0xff]
          %v3611 = vld [vmem:[#allocation4 + $0x898] sm:$0xff]
          %v3612 = vld [vmem:[#allocation4 + $0x8a0] sm:$0xff]
          %v3613 = vld [vmem:[#allocation4 + $0x8a8] sm:$0xff]
          %v3614 = vld [vmem:[#allocation4 + $0x8b0] sm:$0xff]
          %v3615 = vld [vmem:[#allocation4 + $0x8b8] sm:$0xff]
          %v3616 = vld [vmem:[#allocation4 + $0x8c0] sm:$0xff]
          %v3617 = vld [vmem:[#allocation4 + $0x8c8] sm:$0xff]
          %v3618 = vld [vmem:[#allocation4 + $0x8d0] sm:$0xff]
          %v3619 = vld [vmem:[#allocation4 + $0x8d8] sm:$0xff]
          %v3620 = vld [vmem:[#allocation4 + $0x8e0] sm:$0xff]
          %v3621 = vld [vmem:[#allocation4 + $0x8e8] sm:$0xff]
          %v3622 = vld [vmem:[#allocation4 + $0x8f0] sm:$0xff]
          %v3623 = vld [vmem:[#allocation4 + $0x8f8] sm:$0xff]
          %v3624 = vld [vmem:[#allocation4 + $0x900] sm:$0xff]
          %v3625 = vld [vmem:[#allocation4 + $0x908] sm:$0xff]
          %v3626 = vld [vmem:[#allocation4 + $0x910] sm:$0xff]
          %v3627 = vld [vmem:[#allocation4 + $0x918] sm:$0xff]
          %v3628 = vld [vmem:[#allocation4 + $0x920] sm:$0xff]
          %v3629 = vld [vmem:[#allocation4 + $0x928] sm:$0xff]
          %v3630 = vld [vmem:[#allocation4 + $0x930] sm:$0xff]
          %v3631 = vld [vmem:[#allocation4 + $0x938] sm:$0xff]
          %v3632 = vld [vmem:[#allocation4 + $0x940] sm:$0xff]
          %v3633 = vld [vmem:[#allocation4 + $0x948] sm:$0xff]
          %v3634 = vld [vmem:[#allocation4 + $0x950] sm:$0xff]
          %v3635 = vld [vmem:[#allocation4 + $0x958] sm:$0xff]
          %v3636 = vld [vmem:[#allocation4 + $0x960] sm:$0xff]
          %v3637 = vld [vmem:[#allocation4 + $0x968] sm:$0xff]
          %v3638 = vld [vmem:[#allocation4 + $0x970] sm:$0xff]
          %v3639 = vld [vmem:[#allocation4 + $0x978] sm:$0xff]
          %v3640 = vld [vmem:[#allocation4 + $0x980] sm:$0xff]
          %v3641 = vld [vmem:[#allocation4 + $0x988] sm:$0xff]
          %v3642 = vld [vmem:[#allocation4 + $0x990] sm:$0xff]
          %v3643 = vld [vmem:[#allocation4 + $0x998] sm:$0xff]
          %v3644 = vld [vmem:[#allocation4 + $0x9a0] sm:$0xff]
          %v3645 = vld [vmem:[#allocation4 + $0x9a8] sm:$0xff]
          %v3646 = vld [vmem:[#allocation4 + $0x9b0] sm:$0xff]
          %v3647 = vld [vmem:[#allocation4 + $0x9b8] sm:$0xff]
          %v3648 = vld [vmem:[#allocation4 + $0x9c0] sm:$0xff]
          %v3649 = vld [vmem:[#allocation4 + $0x9c8] sm:$0xff]
          %v3650 = vld [vmem:[#allocation4 + $0x9d0] sm:$0xff]
          %v3651 = vld [vmem:[#allocation4 + $0x9d8] sm:$0xff]
          %v3652 = vld [vmem:[#allocation4 + $0x9e0] sm:$0xff]
          %v3653 = vld [vmem:[#allocation4 + $0x9e8] sm:$0xff]
          %v3654 = vld [vmem:[#allocation4 + $0x9f0] sm:$0xff]
          %v3655 = vld [vmem:[#allocation4 + $0x9f8] sm:$0xff]
          %v3656 = vld [vmem:[#allocation4 + $0xa00] sm:$0xff]
          %v3657 = vld [vmem:[#allocation4 + $0xa08] sm:$0xff]
          %v3658 = vld [vmem:[#allocation4 + $0xa10] sm:$0xff]
          %v3659 = vld [vmem:[#allocation4 + $0xa18] sm:$0xff]
          %v3660 = vld [vmem:[#allocation4 + $0xa20] sm:$0xff]
          %v3661 = vld [vmem:[#allocation4 + $0xa28] sm:$0xff]
          %v3662 = vld [vmem:[#allocation4 + $0xa30] sm:$0xff]
          %v3663 = vld [vmem:[#allocation4 + $0xa38] sm:$0xff]
          %v3664 = vld [vmem:[#allocation4 + $0xa40] sm:$0xff]
          %v3665 = vld [vmem:[#allocation4 + $0xa48] sm:$0xff]
          %v3666 = vld [vmem:[#allocation4 + $0xa50] sm:$0xff]
          %v3667 = vld [vmem:[#allocation4 + $0xa58] sm:$0xff]
          %v3668 = vld [vmem:[#allocation4 + $0xa60] sm:$0xff]
          %v3669 = vld [vmem:[#allocation4 + $0xa68] sm:$0xff]
          %v3670 = vld [vmem:[#allocation4 + $0xa70] sm:$0xff]
          %v3671 = vld [vmem:[#allocation4 + $0xa78] sm:$0xff]
          %v3672 = vld [vmem:[#allocation4 + $0xa80] sm:$0xff]
          %v3673 = vld [vmem:[#allocation4 + $0xa88] sm:$0xff]
          %v3674 = vld [vmem:[#allocation4 + $0xa90] sm:$0xff]
          %v3675 = vld [vmem:[#allocation4 + $0xa98] sm:$0xff]
          %v3676 = vld [vmem:[#allocation4 + $0xaa0] sm:$0xff]
          %v3677 = vld [vmem:[#allocation4 + $0xaa8] sm:$0xff]
          %v3678 = vld [vmem:[#allocation4 + $0xab0] sm:$0xff]
          %v3679 = vld [vmem:[#allocation4 + $0xab8] sm:$0xff]
          %v3680 = vld [vmem:[#allocation4 + $0xac0] sm:$0xff]
          %v3681 = vld [vmem:[#allocation4 + $0xac8] sm:$0xff]
          %v3682 = vld [vmem:[#allocation4 + $0xad0] sm:$0xff]
          %v3683 = vld [vmem:[#allocation4 + $0xad8] sm:$0xff]
          %v3684 = vld [vmem:[#allocation4 + $0xae0] sm:$0xff]
          %v3685 = vld [vmem:[#allocation4 + $0xae8] sm:$0xff]
          %v3686 = vld [vmem:[#allocation4 + $0xaf0] sm:$0xff]
          %v3687 = vld [vmem:[#allocation4 + $0xaf8] sm:$0xff]
          %v3688 = vld [vmem:[#allocation4 + $0xb00] sm:$0xff]
          %v3689 = vld [vmem:[#allocation4 + $0xb08] sm:$0xff]
          %v3690 = vld [vmem:[#allocation4 + $0xb10] sm:$0xff]
          %v3691 = vld [vmem:[#allocation4 + $0xb18] sm:$0xff]
          %v3692 = vld [vmem:[#allocation4 + $0xb20] sm:$0xff]
          %v3693 = vld [vmem:[#allocation4 + $0xb28] sm:$0xff]
          %v3694 = vld [vmem:[#allocation4 + $0xb30] sm:$0xff]
          %v3695 = vld [vmem:[#allocation4 + $0xb38] sm:$0xff]
          %v3696 = vld [vmem:[#allocation4 + $0xb40] sm:$0xff]
          %v3697 = vld [vmem:[#allocation4 + $0xb48] sm:$0xff]
          %v3698 = vld [vmem:[#allocation4 + $0xb50] sm:$0xff]
          %v3699 = vld [vmem:[#allocation4 + $0xb58] sm:$0xff]
          %v3700 = vld [vmem:[#allocation4 + $0xb60] sm:$0xff]
          %v3701 = vld [vmem:[#allocation4 + $0xb68] sm:$0xff]
          %v3702 = vld [vmem:[#allocation4 + $0xb70] sm:$0xff]
          %v3703 = vld [vmem:[#allocation4 + $0xb78] sm:$0xff]
          %v3704 = vld [vmem:[#allocation4 + $0xb80] sm:$0xff]
          %v3705 = vld [vmem:[#allocation4 + $0xb88] sm:$0xff]
          %v3706 = vld [vmem:[#allocation4 + $0xb90] sm:$0xff]
          %v3707 = vld [vmem:[#allocation4 + $0xb98] sm:$0xff]
          %v3708 = vld [vmem:[#allocation4 + $0xba0] sm:$0xff]
          %v3709 = vld [vmem:[#allocation4 + $0xba8] sm:$0xff]
          %v3710 = vld [vmem:[#allocation4 + $0xbb0] sm:$0xff]
          %v3711 = vld [vmem:[#allocation4 + $0xbb8] sm:$0xff]
          %v3712 = vld [vmem:[#allocation4 + $0xbc0] sm:$0xff]
          %v3713 = vld [vmem:[#allocation4 + $0xbc8] sm:$0xff]
          %v3714 = vld [vmem:[#allocation4 + $0xbd0] sm:$0xff]
          %v3715 = vld [vmem:[#allocation4 + $0xbd8] sm:$0xff]
          %v3716 = vld [vmem:[#allocation4 + $0xbe0] sm:$0xff]
          %v3717 = vld [vmem:[#allocation4 + $0xbe8] sm:$0xff]
          %v3718 = vld [vmem:[#allocation4 + $0xbf0] sm:$0xff]
          %v3719 = vld [vmem:[#allocation4 + $0xbf8] sm:$0xff]
          %v3720 = vld [vmem:[#allocation4 + $0xc00] sm:$0xff]
          %v3721 = vld [vmem:[#allocation4 + $0xc08] sm:$0xff]
          %v3722 = vld [vmem:[#allocation4 + $0xc10] sm:$0xff]
          %v3723 = vld [vmem:[#allocation4 + $0xc18] sm:$0xff]
          %v3724 = vld [vmem:[#allocation4 + $0xc20] sm:$0xff]
          %v3725 = vld [vmem:[#allocation4 + $0xc28] sm:$0xff]
          %v3726 = vld [vmem:[#allocation4 + $0xc30] sm:$0xff]
          %v3727 = vld [vmem:[#allocation4 + $0xc38] sm:$0xff]
          %v3728 = vld [vmem:[#allocation4 + $0xc40] sm:$0xff]
          %v3729 = vld [vmem:[#allocation4 + $0xc48] sm:$0xff]
          %v3730 = vld [vmem:[#allocation4 + $0xc50] sm:$0xff]
          %v3731 = vld [vmem:[#allocation4 + $0xc58] sm:$0xff]
          %v3732 = vld [vmem:[#allocation4 + $0xc60] sm:$0xff]
          %v3733 = vld [vmem:[#allocation4 + $0xc68] sm:$0xff]
          %v3734 = vld [vmem:[#allocation4 + $0xc70] sm:$0xff]
          %v3735 = vld [vmem:[#allocation4 + $0xc78] sm:$0xff]
          %v3736 = vld [vmem:[#allocation4 + $0xc80] sm:$0xff]
          %v3737 = vld [vmem:[#allocation4 + $0xc88] sm:$0xff]
          %v3738 = vld [vmem:[#allocation4 + $0xc90] sm:$0xff]
          %v3739 = vld [vmem:[#allocation4 + $0xc98] sm:$0xff]
          %v3740 = vld [vmem:[#allocation4 + $0xca0] sm:$0xff]
          %v3741 = vld [vmem:[#allocation4 + $0xca8] sm:$0xff]
          %v3742 = vld [vmem:[#allocation4 + $0xcb0] sm:$0xff]
          %v3743 = vld [vmem:[#allocation4 + $0xcb8] sm:$0xff]
          %v3744 = vld [vmem:[#allocation4 + $0xcc0] sm:$0xff]
          %v3745 = vld [vmem:[#allocation4 + $0xcc8] sm:$0xff]
          %v3746 = vld [vmem:[#allocation4 + $0xcd0] sm:$0xff]
          %v3747 = vld [vmem:[#allocation4 + $0xcd8] sm:$0xff]
          %v3748 = vld [vmem:[#allocation4 + $0xce0] sm:$0xff]
          %v3749 = vld [vmem:[#allocation4 + $0xce8] sm:$0xff]
          %v3750 = vld [vmem:[#allocation4 + $0xcf0] sm:$0xff]
          %v3751 = vld [vmem:[#allocation4 + $0xcf8] sm:$0xff]
          %v3752 = vld [vmem:[#allocation4 + $0xd00] sm:$0xff]
          %v3753 = vld [vmem:[#allocation4 + $0xd08] sm:$0xff]
          %v3754 = vld [vmem:[#allocation4 + $0xd10] sm:$0xff]
          %v3755 = vld [vmem:[#allocation4 + $0xd18] sm:$0xff]
          %v3756 = vld [vmem:[#allocation4 + $0xd20] sm:$0xff]
          %v3757 = vld [vmem:[#allocation4 + $0xd28] sm:$0xff]
          %v3758 = vld [vmem:[#allocation4 + $0xd30] sm:$0xff]
          %v3759 = vld [vmem:[#allocation4 + $0xd38] sm:$0xff]
          %v3760 = vld [vmem:[#allocation4 + $0xd40] sm:$0xff]
          %v3761 = vld [vmem:[#allocation4 + $0xd48] sm:$0xff]
          %v3762 = vld [vmem:[#allocation4 + $0xd50] sm:$0xff]
          %v3763 = vld [vmem:[#allocation4 + $0xd58] sm:$0xff]
          %v3764 = vld [vmem:[#allocation4 + $0xd60] sm:$0xff]
          %v3765 = vld [vmem:[#allocation4 + $0xd68] sm:$0xff]
          %v3766 = vld [vmem:[#allocation4 + $0xd70] sm:$0xff]
          %v3767 = vld [vmem:[#allocation4 + $0xd78] sm:$0xff]
          %v3768 = vld [vmem:[#allocation4 + $0xd80] sm:$0xff]
          %v3769 = vld [vmem:[#allocation4 + $0xd88] sm:$0xff]
          %v3770 = vld [vmem:[#allocation4 + $0xd90] sm:$0xff]
          %v3771 = vld [vmem:[#allocation4 + $0xd98] sm:$0xff]
          %v3772 = vld [vmem:[#allocation4 + $0xda0] sm:$0xff]
          %v3773 = vld [vmem:[#allocation4 + $0xda8] sm:$0xff]
          %v3774 = vld [vmem:[#allocation4 + $0xdb0] sm:$0xff]
          %v3775 = vld [vmem:[#allocation4 + $0xdb8] sm:$0xff]
          %v3776 = vld [vmem:[#allocation4 + $0xdc0] sm:$0xff]
          %v3777 = vld [vmem:[#allocation4 + $0xdc8] sm:$0xff]
          %v3778 = vld [vmem:[#allocation4 + $0xdd0] sm:$0xff]
          %v3779 = vld [vmem:[#allocation4 + $0xdd8] sm:$0xff]
          %v3780 = vld [vmem:[#allocation4 + $0xde0] sm:$0xff]
          %v3781 = vld [vmem:[#allocation4 + $0xde8] sm:$0xff]
          %v3782 = vld [vmem:[#allocation4 + $0xdf0] sm:$0xff]
          %v3783 = vld [vmem:[#allocation4 + $0xdf8] sm:$0xff]
          %v3784 = vld [vmem:[#allocation4 + $0xe00] sm:$0xff]
          %v3785 = vld [vmem:[#allocation4 + $0xe08] sm:$0xff]
          %v3786 = vld [vmem:[#allocation4 + $0xe10] sm:$0xff]
          %v3787 = vld [vmem:[#allocation4 + $0xe18] sm:$0xff]
          %v3788 = vld [vmem:[#allocation4 + $0xe20] sm:$0xff]
          %v3789 = vld [vmem:[#allocation4 + $0xe28] sm:$0xff]
          %v3790 = vld [vmem:[#allocation4 + $0xe30] sm:$0xff]
          %v3791 = vld [vmem:[#allocation4 + $0xe38] sm:$0xff]
          %v3792 = vld [vmem:[#allocation4 + $0xe40] sm:$0xff]
          %v3793 = vld [vmem:[#allocation4 + $0xe48] sm:$0xff]
          %v3794 = vld [vmem:[#allocation4 + $0xe50] sm:$0xff]
          %v3795 = vld [vmem:[#allocation4 + $0xe58] sm:$0xff]
          %v3796 = vld [vmem:[#allocation4 + $0xe60] sm:$0xff]
          %v3797 = vld [vmem:[#allocation4 + $0xe68] sm:$0xff]
          %v3798 = vld [vmem:[#allocation4 + $0xe70] sm:$0xff]
          %v3799 = vld [vmem:[#allocation4 + $0xe78] sm:$0xff]
          %v3800 = vld [vmem:[#allocation4 + $0xe80] sm:$0xff]
          %v3801 = vld [vmem:[#allocation4 + $0xe88] sm:$0xff]
          %v3802 = vld [vmem:[#allocation4 + $0xe90] sm:$0xff]
          %v3803 = vld [vmem:[#allocation4 + $0xe98] sm:$0xff]
          %v3804 = vld [vmem:[#allocation4 + $0xea0] sm:$0xff]
          %v3805 = vld [vmem:[#allocation4 + $0xea8] sm:$0xff]
          %v3806 = vld [vmem:[#allocation4 + $0xeb0] sm:$0xff]
          %v3807 = vld [vmem:[#allocation4 + $0xeb8] sm:$0xff]
          %v3808 = vld [vmem:[#allocation4 + $0xec0] sm:$0xff]
          %v3809 = vld [vmem:[#allocation4 + $0xec8] sm:$0xff]
          %v3810 = vld [vmem:[#allocation4 + $0xed0] sm:$0xff]
          %v3811 = vld [vmem:[#allocation4 + $0xed8] sm:$0xff]
          %v3812 = vld [vmem:[#allocation4 + $0xee0] sm:$0xff]
          %v3813 = vld [vmem:[#allocation4 + $0xee8] sm:$0xff]
          %v3814 = vld [vmem:[#allocation4 + $0xef0] sm:$0xff]
          %v3815 = vld [vmem:[#allocation4 + $0xef8] sm:$0xff]
          %v3816 = vld [vmem:[#allocation4 + $0xf00] sm:$0xff]
          %v3817 = vld [vmem:[#allocation4 + $0xf08] sm:$0xff]
          %v3818 = vld [vmem:[#allocation4 + $0xf10] sm:$0xff]
          %v3819 = vld [vmem:[#allocation4 + $0xf18] sm:$0xff]
          %v3820 = vld [vmem:[#allocation4 + $0xf20] sm:$0xff]
          %v3821 = vld [vmem:[#allocation4 + $0xf28] sm:$0xff]
          %v3822 = vld [vmem:[#allocation4 + $0xf30] sm:$0xff]
          %v3823 = vld [vmem:[#allocation4 + $0xf38] sm:$0xff]
          %v3824 = vld [vmem:[#allocation4 + $0xf40] sm:$0xff]
          %v3825 = vld [vmem:[#allocation4 + $0xf48] sm:$0xff]
          %v3826 = vld [vmem:[#allocation4 + $0xf50] sm:$0xff]
          %v3827 = vld [vmem:[#allocation4 + $0xf58] sm:$0xff]
          %v3828 = vld [vmem:[#allocation4 + $0xf60] sm:$0xff]
          %v3829 = vld [vmem:[#allocation4 + $0xf68] sm:$0xff]
          %v3830 = vld [vmem:[#allocation4 + $0xf70] sm:$0xff]
          %v3831 = vld [vmem:[#allocation4 + $0xf78] sm:$0xff]
          %v3832 = vld [vmem:[#allocation4 + $0xf80] sm:$0xff]
          %v3833 = vld [vmem:[#allocation4 + $0xf88] sm:$0xff]
          %v3834 = vld [vmem:[#allocation4 + $0xf90] sm:$0xff]
          %v3835 = vld [vmem:[#allocation4 + $0xf98] sm:$0xff]
          %v3836 = vld [vmem:[#allocation4 + $0xfa0] sm:$0xff]
          %v3837 = vld [vmem:[#allocation4 + $0xfa8] sm:$0xff]
          %v3838 = vld [vmem:[#allocation4 + $0xfb0] sm:$0xff]
          %v3839 = vld [vmem:[#allocation4 + $0xfb8] sm:$0xff]
          %v3840 = vld [vmem:[#allocation4 + $0xfc0] sm:$0xff]
          %v3841 = vld [vmem:[#allocation4 + $0xfc8] sm:$0xff]
          %v3842 = vld [vmem:[#allocation4 + $0xfd0] sm:$0xff]
          %v3843 = vld [vmem:[#allocation4 + $0xfd8] sm:$0xff]
          %v3844 = vld [vmem:[#allocation4 + $0xfe0] sm:$0xff]
          %v3845 = vld [vmem:[#allocation4 + $0xfe8] sm:$0xff]
          %v3846 = vld [vmem:[#allocation4 + $0xff0] sm:$0xff]
          %v3847 = vld [vmem:[#allocation4 + $0xff8] sm:$0xff]
          %v3848 = vld [vmem:[#allocation13] sm:$0xf]
          %v3850 = vlaneseq
          %v3851 = vshrl.u32 %v3850, 7
          %v3852 = vsub.s32 0, %v3851
          %v3853 = vrot.slane %v3848, %v3852
          %v3854 = vlaneseq
          %v3855 = vshrl.u32 %v3854, 7
          %v3856 = vsub.s32 1, %v3855
          %v3857 = vrot.slane %v3848, %v3856
          %v3858 = vlaneseq
          %v3859 = vshrl.u32 %v3858, 7
          %v3860 = vsub.s32 2, %v3859
          %v3861 = vrot.slane %v3848, %v3860
          %v3862 = vlaneseq
          %v3863 = vshrl.u32 %v3862, 7
          %v3864 = vsub.s32 3, %v3863
          %v3865 = vrot.slane %v3848, %v3864
          %3870 = vmatprep.subr.mxu0 %v3337
          %3871 = vmatpush1.msra.mxu0 %v3336
          %3872 = vmatprep.subr.mxu0 %v3341
          %3873 = vmatpush1.msra.mxu0 %v3340
          %3874 = vmatprep.subr.mxu0 %v3345
          %3875 = vmatpush1.msra.mxu0 %v3344
          %3876 = vmatprep.subr.mxu0 %v3349
          %3877 = vmatpush1.msra.mxu0 %v3348
          %3878 = vmatprep.subr.mxu0 %v3353
          %3879 = vmatpush1.msra.mxu0 %v3352
          %3880 = vmatprep.subr.mxu0 %v3357
          %3881 = vmatpush1.msra.mxu0 %v3356
          %3882 = vmatprep.subr.mxu0 %v3361
          %3883 = vmatpush1.msra.mxu0 %v3360
          %3884 = vmatprep.subr.mxu0 %v3365
          %3885 = vmatpush1.msra.mxu0 %v3364
          %3886 = vmatprep.subr.mxu0 %v3369
          %3887 = vmatpush1.msra.mxu0 %v3368
          %3888 = vmatprep.subr.mxu0 %v3373
          %3889 = vmatpush1.msra.mxu0 %v3372
          %3890 = vmatprep.subr.mxu0 %v3377
          %3891 = vmatpush1.msra.mxu0 %v3376
          %3892 = vmatprep.subr.mxu0 %v3381
          %3893 = vmatpush1.msra.mxu0 %v3380
          %3894 = vmatprep.subr.mxu0 %v3385
          %3895 = vmatpush1.msra.mxu0 %v3384
          %3896 = vmatprep.subr.mxu0 %v3389
          %3897 = vmatpush1.msra.mxu0 %v3388
          %3898 = vmatprep.subr.mxu0 %v3393
          %3899 = vmatpush1.msra.mxu0 %v3392
          %3900 = vmatprep.subr.mxu0 %v3397
          %3901 = vmatpush1.msra.mxu0 %v3396
          %3902 = vmatprep.subr.mxu0 %v3401
          %3903 = vmatpush1.msra.mxu0 %v3400
          %3904 = vmatprep.subr.mxu0 %v3405
          %3905 = vmatpush1.msra.mxu0 %v3404
          %3906 = vmatprep.subr.mxu0 %v3409
          %3907 = vmatpush1.msra.mxu0 %v3408
          %3908 = vmatprep.subr.mxu0 %v3413
          %3909 = vmatpush1.msra.mxu0 %v3412
          %3910 = vmatprep.subr.mxu0 %v3417
          %3911 = vmatpush1.msra.mxu0 %v3416
          %3912 = vmatprep.subr.mxu0 %v3421
          %3913 = vmatpush1.msra.mxu0 %v3420
          %3914 = vmatprep.subr.mxu0 %v3425
          %3915 = vmatpush1.msra.mxu0 %v3424
          %3916 = vmatprep.subr.mxu0 %v3429
          %3917 = vmatpush1.msra.mxu0 %v3428
          %3918 = vmatprep.subr.mxu0 %v3433
          %3919 = vmatpush1.msra.mxu0 %v3432
          %3920 = vmatprep.subr.mxu0 %v3437
          %3921 = vmatpush1.msra.mxu0 %v3436
          %3922 = vmatprep.subr.mxu0 %v3441
          %3923 = vmatpush1.msra.mxu0 %v3440
          %3924 = vmatprep.subr.mxu0 %v3445
          %3925 = vmatpush1.msra.mxu0 %v3444
          %3926 = vmatprep.subr.mxu0 %v3449
          %3927 = vmatpush1.msra.mxu0 %v3448
          %3928 = vmatprep.subr.mxu0 %v3453
          %3929 = vmatpush1.msra.mxu0 %v3452
          %3930 = vmatprep.subr.mxu0 %v3457
          %3931 = vmatpush1.msra.mxu0 %v3456
          %3932 = vmatprep.subr.mxu0 %v3461
          %3933 = vmatpush1.msra.mxu0 %v3460
          %3934 = vmatprep.mubr.f32.mxu0 %v3324
          %3935 = vmatmul.mubr.f32.gmra.mrb[0].mxu0 %v3323
          %v3936 = vpop.f32.mrb[0].mxu0
          %v3937 = vadd.f32 %v3853, %v3936
          %v3938 = vpop.f32.mrb[0].mxu0
          %v3939 = vadd.f32 %v3857, %v3938
          %3940 = vdwg.mxu0
          %3941 = vmatprep.subr.mxu0 %v3465
          %3942 = vmatpush1.msra.mxu0 %v3464
          %3943 = vmatprep.subr.mxu0 %v3469
          %3944 = vmatpush1.msra.mxu0 %v3468
          %3945 = vmatprep.subr.mxu0 %v3473
          %3946 = vmatpush1.msra.mxu0 %v3472
          %3947 = vmatprep.subr.mxu0 %v3477
          %3948 = vmatpush1.msra.mxu0 %v3476
          %3949 = vmatprep.subr.mxu0 %v3481
          %3950 = vmatpush1.msra.mxu0 %v3480
          %3951 = vmatprep.subr.mxu0 %v3485
          %3952 = vmatpush1.msra.mxu0 %v3484
          %3953 = vmatprep.subr.mxu0 %v3489
          %3954 = vmatpush1.msra.mxu0 %v3488
          %3955 = vmatprep.subr.mxu0 %v3493
          %3956 = vmatpush1.msra.mxu0 %v3492
          %3957 = vmatprep.subr.mxu0 %v3497
          %3958 = vmatpush1.msra.mxu0 %v3496
          %3959 = vmatprep.subr.mxu0 %v3501
          %3960 = vmatpush1.msra.mxu0 %v3500
          %3961 = vmatprep.subr.mxu0 %v3505
          %3962 = vmatpush1.msra.mxu0 %v3504
          %3963 = vmatprep.subr.mxu0 %v3509
          %3964 = vmatpush1.msra.mxu0 %v3508
          %3965 = vmatprep.subr.mxu0 %v3513
          %3966 = vmatpush1.msra.mxu0 %v3512
          %3967 = vmatprep.subr.mxu0 %v3517
          %3968 = vmatpush1.msra.mxu0 %v3516
          %3969 = vmatprep.subr.mxu0 %v3521
          %3970 = vmatpush1.msra.mxu0 %v3520
          %3971 = vmatprep.subr.mxu0 %v3525
          %3972 = vmatpush1.msra.mxu0 %v3524
          %3973 = vmatprep.subr.mxu0 %v3529
          %3974 = vmatpush1.msra.mxu0 %v3528
          %3975 = vmatprep.subr.mxu0 %v3533
          %3976 = vmatpush1.msra.mxu0 %v3532
          %3977 = vmatprep.subr.mxu0 %v3537
          %3978 = vmatpush1.msra.mxu0 %v3536
          %3979 = vmatprep.subr.mxu0 %v3541
          %3980 = vmatpush1.msra.mxu0 %v3540
          %3981 = vmatprep.subr.mxu0 %v3545
          %3982 = vmatpush1.msra.mxu0 %v3544
          %3983 = vmatprep.subr.mxu0 %v3549
          %3984 = vmatpush1.msra.mxu0 %v3548
          %3985 = vmatprep.subr.mxu0 %v3553
          %3986 = vmatpush1.msra.mxu0 %v3552
          %3987 = vmatprep.subr.mxu0 %v3557
          %3988 = vmatpush1.msra.mxu0 %v3556
          %3989 = vmatprep.subr.mxu0 %v3561
          %3990 = vmatpush1.msra.mxu0 %v3560
          %3991 = vmatprep.subr.mxu0 %v3565
          %3992 = vmatpush1.msra.mxu0 %v3564
          %3993 = vmatprep.subr.mxu0 %v3569
          %3994 = vmatpush1.msra.mxu0 %v3568
          %3995 = vmatprep.subr.mxu0 %v3573
          %3996 = vmatpush1.msra.mxu0 %v3572
          %3997 = vmatprep.subr.mxu0 %v3577
          %3998 = vmatpush1.msra.mxu0 %v3576
          %3999 = vmatprep.subr.mxu0 %v3581
          %4000 = vmatpush1.msra.mxu0 %v3580
          %4001 = vmatprep.subr.mxu0 %v3585
          %4002 = vmatpush1.msra.mxu0 %v3584
          %4003 = vmatprep.subr.mxu0 %v3589
          %4004 = vmatpush1.msra.mxu0 %v3588
          %4005 = vmatprep.mubr.f32.mxu0 %v3326
          %4006 = vmatmul.mubr.f32.gmra.mrb[0].mxu0 %v3325
          %v4007 = vpop.f32.mrb[0].mxu0
          %v4008 = vadd.f32 %v3937, %v4007
          %v4009 = vpop.f32.mrb[0].mxu0
          %v4010 = vadd.f32 %v3939, %v4009
          %4011 = vdwg.mxu0
          %4012 = vmatprep.subr.mxu0 %v3593
          %4013 = vmatpush1.msra.mxu0 %v3592
          %4014 = vmatprep.subr.mxu0 %v3597
          %4015 = vmatpush1.msra.mxu0 %v3596
          %4016 = vmatprep.subr.mxu0 %v3601
          %4017 = vmatpush1.msra.mxu0 %v3600
          %4018 = vmatprep.subr.mxu0 %v3605
          %4019 = vmatpush1.msra.mxu0 %v3604
          %4020 = vmatprep.subr.mxu0 %v3609
          %4021 = vmatpush1.msra.mxu0 %v3608
          %4022 = vmatprep.subr.mxu0 %v3613
          %4023 = vmatpush1.msra.mxu0 %v3612
          %4024 = vmatprep.subr.mxu0 %v3617
          %4025 = vmatpush1.msra.mxu0 %v3616
          %4026 = vmatprep.subr.mxu0 %v3621
          %4027 = vmatpush1.msra.mxu0 %v3620
          %4028 = vmatprep.subr.mxu0 %v3625
          %4029 = vmatpush1.msra.mxu0 %v3624
          %4030 = vmatprep.subr.mxu0 %v3629
          %4031 = vmatpush1.msra.mxu0 %v3628
          %4032 = vmatprep.subr.mxu0 %v3633
          %4033 = vmatpush1.msra.mxu0 %v3632
          %4034 = vmatprep.subr.mxu0 %v3637
          %4035 = vmatpush1.msra.mxu0 %v3636
          %4036 = vmatprep.subr.mxu0 %v3641
          %4037 = vmatpush1.msra.mxu0 %v3640
          %4038 = vmatprep.subr.mxu0 %v3645
          %4039 = vmatpush1.msra.mxu0 %v3644
          %4040 = vmatprep.subr.mxu0 %v3649
          %4041 = vmatpush1.msra.mxu0 %v3648
          %4042 = vmatprep.subr.mxu0 %v3653
          %4043 = vmatpush1.msra.mxu0 %v3652
          %4044 = vmatprep.subr.mxu0 %v3657
          %4045 = vmatpush1.msra.mxu0 %v3656
          %4046 = vmatprep.subr.mxu0 %v3661
          %4047 = vmatpush1.msra.mxu0 %v3660
          %4048 = vmatprep.subr.mxu0 %v3665
          %4049 = vmatpush1.msra.mxu0 %v3664
          %4050 = vmatprep.subr.mxu0 %v3669
          %4051 = vmatpush1.msra.mxu0 %v3668
          %4052 = vmatprep.subr.mxu0 %v3673
          %4053 = vmatpush1.msra.mxu0 %v3672
          %4054 = vmatprep.subr.mxu0 %v3677
          %4055 = vmatpush1.msra.mxu0 %v3676
          %4056 = vmatprep.subr.mxu0 %v3681
          %4057 = vmatpush1.msra.mxu0 %v3680
          %4058 = vmatprep.subr.mxu0 %v3685
          %4059 = vmatpush1.msra.mxu0 %v3684
          %4060 = vmatprep.subr.mxu0 %v3689
          %4061 = vmatpush1.msra.mxu0 %v3688
          %4062 = vmatprep.subr.mxu0 %v3693
          %4063 = vmatpush1.msra.mxu0 %v3692
          %4064 = vmatprep.subr.mxu0 %v3697
          %4065 = vmatpush1.msra.mxu0 %v3696
          %4066 = vmatprep.subr.mxu0 %v3701
          %4067 = vmatpush1.msra.mxu0 %v3700
          %4068 = vmatprep.subr.mxu0 %v3705
          %4069 = vmatpush1.msra.mxu0 %v3704
          %4070 = vmatprep.subr.mxu0 %v3709
          %4071 = vmatpush1.msra.mxu0 %v3708
          %4072 = vmatprep.subr.mxu0 %v3713
          %4073 = vmatpush1.msra.mxu0 %v3712
          %4074 = vmatprep.subr.mxu0 %v3717
          %4075 = vmatpush1.msra.mxu0 %v3716
          %4076 = vmatprep.mubr.f32.mxu0 %v3328
          %4077 = vmatmul.mubr.f32.gmra.mrb[0].mxu0 %v3327
          %v4078 = vpop.f32.mrb[0].mxu0
          %v4079 = vadd.f32 %v4008, %v4078
          %v4080 = vpop.f32.mrb[0].mxu0
          %v4081 = vadd.f32 %v4010, %v4080
          %4082 = vdwg.mxu0
          %4083 = vmatprep.subr.mxu0 %v3721
          %4084 = vmatpush1.msra.mxu0 %v3720
          %4085 = vmatprep.subr.mxu0 %v3725
          %4086 = vmatpush1.msra.mxu0 %v3724
          %4087 = vmatprep.subr.mxu0 %v3729
          %4088 = vmatpush1.msra.mxu0 %v3728
          %4089 = vmatprep.subr.mxu0 %v3733
          %4090 = vmatpush1.msra.mxu0 %v3732
          %4091 = vmatprep.subr.mxu0 %v3737
          %4092 = vmatpush1.msra.mxu0 %v3736
          %4093 = vmatprep.subr.mxu0 %v3741
          %4094 = vmatpush1.msra.mxu0 %v3740
          %4095 = vmatprep.subr.mxu0 %v3745
          %4096 = vmatpush1.msra.mxu0 %v3744
          %4097 = vmatprep.subr.mxu0 %v3749
          %4098 = vmatpush1.msra.mxu0 %v3748
          %4099 = vmatprep.subr.mxu0 %v3753
          %4100 = vmatpush1.msra.mxu0 %v3752
          %4101 = vmatprep.subr.mxu0 %v3757
          %4102 = vmatpush1.msra.mxu0 %v3756
          %4103 = vmatprep.subr.mxu0 %v3761
          %4104 = vmatpush1.msra.mxu0 %v3760
          %4105 = vmatprep.subr.mxu0 %v3765
          %4106 = vmatpush1.msra.mxu0 %v3764
          %4107 = vmatprep.subr.mxu0 %v3769
          %4108 = vmatpush1.msra.mxu0 %v3768
          %4109 = vmatprep.subr.mxu0 %v3773
          %4110 = vmatpush1.msra.mxu0 %v3772
          %4111 = vmatprep.subr.mxu0 %v3777
          %4112 = vmatpush1.msra.mxu0 %v3776
          %4113 = vmatprep.subr.mxu0 %v3781
          %4114 = vmatpush1.msra.mxu0 %v3780
          %4115 = vmatprep.subr.mxu0 %v3785
          %4116 = vmatpush1.msra.mxu0 %v3784
          %4117 = vmatprep.subr.mxu0 %v3789
          %4118 = vmatpush1.msra.mxu0 %v3788
          %4119 = vmatprep.subr.mxu0 %v3793
          %4120 = vmatpush1.msra.mxu0 %v3792
          %4121 = vmatprep.subr.mxu0 %v3797
          %4122 = vmatpush1.msra.mxu0 %v3796
          %4123 = vmatprep.subr.mxu0 %v3801
          %4124 = vmatpush1.msra.mxu0 %v3800
          %4125 = vmatprep.subr.mxu0 %v3805
          %4126 = vmatpush1.msra.mxu0 %v3804
          %4127 = vmatprep.subr.mxu0 %v3809
          %4128 = vmatpush1.msra.mxu0 %v3808
          %4129 = vmatprep.subr.mxu0 %v3813
          %4130 = vmatpush1.msra.mxu0 %v3812
          %4131 = vmatprep.subr.mxu0 %v3817
          %4132 = vmatpush1.msra.mxu0 %v3816
          %4133 = vmatprep.subr.mxu0 %v3821
          %4134 = vmatpush1.msra.mxu0 %v3820
          %4135 = vmatprep.subr.mxu0 %v3825
          %4136 = vmatpush1.msra.mxu0 %v3824
          %4137 = vmatprep.subr.mxu0 %v3829
          %4138 = vmatpush1.msra.mxu0 %v3828
          %4139 = vmatprep.subr.mxu0 %v3833
          %4140 = vmatpush1.msra.mxu0 %v3832
          %4141 = vmatprep.subr.mxu0 %v3837
          %4142 = vmatpush1.msra.mxu0 %v3836
          %4143 = vmatprep.subr.mxu0 %v3841
          %4144 = vmatpush1.msra.mxu0 %v3840
          %4145 = vmatprep.subr.mxu0 %v3845
          %4146 = vmatpush1.msra.mxu0 %v3844
          %4147 = vmatprep.mubr.f32.mxu0 %v3330
          %4148 = vmatmul.mubr.f32.gmra.mrb[0].mxu0 %v3329
          %v4149 = vpop.f32.mrb[0].mxu0
          %v4150 = vadd.f32 %v4079, %v4149
          %v4151 = vpop.f32.mrb[0].mxu0
          %v4152 = vadd.f32 %v4081, %v4151
          %4153 = vdwg.mxu0
          %4154 = vmatprep.subr.mxu0 %v3339
          %4155 = vmatpush1.msra.mxu0 %v3338
          %4156 = vmatprep.subr.mxu0 %v3343
          %4157 = vmatpush1.msra.mxu0 %v3342
          %4158 = vmatprep.subr.mxu0 %v3347
          %4159 = vmatpush1.msra.mxu0 %v3346
          %4160 = vmatprep.subr.mxu0 %v3351
          %4161 = vmatpush1.msra.mxu0 %v3350
          %4162 = vmatprep.subr.mxu0 %v3355
          %4163 = vmatpush1.msra.mxu0 %v3354
          %4164 = vmatprep.subr.mxu0 %v3359
          %4165 = vmatpush1.msra.mxu0 %v3358
          %4166 = vmatprep.subr.mxu0 %v3363
          %4167 = vmatpush1.msra.mxu0 %v3362
          %4168 = vmatprep.subr.mxu0 %v3367
          %4169 = vmatpush1.msra.mxu0 %v3366
          %4170 = vmatprep.subr.mxu0 %v3371
          %4171 = vmatpush1.msra.mxu0 %v3370
          %4172 = vmatprep.subr.mxu0 %v3375
          %4173 = vmatpush1.msra.mxu0 %v3374
          %4174 = vmatprep.subr.mxu0 %v3379
          %4175 = vmatpush1.msra.mxu0 %v3378
          %4176 = vmatprep.subr.mxu0 %v3383
          %4177 = vmatpush1.msra.mxu0 %v3382
          %4178 = vmatprep.subr.mxu0 %v3387
          %4179 = vmatpush1.msra.mxu0 %v3386
          %4180 = vmatprep.subr.mxu0 %v3391
          %4181 = vmatpush1.msra.mxu0 %v3390
          %4182 = vmatprep.subr.mxu0 %v3395
          %4183 = vmatpush1.msra.mxu0 %v3394
          %4184 = vmatprep.subr.mxu0 %v3399
          %4185 = vmatpush1.msra.mxu0 %v3398
          %4186 = vmatprep.subr.mxu0 %v3403
          %4187 = vmatpush1.msra.mxu0 %v3402
          %4188 = vmatprep.subr.mxu0 %v3407
          %4189 = vmatpush1.msra.mxu0 %v3406
          %4190 = vmatprep.subr.mxu0 %v3411
          %4191 = vmatpush1.msra.mxu0 %v3410
          %4192 = vmatprep.subr.mxu0 %v3415
          %4193 = vmatpush1.msra.mxu0 %v3414
          %4194 = vmatprep.subr.mxu0 %v3419
          %4195 = vmatpush1.msra.mxu0 %v3418
          %4196 = vmatprep.subr.mxu0 %v3423
          %4197 = vmatpush1.msra.mxu0 %v3422
          %4198 = vmatprep.subr.mxu0 %v3427
          %4199 = vmatpush1.msra.mxu0 %v3426
          %4200 = vmatprep.subr.mxu0 %v3431
          %4201 = vmatpush1.msra.mxu0 %v3430
          %4202 = vmatprep.subr.mxu0 %v3435
          %4203 = vmatpush1.msra.mxu0 %v3434
          %4204 = vmatprep.subr.mxu0 %v3439
          %4205 = vmatpush1.msra.mxu0 %v3438
          %4206 = vmatprep.subr.mxu0 %v3443
          %4207 = vmatpush1.msra.mxu0 %v3442
          %4208 = vmatprep.subr.mxu0 %v3447
          %4209 = vmatpush1.msra.mxu0 %v3446
          %4210 = vmatprep.subr.mxu0 %v3451
          %4211 = vmatpush1.msra.mxu0 %v3450
          %4212 = vmatprep.subr.mxu0 %v3455
          %4213 = vmatpush1.msra.mxu0 %v3454
          %4214 = vmatprep.subr.mxu0 %v3459
          %4215 = vmatpush1.msra.mxu0 %v3458
          %4216 = vmatprep.subr.mxu0 %v3463
          %4217 = vmatpush1.msra.mxu0 %v3462
          %4218 = vmatprep.mubr.f32.mxu0 %v3324
          %4219 = vmatmul.mubr.f32.gmra.mrb[0].mxu0 %v3323
          %v4220 = vpop.f32.mrb[0].mxu0
          %v4221 = vadd.f32 %v3861, %v4220
          %v4222 = vpop.f32.mrb[0].mxu0
          %v4223 = vadd.f32 %v3865, %v4222
          %4224 = vdwg.mxu0
          %4225 = vmatprep.subr.mxu0 %v3467
          %4226 = vmatpush1.msra.mxu0 %v3466
          %4227 = vmatprep.subr.mxu0 %v3471
          %4228 = vmatpush1.msra.mxu0 %v3470
          %4229 = vmatprep.subr.mxu0 %v3475
          %4230 = vmatpush1.msra.mxu0 %v3474
          %4231 = vmatprep.subr.mxu0 %v3479
          %4232 = vmatpush1.msra.mxu0 %v3478
          %4233 = vmatprep.subr.mxu0 %v3483
          %4234 = vmatpush1.msra.mxu0 %v3482
          %4235 = vmatprep.subr.mxu0 %v3487
          %4236 = vmatpush1.msra.mxu0 %v3486
          %4237 = vmatprep.subr.mxu0 %v3491
          %4238 = vmatpush1.msra.mxu0 %v3490
          %4239 = vmatprep.subr.mxu0 %v3495
          %4240 = vmatpush1.msra.mxu0 %v3494
          %4241 = vmatprep.subr.mxu0 %v3499
          %4242 = vmatpush1.msra.mxu0 %v3498
          %4243 = vmatprep.subr.mxu0 %v3503
          %4244 = vmatpush1.msra.mxu0 %v3502
          %4245 = vmatprep.subr.mxu0 %v3507
          %4246 = vmatpush1.msra.mxu0 %v3506
          %4247 = vmatprep.subr.mxu0 %v3511
          %4248 = vmatpush1.msra.mxu0 %v3510
          %4249 = vmatprep.subr.mxu0 %v3515
          %4250 = vmatpush1.msra.mxu0 %v3514
          %4251 = vmatprep.subr.mxu0 %v3519
          %4252 = vmatpush1.msra.mxu0 %v3518
          %4253 = vmatprep.subr.mxu0 %v3523
          %4254 = vmatpush1.msra.mxu0 %v3522
          %4255 = vmatprep.subr.mxu0 %v3527
          %4256 = vmatpush1.msra.mxu0 %v3526
          %4257 = vmatprep.subr.mxu0 %v3531
          %4258 = vmatpush1.msra.mxu0 %v3530
          %4259 = vmatprep.subr.mxu0 %v3535
          %4260 = vmatpush1.msra.mxu0 %v3534
          %4261 = vmatprep.subr.mxu0 %v3539
          %4262 = vmatpush1.msra.mxu0 %v3538
          %4263 = vmatprep.subr.mxu0 %v3543
          %4264 = vmatpush1.msra.mxu0 %v3542
          %4265 = vmatprep.subr.mxu0 %v3547
          %4266 = vmatpush1.msra.mxu0 %v3546
          %4267 = vmatprep.subr.mxu0 %v3551
          %4268 = vmatpush1.msra.mxu0 %v3550
          %4269 = vmatprep.subr.mxu0 %v3555
          %4270 = vmatpush1.msra.mxu0 %v3554
          %4271 = vmatprep.subr.mxu0 %v3559
          %4272 = vmatpush1.msra.mxu0 %v3558
          %4273 = vmatprep.subr.mxu0 %v3563
          %4274 = vmatpush1.msra.mxu0 %v3562
          %4275 = vmatprep.subr.mxu0 %v3567
          %4276 = vmatpush1.msra.mxu0 %v3566
          %4277 = vmatprep.subr.mxu0 %v3571
          %4278 = vmatpush1.msra.mxu0 %v3570
          %4279 = vmatprep.subr.mxu0 %v3575
          %4280 = vmatpush1.msra.mxu0 %v3574
          %4281 = vmatprep.subr.mxu0 %v3579
          %4282 = vmatpush1.msra.mxu0 %v3578
          %4283 = vmatprep.subr.mxu0 %v3583
          %4284 = vmatpush1.msra.mxu0 %v3582
          %4285 = vmatprep.subr.mxu0 %v3587
          %4286 = vmatpush1.msra.mxu0 %v3586
          %4287 = vmatprep.subr.mxu0 %v3591
          %4288 = vmatpush1.msra.mxu0 %v3590
          %4289 = vmatprep.mubr.f32.mxu0 %v3326
          %4290 = vmatmul.mubr.f32.gmra.mrb[0].mxu0 %v3325
          %v4291 = vpop.f32.mrb[0].mxu0
          %v4292 = vadd.f32 %v4221, %v4291
          %v4293 = vpop.f32.mrb[0].mxu0
          %v4294 = vadd.f32 %v4223, %v4293
          %4295 = vdwg.mxu0
          %4296 = vmatprep.subr.mxu0 %v3595
          %4297 = vmatpush1.msra.mxu0 %v3594
          %4298 = vmatprep.subr.mxu0 %v3599
          %4299 = vmatpush1.msra.mxu0 %v3598
          %4300 = vmatprep.subr.mxu0 %v3603
          %4301 = vmatpush1.msra.mxu0 %v3602
          %4302 = vmatprep.subr.mxu0 %v3607
          %4303 = vmatpush1.msra.mxu0 %v3606
          %4304 = vmatprep.subr.mxu0 %v3611
          %4305 = vmatpush1.msra.mxu0 %v3610
          %4306 = vmatprep.subr.mxu0 %v3615
          %4307 = vmatpush1.msra.mxu0 %v3614
          %4308 = vmatprep.subr.mxu0 %v3619
          %4309 = vmatpush1.msra.mxu0 %v3618
          %4310 = vmatprep.subr.mxu0 %v3623
          %4311 = vmatpush1.msra.mxu0 %v3622
          %4312 = vmatprep.subr.mxu0 %v3627
          %4313 = vmatpush1.msra.mxu0 %v3626
          %4314 = vmatprep.subr.mxu0 %v3631
          %4315 = vmatpush1.msra.mxu0 %v3630
          %4316 = vmatprep.subr.mxu0 %v3635
          %4317 = vmatpush1.msra.mxu0 %v3634
          %4318 = vmatprep.subr.mxu0 %v3639
          %4319 = vmatpush1.msra.mxu0 %v3638
          %4320 = vmatprep.subr.mxu0 %v3643
          %4321 = vmatpush1.msra.mxu0 %v3642
          %4322 = vmatprep.subr.mxu0 %v3647
          %4323 = vmatpush1.msra.mxu0 %v3646
          %4324 = vmatprep.subr.mxu0 %v3651
          %4325 = vmatpush1.msra.mxu0 %v3650
          %4326 = vmatprep.subr.mxu0 %v3655
          %4327 = vmatpush1.msra.mxu0 %v3654
          %4328 = vmatprep.subr.mxu0 %v3659
          %4329 = vmatpush1.msra.mxu0 %v3658
          %4330 = vmatprep.subr.mxu0 %v3663
          %4331 = vmatpush1.msra.mxu0 %v3662
          %4332 = vmatprep.subr.mxu0 %v3667
          %4333 = vmatpush1.msra.mxu0 %v3666
          %4334 = vmatprep.subr.mxu0 %v3671
          %4335 = vmatpush1.msra.mxu0 %v3670
          %4336 = vmatprep.subr.mxu0 %v3675
          %4337 = vmatpush1.msra.mxu0 %v3674
          %4338 = vmatprep.subr.mxu0 %v3679
          %4339 = vmatpush1.msra.mxu0 %v3678
          %4340 = vmatprep.subr.mxu0 %v3683
          %4341 = vmatpush1.msra.mxu0 %v3682
          %4342 = vmatprep.subr.mxu0 %v3687
          %4343 = vmatpush1.msra.mxu0 %v3686
          %4344 = vmatprep.subr.mxu0 %v3691
          %4345 = vmatpush1.msra.mxu0 %v3690
          %4346 = vmatprep.subr.mxu0 %v3695
          %4347 = vmatpush1.msra.mxu0 %v3694
          %4348 = vmatprep.subr.mxu0 %v3699
          %4349 = vmatpush1.msra.mxu0 %v3698
          %4350 = vmatprep.subr.mxu0 %v3703
          %4351 = vmatpush1.msra.mxu0 %v3702
          %4352 = vmatprep.subr.mxu0 %v3707
          %4353 = vmatpush1.msra.mxu0 %v3706
          %4354 = vmatprep.subr.mxu0 %v3711
          %4355 = vmatpush1.msra.mxu0 %v3710
          %4356 = vmatprep.subr.mxu0 %v3715
          %4357 = vmatpush1.msra.mxu0 %v3714
          %4358 = vmatprep.subr.mxu0 %v3719
          %4359 = vmatpush1.msra.mxu0 %v3718
          %4360 = vmatprep.mubr.f32.mxu0 %v3328
          %4361 = vmatmul.mubr.f32.gmra.mrb[0].mxu0 %v3327
          %v4362 = vpop.f32.mrb[0].mxu0
          %v4363 = vadd.f32 %v4292, %v4362
          %v4364 = vpop.f32.mrb[0].mxu0
          %v4365 = vadd.f32 %v4294, %v4364
          %4366 = vdwg.mxu0
          %4367 = vmatprep.subr.mxu0 %v3723
          %4368 = vmatpush1.msra.mxu0 %v3722
          %4369 = vmatprep.subr.mxu0 %v3727
          %4370 = vmatpush1.msra.mxu0 %v3726
          %4371 = vmatprep.subr.mxu0 %v3731
          %4372 = vmatpush1.msra.mxu0 %v3730
          %4373 = vmatprep.subr.mxu0 %v3735
          %4374 = vmatpush1.msra.mxu0 %v3734
          %4375 = vmatprep.subr.mxu0 %v3739
          %4376 = vmatpush1.msra.mxu0 %v3738
          %4377 = vmatprep.subr.mxu0 %v3743
          %4378 = vmatpush1.msra.mxu0 %v3742
          %4379 = vmatprep.subr.mxu0 %v3747
          %4380 = vmatpush1.msra.mxu0 %v3746
          %4381 = vmatprep.subr.mxu0 %v3751
          %4382 = vmatpush1.msra.mxu0 %v3750
          %4383 = vmatprep.subr.mxu0 %v3755
          %4384 = vmatpush1.msra.mxu0 %v3754
          %4385 = vmatprep.subr.mxu0 %v3759
          %4386 = vmatpush1.msra.mxu0 %v3758
          %4387 = vmatprep.subr.mxu0 %v3763
          %4388 = vmatpush1.msra.mxu0 %v3762
          %4389 = vmatprep.subr.mxu0 %v3767
          %4390 = vmatpush1.msra.mxu0 %v3766
          %4391 = vmatprep.subr.mxu0 %v3771
          %4392 = vmatpush1.msra.mxu0 %v3770
          %4393 = vmatprep.subr.mxu0 %v3775
          %4394 = vmatpush1.msra.mxu0 %v3774
          %4395 = vmatprep.subr.mxu0 %v3779
          %4396 = vmatpush1.msra.mxu0 %v3778
          %4397 = vmatprep.subr.mxu0 %v3783
          %4398 = vmatpush1.msra.mxu0 %v3782
          %4399 = vmatprep.subr.mxu0 %v3787
          %4400 = vmatpush1.msra.mxu0 %v3786
          %4401 = vmatprep.subr.mxu0 %v3791
          %4402 = vmatpush1.msra.mxu0 %v3790
          %4403 = vmatprep.subr.mxu0 %v3795
          %4404 = vmatpush1.msra.mxu0 %v3794
          %4405 = vmatprep.subr.mxu0 %v3799
          %4406 = vmatpush1.msra.mxu0 %v3798
          %4407 = vmatprep.subr.mxu0 %v3803
          %4408 = vmatpush1.msra.mxu0 %v3802
          %4409 = vmatprep.subr.mxu0 %v3807
          %4410 = vmatpush1.msra.mxu0 %v3806
          %4411 = vmatprep.subr.mxu0 %v3811
          %4412 = vmatpush1.msra.mxu0 %v3810
          %4413 = vmatprep.subr.mxu0 %v3815
          %4414 = vmatpush1.msra.mxu0 %v3814
          %4415 = vmatprep.subr.mxu0 %v3819
          %4416 = vmatpush1.msra.mxu0 %v3818
          %4417 = vmatprep.subr.mxu0 %v3823
          %4418 = vmatpush1.msra.mxu0 %v3822
          %4419 = vmatprep.subr.mxu0 %v3827
          %4420 = vmatpush1.msra.mxu0 %v3826
          %4421 = vmatprep.subr.mxu0 %v3831
          %4422 = vmatpush1.msra.mxu0 %v3830
          %4423 = vmatprep.subr.mxu0 %v3835
          %4424 = vmatpush1.msra.mxu0 %v3834
          %4425 = vmatprep.subr.mxu0 %v3839
          %4426 = vmatpush1.msra.mxu0 %v3838
          %4427 = vmatprep.subr.mxu0 %v3843
          %4428 = vmatpush1.msra.mxu0 %v3842
          %4429 = vmatprep.subr.mxu0 %v3847
          %4430 = vmatpush1.msra.mxu0 %v3846
          %4431 = vmatprep.mubr.f32.mxu0 %v3330
          %4432 = vmatmul.mubr.f32.gmra.mrb[0].mxu0 %v3329
          %v4433 = vpop.f32.mrb[0].mxu0
          %v4434 = vadd.f32 %v4363, %v4433
          %v4435 = vpop.f32.mrb[0].mxu0
          %v4436 = vadd.f32 %v4365, %v4435
          %4437 = vdwg.mxu0
          %v4438 = vmax.f32 %v4150, 0.0
          %v4439 = vmax.f32 %v4152, 0.0
          %v4440 = vmax.f32 %v4434, 0.0
          %v4441 = vmax.f32 %v4436, 0.0
          %v4442 = vmin.f32 %v4438, 6.0
          %v4443 = vmin.f32 %v4439, 6.0
          %v4444 = vmin.f32 %v4440, 6.0
          %v4445 = vmin.f32 %v4441, 6.0
          %s4446 = scalar_lea.sflag [#allocation6], 2
          %s4447 = smul.u32 512, 1
          %s4448 = sshll.u32 %s4447, 4
          %4449 = dma.done %s4446, %s4448
          %v4450 = vld [vmem:[#allocation5] sm:$0xff]
          %v4451 = vld [vmem:[#allocation5 + $0x8] sm:$0xff]
          %v4452 = vld [vmem:[#allocation5 + $0x10] sm:$0xff]
          %v4453 = vld [vmem:[#allocation5 + $0x18] sm:$0xff]
          %v4454 = vld [vmem:[#allocation5 + $0x20] sm:$0xff]
          %v4455 = vld [vmem:[#allocation5 + $0x28] sm:$0xff]
          %v4456 = vld [vmem:[#allocation5 + $0x30] sm:$0xff]
          %v4457 = vld [vmem:[#allocation5 + $0x38] sm:$0xff]
          %v4458 = vld [vmem:[#allocation5 + $0x40] sm:$0xff]
          %v4459 = vld [vmem:[#allocation5 + $0x48] sm:$0xff]
          %v4460 = vld [vmem:[#allocation5 + $0x50] sm:$0xff]
          %v4461 = vld [vmem:[#allocation5 + $0x58] sm:$0xff]
          %v4462 = vld [vmem:[#allocation5 + $0x60] sm:$0xff]
          %v4463 = vld [vmem:[#allocation5 + $0x68] sm:$0xff]
          %v4464 = vld [vmem:[#allocation5 + $0x70] sm:$0xff]
          %v4465 = vld [vmem:[#allocation5 + $0x78] sm:$0xff]
          %v4466 = vld [vmem:[#allocation5 + $0x80] sm:$0xff]
          %v4467 = vld [vmem:[#allocation5 + $0x88] sm:$0xff]
          %v4468 = vld [vmem:[#allocation5 + $0x90] sm:$0xff]
          %v4469 = vld [vmem:[#allocation5 + $0x98] sm:$0xff]
          %v4470 = vld [vmem:[#allocation5 + $0xa0] sm:$0xff]
          %v4471 = vld [vmem:[#allocation5 + $0xa8] sm:$0xff]
          %v4472 = vld [vmem:[#allocation5 + $0xb0] sm:$0xff]
          %v4473 = vld [vmem:[#allocation5 + $0xb8] sm:$0xff]
          %v4474 = vld [vmem:[#allocation5 + $0xc0] sm:$0xff]
          %v4475 = vld [vmem:[#allocation5 + $0xc8] sm:$0xff]
          %v4476 = vld [vmem:[#allocation5 + $0xd0] sm:$0xff]
          %v4477 = vld [vmem:[#allocation5 + $0xd8] sm:$0xff]
          %v4478 = vld [vmem:[#allocation5 + $0xe0] sm:$0xff]
          %v4479 = vld [vmem:[#allocation5 + $0xe8] sm:$0xff]
          %v4480 = vld [vmem:[#allocation5 + $0xf0] sm:$0xff]
          %v4481 = vld [vmem:[#allocation5 + $0xf8] sm:$0xff]
          %v4482 = vld [vmem:[#allocation5 + $0x100] sm:$0xff]
          %v4483 = vld [vmem:[#allocation5 + $0x108] sm:$0xff]
          %v4484 = vld [vmem:[#allocation5 + $0x110] sm:$0xff]
          %v4485 = vld [vmem:[#allocation5 + $0x118] sm:$0xff]
          %v4486 = vld [vmem:[#allocation5 + $0x120] sm:$0xff]
          %v4487 = vld [vmem:[#allocation5 + $0x128] sm:$0xff]
          %v4488 = vld [vmem:[#allocation5 + $0x130] sm:$0xff]
          %v4489 = vld [vmem:[#allocation5 + $0x138] sm:$0xff]
          %v4490 = vld [vmem:[#allocation5 + $0x140] sm:$0xff]
          %v4491 = vld [vmem:[#allocation5 + $0x148] sm:$0xff]
          %v4492 = vld [vmem:[#allocation5 + $0x150] sm:$0xff]
          %v4493 = vld [vmem:[#allocation5 + $0x158] sm:$0xff]
          %v4494 = vld [vmem:[#allocation5 + $0x160] sm:$0xff]
          %v4495 = vld [vmem:[#allocation5 + $0x168] sm:$0xff]
          %v4496 = vld [vmem:[#allocation5 + $0x170] sm:$0xff]
          %v4497 = vld [vmem:[#allocation5 + $0x178] sm:$0xff]
          %v4498 = vld [vmem:[#allocation5 + $0x180] sm:$0xff]
          %v4499 = vld [vmem:[#allocation5 + $0x188] sm:$0xff]
          %v4500 = vld [vmem:[#allocation5 + $0x190] sm:$0xff]
          %v4501 = vld [vmem:[#allocation5 + $0x198] sm:$0xff]
          %v4502 = vld [vmem:[#allocation5 + $0x1a0] sm:$0xff]
          %v4503 = vld [vmem:[#allocation5 + $0x1a8] sm:$0xff]
          %v4504 = vld [vmem:[#allocation5 + $0x1b0] sm:$0xff]
          %v4505 = vld [vmem:[#allocation5 + $0x1b8] sm:$0xff]
          %v4506 = vld [vmem:[#allocation5 + $0x1c0] sm:$0xff]
          %v4507 = vld [vmem:[#allocation5 + $0x1c8] sm:$0xff]
          %v4508 = vld [vmem:[#allocation5 + $0x1d0] sm:$0xff]
          %v4509 = vld [vmem:[#allocation5 + $0x1d8] sm:$0xff]
          %v4510 = vld [vmem:[#allocation5 + $0x1e0] sm:$0xff]
          %v4511 = vld [vmem:[#allocation5 + $0x1e8] sm:$0xff]
          %v4512 = vld [vmem:[#allocation5 + $0x1f0] sm:$0xff]
          %v4513 = vld [vmem:[#allocation5 + $0x1f8] sm:$0xff]
          %v4514 = vld [vmem:[#allocation15] sm:$0x1]
          %v4516 = vlaneseq
          %v4517 = vshrl.u32 %v4516, 7
          %v4518 = vsub.s32 0, %v4517
          %v4519 = vrot.slane %v4514, %v4518
          %4521 = vmatprep.subr.mxu0 0.0
          %4522 = vmatpush1.msra.mxu0 %v4450
          %4523 = vmatprep.subr.mxu0 0.0
          %4524 = vmatpush1.msra.mxu0 %v4451
          %4525 = vmatprep.subr.mxu0 0.0
          %4526 = vmatpush1.msra.mxu0 %v4452
          %4527 = vmatprep.subr.mxu0 0.0
          %4528 = vmatpush1.msra.mxu0 %v4453
          %4529 = vmatprep.subr.mxu0 0.0
          %4530 = vmatpush1.msra.mxu0 %v4454
          %4531 = vmatprep.subr.mxu0 0.0
          %4532 = vmatpush1.msra.mxu0 %v4455
          %4533 = vmatprep.subr.mxu0 0.0
          %4534 = vmatpush1.msra.mxu0 %v4456
          %4535 = vmatprep.subr.mxu0 0.0
          %4536 = vmatpush1.msra.mxu0 %v4457
          %4537 = vmatprep.subr.mxu0 0.0
          %4538 = vmatpush1.msra.mxu0 %v4458
          %4539 = vmatprep.subr.mxu0 0.0
          %4540 = vmatpush1.msra.mxu0 %v4459
          %4541 = vmatprep.subr.mxu0 0.0
          %4542 = vmatpush1.msra.mxu0 %v4460
          %4543 = vmatprep.subr.mxu0 0.0
          %4544 = vmatpush1.msra.mxu0 %v4461
          %4545 = vmatprep.subr.mxu0 0.0
          %4546 = vmatpush1.msra.mxu0 %v4462
          %4547 = vmatprep.subr.mxu0 0.0
          %4548 = vmatpush1.msra.mxu0 %v4463
          %4549 = vmatprep.subr.mxu0 0.0
          %4550 = vmatpush1.msra.mxu0 %v4464
          %4551 = vmatprep.subr.mxu0 0.0
          %4552 = vmatpush1.msra.mxu0 %v4465
          %4553 = vmatprep.subr.mxu0 0.0
          %4554 = vmatpush1.msra.mxu0 %v4466
          %4555 = vmatprep.subr.mxu0 0.0
          %4556 = vmatpush1.msra.mxu0 %v4467
          %4557 = vmatprep.subr.mxu0 0.0
          %4558 = vmatpush1.msra.mxu0 %v4468
          %4559 = vmatprep.subr.mxu0 0.0
          %4560 = vmatpush1.msra.mxu0 %v4469
          %4561 = vmatprep.subr.mxu0 0.0
          %4562 = vmatpush1.msra.mxu0 %v4470
          %4563 = vmatprep.subr.mxu0 0.0
          %4564 = vmatpush1.msra.mxu0 %v4471
          %4565 = vmatprep.subr.mxu0 0.0
          %4566 = vmatpush1.msra.mxu0 %v4472
          %4567 = vmatprep.subr.mxu0 0.0
          %4568 = vmatpush1.msra.mxu0 %v4473
          %4569 = vmatprep.subr.mxu0 0.0
          %4570 = vmatpush1.msra.mxu0 %v4474
          %4571 = vmatprep.subr.mxu0 0.0
          %4572 = vmatpush1.msra.mxu0 %v4475
          %4573 = vmatprep.subr.mxu0 0.0
          %4574 = vmatpush1.msra.mxu0 %v4476
          %4575 = vmatprep.subr.mxu0 0.0
          %4576 = vmatpush1.msra.mxu0 %v4477
          %4577 = vmatprep.subr.mxu0 0.0
          %4578 = vmatpush1.msra.mxu0 %v4478
          %4579 = vmatprep.subr.mxu0 0.0
          %4580 = vmatpush1.msra.mxu0 %v4479
          %4581 = vmatprep.subr.mxu0 0.0
          %4582 = vmatpush1.msra.mxu0 %v4480
          %4583 = vmatprep.subr.mxu0 0.0
          %4584 = vmatpush1.msra.mxu0 %v4481
          %4585 = vmatprep.mubr.f32.mxu0 %v4443
          %4586 = vmatmul.mubr.f32.gmra.mrb[0].mxu0 %v4442
          %v4587 = vpop.f32.mrb[0].mxu0
          %v4588 = vadd.f32 %v4519, %v4587
          %v4589 = vpop.f32.mrb[0].mxu0
          %4590 = vdwg.mxu0
          %4591 = vmatprep.subr.mxu0 0.0
          %4592 = vmatpush1.msra.mxu0 %v4482
          %4593 = vmatprep.subr.mxu0 0.0
          %4594 = vmatpush1.msra.mxu0 %v4483
          %4595 = vmatprep.subr.mxu0 0.0
          %4596 = vmatpush1.msra.mxu0 %v4484
          %4597 = vmatprep.subr.mxu0 0.0
          %4598 = vmatpush1.msra.mxu0 %v4485
          %4599 = vmatprep.subr.mxu0 0.0
          %4600 = vmatpush1.msra.mxu0 %v4486
          %4601 = vmatprep.subr.mxu0 0.0
          %4602 = vmatpush1.msra.mxu0 %v4487
          %4603 = vmatprep.subr.mxu0 0.0
          %4604 = vmatpush1.msra.mxu0 %v4488
          %4605 = vmatprep.subr.mxu0 0.0
          %4606 = vmatpush1.msra.mxu0 %v4489
          %4607 = vmatprep.subr.mxu0 0.0
          %4608 = vmatpush1.msra.mxu0 %v4490
          %4609 = vmatprep.subr.mxu0 0.0
          %4610 = vmatpush1.msra.mxu0 %v4491
          %4611 = vmatprep.subr.mxu0 0.0
          %4612 = vmatpush1.msra.mxu0 %v4492
          %4613 = vmatprep.subr.mxu0 0.0
          %4614 = vmatpush1.msra.mxu0 %v4493
          %4615 = vmatprep.subr.mxu0 0.0
          %4616 = vmatpush1.msra.mxu0 %v4494
          %4617 = vmatprep.subr.mxu0 0.0
          %4618 = vmatpush1.msra.mxu0 %v4495
          %4619 = vmatprep.subr.mxu0 0.0
          %4620 = vmatpush1.msra.mxu0 %v4496
          %4621 = vmatprep.subr.mxu0 0.0
          %4622 = vmatpush1.msra.mxu0 %v4497
          %4623 = vmatprep.subr.mxu0 0.0
          %4624 = vmatpush1.msra.mxu0 %v4498
          %4625 = vmatprep.subr.mxu0 0.0
          %4626 = vmatpush1.msra.mxu0 %v4499
          %4627 = vmatprep.subr.mxu0 0.0
          %4628 = vmatpush1.msra.mxu0 %v4500
          %4629 = vmatprep.subr.mxu0 0.0
          %4630 = vmatpush1.msra.mxu0 %v4501
          %4631 = vmatprep.subr.mxu0 0.0
          %4632 = vmatpush1.msra.mxu0 %v4502
          %4633 = vmatprep.subr.mxu0 0.0
          %4634 = vmatpush1.msra.mxu0 %v4503
          %4635 = vmatprep.subr.mxu0 0.0
          %4636 = vmatpush1.msra.mxu0 %v4504
          %4637 = vmatprep.subr.mxu0 0.0
          %4638 = vmatpush1.msra.mxu0 %v4505
          %4639 = vmatprep.subr.mxu0 0.0
          %4640 = vmatpush1.msra.mxu0 %v4506
          %4641 = vmatprep.subr.mxu0 0.0
          %4642 = vmatpush1.msra.mxu0 %v4507
          %4643 = vmatprep.subr.mxu0 0.0
          %4644 = vmatpush1.msra.mxu0 %v4508
          %4645 = vmatprep.subr.mxu0 0.0
          %4646 = vmatpush1.msra.mxu0 %v4509
          %4647 = vmatprep.subr.mxu0 0.0
          %4648 = vmatpush1.msra.mxu0 %v4510
          %4649 = vmatprep.subr.mxu0 0.0
          %4650 = vmatpush1.msra.mxu0 %v4511
          %4651 = vmatprep.subr.mxu0 0.0
          %4652 = vmatpush1.msra.mxu0 %v4512
          %4653 = vmatprep.subr.mxu0 0.0
          %4654 = vmatpush1.msra.mxu0 %v4513
          %4655 = vmatprep.mubr.f32.mxu0 %v4445
          %4656 = vmatmul.mubr.f32.gmra.mrb[0].mxu0 %v4444
          %v4657 = vpop.f32.mrb[0].mxu0
          %v4658 = vadd.f32 %v4588, %v4657
          %v4659 = vpop.f32.mrb[0].mxu0
          %4660 = vdwg.mxu0
          %vm4661 = vcmask 25600
          %4662 = vst.msk [vmem:[#allocation16] sm:$0x3] %vm4661, %v4658
        $region122: #{actor_forward.1} parent=51 // pred_fallthru
          _
        // Predicated region
        $region123: #{actor_forward.1} parent=51 // pred_check
          %p4663 = pneg %p212
        $region124: #{actor_forward.1} parent=51 // pred_check_branch
          %4665 = sbr.rel (%p4663) target = $region126
        $region125: #{actor_forward.1} parent=51 // pred_region
          %s4667 = ssub.s32 32, 32
          %4668 = vsyncadd [#allocation9], %s4667
          %s4670 = sshll.u32 [#allocation16], 4
          %s4671 = int_to_ptr.vmem [resolvable:$true] %s4670
          %4673 = dma.vmem_to_hbm [thread:$0]  %s4671, 32, %s11, [#allocation9]
        $region126: #{actor_forward.1} parent=51 // pred_fallthru
          _
        // Predicated region
        $region127: #{actor_forward.1} parent=51 // pred_check
          %p4674 = pneg %p212
        $region128: #{actor_forward.1} parent=51 // pred_check_branch
          %4676 = sbr.rel (%p4674) target = $region130
        $region129: #{actor_forward.1} parent=51 // pred_region
          %4677 = dma.done [#allocation9], 32
        $region130: #{actor_forward.1} parent=51 // pred_fallthru
          _
      $region52: #{actor_forward.1} parent=5 // pred_fallthru
        _
      %p4678 = scmp.le.s32.totalorder 2, %s21
      // Predicated region
      $region131: #{actor_forward.1} parent=5 // pred_check
        %p4679 = pneg %p4678
      $region132: #{actor_forward.1} parent=5 // pred_check_branch
        %4681 = sbr.rel (%p4679) target = $region134
      $region133: #{actor_forward.1} parent=5 // pred_region
        %s4682 = ssub.s32 %s21, 2
      $region134: #{actor_forward.1} parent=5 // pred_fallthru
        _
    $region6: #{actor_forward.1} parent=1 // loop_footer
      %s25 = sadd.s32 1, %s21
    $region7: #{actor_forward.1} parent=1 // loop_footer_branch
      %20 = sbr.rel target = $region3
    $region8: #{actor_forward.1} parent=1 // loop_exit
      _
    %4683 = vsyncpa [#allocation8], 1
    %s4684 = scalar_lea.sflag [#allocation8], 1
    %4685 = vsyncpa %s4684, 1
    %4686 = vsyncpa [#allocation11], 1
    %4687 = vsyncpa [#allocation14], 1
    %4688 = vsyncpa [#allocation9], 1
    %s4689 = scalar_lea.sflag [#allocation9], 1
    %4690 = vsyncpa %s4689, 1
  %4691 = vsyncmov [#allocation6]
  %s4692 = vpop.sfrf %4691
  %p4693 = scmp.eq.s32.totalorder %s4692, 0
  %p4694 = pneg %p4693
  %4696 = shalt.err (%p4694)
  %s4697 = scalar_lea.sflag [#allocation6], 1
  %4698 = vsyncmov %s4697
  %s4699 = vpop.sfrf %4698
  %p4700 = scmp.eq.s32.totalorder %s4699, 0
  %p4701 = pneg %p4700
  %4703 = shalt.err (%p4701)
  %s4704 = scalar_lea.sflag [#allocation6], 2
  %4705 = vsyncmov %s4704
  %s4706 = vpop.sfrf %4705
  %p4707 = scmp.eq.s32.totalorder %s4706, 0
  %p4708 = pneg %p4707
  %4710 = shalt.err (%p4708)

</llo_original>
